<compile_context>
chip_gen: v5e
topology: v5e:2x2
jax: 0.10.0
libtpu: 0.0.40
codegen_flags: <defaults>
</compile_context>

<pallas_src>
import jax
import jax.numpy as jnp
from jax.experimental import pallas as pl
from jax.experimental.pallas import tpu as pltpu


def _round_up(n, m):
    return ((n + m - 1) // m) * m


def _cdiv(a, b):
    return -(-a // b)


def _make_mhp_kernel(num_hidden_mm):
    """num_hidden_mm = number of stacked (H,H) hidden matmuls (= num_hidden_layers - 1)."""

    def _silu(h):
        # sigmoid(h) = 0.5 * tanh(0.5*h) + 0.5 : one EUP push, exact, no overflow.
        return h * (0.5 * jnp.tanh(0.5 * h) + 0.5)

    if num_hidden_mm > 0:
        def kernel(x_ref, w0_ref, wh_ref, wl_ref, bh_ref, bl_ref, o_ref):
            h = x_ref[...]                                         # (tm, in_dim) f32
            # Layer 0: (tm, in_dim) x (in_dim, H) -> (tm, H), f32 accumulate.
            h = jnp.dot(h.astype(jnp.bfloat16), w0_ref[...],
                        preferred_element_type=jnp.float32) + bh_ref[pl.ds(0, 1), :]
            h = _silu(h)
            # Hidden layers: (tm, H) x (H, H), weights indexed statically.
            for l in range(num_hidden_mm):
                h = jnp.dot(h.astype(jnp.bfloat16), wh_ref[l],
                            preferred_element_type=jnp.float32) + bh_ref[pl.ds(l + 1, 1), :]
                h = _silu(h)
            # Final projection (no activation), output lane-padded to 128.
            h = jnp.dot(h.astype(jnp.bfloat16), wl_ref[...],
                        preferred_element_type=jnp.float32) + bl_ref[...]
            o_ref[...] = h.astype(o_ref.dtype)
    else:
        def kernel(x_ref, w0_ref, wl_ref, bh_ref, bl_ref, o_ref):
            h = x_ref[...]
            h = jnp.dot(h.astype(jnp.bfloat16), w0_ref[...],
                        preferred_element_type=jnp.float32) + bh_ref[...]
            h = _silu(h)
            h = jnp.dot(h.astype(jnp.bfloat16), wl_ref[...],
                        preferred_element_type=jnp.float32) + bl_ref[...]
            o_ref[...] = h.astype(o_ref.dtype)

    return kernel


def prepare_params(params, *, lane=128):
    """One-time prep (pad to 128 lanes, cast weights to bf16, stack).

    params: list of (W (din, dout), b (1, dout)) f32, as in the PyTorch module.
    Returns (arrays, meta) where arrays = (w0, wh, wl, bh, bl):
      w0: (in_dim, H_p) bf16        wh: (L-1, H_p, H_p) bf16 or None
      wl: (H_p, out_p) bf16         bh: (L, H_p) f32          bl: (1, out_p) f32
    """
    assert len(params) >= 2
    in_dim, hidden = params[0][0].shape
    out_dim = params[-1][0].shape[1]
    hp = _round_up(hidden, lane)
    op = _round_up(out_dim, lane)

    w0, b0 = params[0]
    w0_p = jnp.pad(w0.astype(jnp.float32),
                   ((0, 0), (0, hp - hidden))).astype(jnp.bfloat16)

    hidden_ws = []
    hidden_bs = [jnp.pad(b0.astype(jnp.float32).reshape(1, -1),
                         ((0, 0), (0, hp - hidden)))]
    for w, b in params[1:-1]:
        hidden_ws.append(jnp.pad(w.astype(jnp.float32),
                                 ((0, hp - hidden), (0, hp - hidden))))
        hidden_bs.append(jnp.pad(b.astype(jnp.float32).reshape(1, -1),
                                 ((0, 0), (0, hp - hidden))))
    wh_p = jnp.stack(hidden_ws, 0).astype(jnp.bfloat16) if hidden_ws else None
    bh_p = jnp.concatenate(hidden_bs, axis=0)                    # (L, H_p) f32

    wl, bl = params[-1]
    wl_p = jnp.pad(wl.astype(jnp.float32),
                   ((0, hp - hidden), (0, op - out_dim))).astype(jnp.bfloat16)
    bl_p = jnp.pad(bl.astype(jnp.float32).reshape(1, -1),
                   ((0, 0), (0, op - out_dim)))

    meta = dict(in_dim=in_dim, hidden_p=hp, out_dim=out_dim, out_p=op,
                num_hidden_mm=len(hidden_ws))
    return (w0_p, wh_p, wl_p, bh_p, bl_p), meta


def mhp_forward(x, prepared, meta, *, tm=256):
    """x: (batch, in_dim) f32. prepared/meta from prepare_params()."""
    w0_p, wh_p, wl_p, bh_p, bl_p = prepared
    batch, in_dim = x.shape
    assert in_dim == meta["in_dim"]
    hp, op, nhm = meta["hidden_p"], meta["out_p"], meta["num_hidden_mm"]

    # ---- batch tile: multiple of 8; >=2 grid blocks when batch > 8 (v7x has
    # 2 TensorCores); larger tile for big batches; minimal padded waste. ----
    tm_cap = 512 if batch >= 2048 else tm
    tm_eff = min(tm_cap, _round_up(batch, 8))
    if batch > 8:
        tm_eff = min(tm_eff, _round_up(_cdiv(batch, 2), 8))
    nblocks = _cdiv(batch, tm_eff)
    tm_eff = _round_up(_cdiv(batch, nblocks), 8)
    batch_p = tm_eff * nblocks

    x_p = x.astype(jnp.float32)
    if batch_p != batch:
        x_p = jnp.pad(x_p, ((0, batch_p - batch), (0, 0)))

    def resident(shape):
        return pl.BlockSpec(tuple(shape), lambda i: (0,) * len(shape))

    in_specs = [pl.BlockSpec((tm_eff, in_dim), lambda i: (i, 0)),
                resident(w0_p.shape)]
    args = [x_p, w0_p]
    if nhm > 0:
        in_specs.append(resident(wh_p.shape))
        args.append(wh_p)
    in_specs += [resident(wl_p.shape), resident(bh_p.shape), resident(bl_p.shape)]
    args += [wl_p, bh_p, bl_p]

    # Advisory cost estimate (bf16 weight bytes, unpadded x).
    flops = 2 * batch_p * (in_dim * hp + nhm * hp * hp + hp * op)
    transcendentals = batch_p * (nhm + 1) * hp
    wh_bytes = 2 * wh_p.size if wh_p is not None else 0
    bytes_accessed = (4 * (x_p.size + batch_p * op + bh_p.size + bl_p.size)
                      + 2 * (w0_p.size + wl_p.size) + wh_bytes)

    out_p = pl.pallas_call(
        _make_mhp_kernel(nhm),
        out_shape=jax.ShapeDtypeStruct((batch_p, op), jnp.float32),
        grid_spec=pltpu.PrefetchScalarGridSpec(
            num_scalar_prefetch=0,
            grid=(nblocks,),
            in_specs=in_specs,
            out_specs=pl.BlockSpec((tm_eff, op), lambda i: (i, 0)),
        ),
        compiler_params=pltpu.CompilerParams(
            dimension_semantics=("parallel",)),
        cost_estimate=pl.CostEstimate(
            flops=flops,
            transcendentals=transcendentals,
            bytes_accessed=bytes_accessed),
    )(*args)

    return out_p[:batch, :meta["out_dim"]]


def init_params(key, input_dim=11, hidden_dim=256, output_dim=1,
                num_hidden_layers=5):
    """Synthetic init matching nn.Linear's default U(-1/sqrt(fan_in))."""
    dims = [input_dim] + [hidden_dim] * num_hidden_layers + [output_dim]
    params = []
    for din, dout in zip(dims[:-1], dims[1:]):
        key, kw, kb = jax.random.split(key, 3)
        scale = 1.0 / jnp.sqrt(jnp.float32(din))
        w = jax.random.uniform(kw, (din, dout), jnp.float32, -scale, scale)
        b = jax.random.uniform(kb, (1, dout), jnp.float32, -scale, scale)
        params.append((w, b))
    return params


def mhp_reference(x, params, dot_dtype=jnp.float32):
    """Pure-JAX reference; dot_dtype=bf16 matches the kernel's MXU numerics."""
    h = x.astype(jnp.float32)
    for i, (w, b) in enumerate(params):
        h = jnp.dot(h.astype(dot_dtype), w.astype(dot_dtype),
                    preferred_element_type=jnp.float32) + b.reshape(1, -1)
        if i < len(params) - 1:
            h = h * jax.nn.sigmoid(h)
    return h


if __name__ == "__main__":
    key = jax.random.PRNGKey(0)
    kx, kp = jax.random.split(key)

    # Module defaults: input_dim=11, hidden_dim=256, output_dim=1, 5 hidden layers.
    batch, input_dim, hidden_dim, output_dim, num_hidden_layers = 512, 11, 256, 1, 5
    x = jax.random.normal(kx, (batch, input_dim), jnp.float32)
    params = init_params(kp, input_dim, hidden_dim, output_dim,
                         num_hidden_layers)

    # One-time parameter prep (padding / bf16 cast / stacking) hoisted out of
    # the per-call path.
    prepared, meta = prepare_params(params)

    out = mhp_forward(x, prepared, meta)
    out = jax.block_until_ready(out)
    assert out.shape == (batch, output_dim)

    # Compare against a reference using the same bf16-dot / f32-accumulate
    # numerics (sigmoid is exact now that the approx reciprocal is gone).
    ref = mhp_reference(x, params, dot_dtype=jnp.bfloat16)
    assert jnp.allclose(out, ref, atol=1e-3, rtol=1e-3), "mismatch vs reference"

    print("KERNEL_OK")
</pallas_src>

<mosaic_0001>
module attributes {stable_mosaic.version = 11 : i64} {
  func.func @kernel(%arg0: i32, %arg1: memref<256x11xf32, #tpu.memory_space<vmem>>, %arg2: memref<11x256xbf16, #tpu.memory_space<vmem>>, %arg3: memref<4x256x256xbf16, #tpu.memory_space<vmem>>, %arg4: memref<256x128xbf16, #tpu.memory_space<vmem>>, %arg5: memref<5x256xf32, #tpu.memory_space<vmem>>, %arg6: memref<1x128xf32, #tpu.memory_space<vmem>>, %arg7: memref<256x128xf32, #tpu.memory_space<vmem>>) attributes {dimension_semantics = [#tpu.dimension_semantics<parallel>], iteration_bounds = array<i64: 2>, scalar_prefetch = 0 : i64, scratch_operands = 0 : i64, tpu.core_type = #tpu.core_type<tc>, window_params = [{transform_indices = @transform_0, window_bounds = array<i64: 256, 11>}, {pipeline_mode = #tpu.pipeline_mode<synchronous>, transform_indices = @transform_1, window_bounds = array<i64: 11, 256>}, {pipeline_mode = #tpu.pipeline_mode<synchronous>, transform_indices = @transform_2, window_bounds = array<i64: 4, 256, 256>}, {pipeline_mode = #tpu.pipeline_mode<synchronous>, transform_indices = @transform_3, window_bounds = array<i64: 256, 128>}, {pipeline_mode = #tpu.pipeline_mode<synchronous>, transform_indices = @transform_4, window_bounds = array<i64: 5, 256>}, {pipeline_mode = #tpu.pipeline_mode<synchronous>, transform_indices = @transform_5, window_bounds = array<i64: 1, 128>}, {transform_indices = @transform_6, window_bounds = array<i64: 256, 128>}]} {
    %c0 = arith.constant 0 : index
    %c0_0 = arith.constant 0 : index
    %0 = vector.load %arg1[%c0, %c0_0] : memref<256x11xf32, #tpu.memory_space<vmem>>, vector<256x11xf32>
    %1 = arith.truncf %0 : vector<256x11xf32> to vector<256x11xbf16>
    %c0_1 = arith.constant 0 : index
    %c0_2 = arith.constant 0 : index
    %2 = vector.load %arg2[%c0_1, %c0_2] : memref<11x256xbf16, #tpu.memory_space<vmem>>, vector<11x256xbf16>
    %cst = arith.constant dense<0.000000e+00> : vector<256x256xf32>
    %3 = tpu.matmul %1, %2, %cst {dimension_numbers = #tpu.dot_dimension_numbers<[1], [0], [0], [1], [0, 0, 1, 1], [], []>} : vector<256x11xbf16>, vector<11x256xbf16>, vector<256x256xf32> -> vector<256x256xf32>
    %c0_3 = arith.constant 0 : index
    %c0_4 = arith.constant 0 : index
    %4 = vector.load %arg5[%c0_3, %c0_4] : memref<5x256xf32, #tpu.memory_space<vmem>>, vector<1x256xf32>
    %5 = vector.broadcast %4 : vector<1x256xf32> to vector<256x256xf32>
    %6 = arith.addf %3, %5 : vector<256x256xf32>
    %cst_5 = arith.constant 5.000000e-01 : f32
    %7 = vector.broadcast %cst_5 : f32 to vector<256x256xf32>
    %8 = arith.mulf %7, %6 : vector<256x256xf32>
    %9 = math.tanh %8 : vector<256x256xf32>
    %cst_6 = arith.constant 5.000000e-01 : f32
    %10 = vector.broadcast %cst_6 : f32 to vector<256x256xf32>
    %11 = arith.mulf %10, %9 : vector<256x256xf32>
    %cst_7 = arith.constant 5.000000e-01 : f32
    %12 = vector.broadcast %cst_7 : f32 to vector<256x256xf32>
    %13 = arith.addf %11, %12 : vector<256x256xf32>
    %14 = arith.mulf %6, %13 : vector<256x256xf32>
    %15 = arith.truncf %14 : vector<256x256xf32> to vector<256x256xbf16>
    %c0_8 = arith.constant 0 : index
    %c0_9 = arith.constant 0 : index
    %c0_10 = arith.constant 0 : index
    %16 = vector.load %arg3[%c0_8, %c0_9, %c0_10] : memref<4x256x256xbf16, #tpu.memory_space<vmem>>, vector<1x256x256xbf16>
    %17 = vector.shape_cast %16 : vector<1x256x256xbf16> to vector<256x256xbf16>
    %cst_11 = arith.constant dense<0.000000e+00> : vector<256x256xf32>
    %18 = tpu.matmul %15, %17, %cst_11 {dimension_numbers = #tpu.dot_dimension_numbers<[1], [0], [0], [1], [0, 0, 1, 1], [], []>} : vector<256x256xbf16>, vector<256x256xbf16>, vector<256x256xf32> -> vector<256x256xf32>
    %c1 = arith.constant 1 : index
    %c0_12 = arith.constant 0 : index
    %19 = vector.load %arg5[%c1, %c0_12] : memref<5x256xf32, #tpu.memory_space<vmem>>, vector<1x256xf32>
    %20 = vector.broadcast %19 : vector<1x256xf32> to vector<256x256xf32>
    %21 = arith.addf %18, %20 : vector<256x256xf32>
    %cst_13 = arith.constant 5.000000e-01 : f32
    %22 = vector.broadcast %cst_13 : f32 to vector<256x256xf32>
    %23 = arith.mulf %22, %21 : vector<256x256xf32>
    %24 = math.tanh %23 : vector<256x256xf32>
    %cst_14 = arith.constant 5.000000e-01 : f32
    %25 = vector.broadcast %cst_14 : f32 to vector<256x256xf32>
    %26 = arith.mulf %25, %24 : vector<256x256xf32>
    %cst_15 = arith.constant 5.000000e-01 : f32
    %27 = vector.broadcast %cst_15 : f32 to vector<256x256xf32>
    %28 = arith.addf %26, %27 : vector<256x256xf32>
    %29 = arith.mulf %21, %28 : vector<256x256xf32>
    %30 = arith.truncf %29 : vector<256x256xf32> to vector<256x256xbf16>
    %c1_16 = arith.constant 1 : index
    %c0_17 = arith.constant 0 : index
    %c0_18 = arith.constant 0 : index
    %31 = vector.load %arg3[%c1_16, %c0_17, %c0_18] : memref<4x256x256xbf16, #tpu.memory_space<vmem>>, vector<1x256x256xbf16>
    %32 = vector.shape_cast %31 : vector<1x256x256xbf16> to vector<256x256xbf16>
    %cst_19 = arith.constant dense<0.000000e+00> : vector<256x256xf32>
    %33 = tpu.matmul %30, %32, %cst_19 {dimension_numbers = #tpu.dot_dimension_numbers<[1], [0], [0], [1], [0, 0, 1, 1], [], []>} : vector<256x256xbf16>, vector<256x256xbf16>, vector<256x256xf32> -> vector<256x256xf32>
    %c2 = arith.constant 2 : index
    %c0_20 = arith.constant 0 : index
    %34 = vector.load %arg5[%c2, %c0_20] : memref<5x256xf32, #tpu.memory_space<vmem>>, vector<1x256xf32>
    %35 = vector.broadcast %34 : vector<1x256xf32> to vector<256x256xf32>
    %36 = arith.addf %33, %35 : vector<256x256xf32>
    %cst_21 = arith.constant 5.000000e-01 : f32
    %37 = vector.broadcast %cst_21 : f32 to vector<256x256xf32>
    %38 = arith.mulf %37, %36 : vector<256x256xf32>
    %39 = math.tanh %38 : vector<256x256xf32>
    %cst_22 = arith.constant 5.000000e-01 : f32
    %40 = vector.broadcast %cst_22 : f32 to vector<256x256xf32>
    %41 = arith.mulf %40, %39 : vector<256x256xf32>
    %cst_23 = arith.constant 5.000000e-01 : f32
    %42 = vector.broadcast %cst_23 : f32 to vector<256x256xf32>
    %43 = arith.addf %41, %42 : vector<256x256xf32>
    %44 = arith.mulf %36, %43 : vector<256x256xf32>
    %45 = arith.truncf %44 : vector<256x256xf32> to vector<256x256xbf16>
    %c2_24 = arith.constant 2 : index
    %c0_25 = arith.constant 0 : index
    %c0_26 = arith.constant 0 : index
    %46 = vector.load %arg3[%c2_24, %c0_25, %c0_26] : memref<4x256x256xbf16, #tpu.memory_space<vmem>>, vector<1x256x256xbf16>
    %47 = vector.shape_cast %46 : vector<1x256x256xbf16> to vector<256x256xbf16>
    %cst_27 = arith.constant dense<0.000000e+00> : vector<256x256xf32>
    %48 = tpu.matmul %45, %47, %cst_27 {dimension_numbers = #tpu.dot_dimension_numbers<[1], [0], [0], [1], [0, 0, 1, 1], [], []>} : vector<256x256xbf16>, vector<256x256xbf16>, vector<256x256xf32> -> vector<256x256xf32>
    %c3 = arith.constant 3 : index
    %c0_28 = arith.constant 0 : index
    %49 = vector.load %arg5[%c3, %c0_28] : memref<5x256xf32, #tpu.memory_space<vmem>>, vector<1x256xf32>
    %50 = vector.broadcast %49 : vector<1x256xf32> to vector<256x256xf32>
    %51 = arith.addf %48, %50 : vector<256x256xf32>
    %cst_29 = arith.constant 5.000000e-01 : f32
    %52 = vector.broadcast %cst_29 : f32 to vector<256x256xf32>
    %53 = arith.mulf %52, %51 : vector<256x256xf32>
    %54 = math.tanh %53 : vector<256x256xf32>
    %cst_30 = arith.constant 5.000000e-01 : f32
    %55 = vector.broadcast %cst_30 : f32 to vector<256x256xf32>
    %56 = arith.mulf %55, %54 : vector<256x256xf32>
    %cst_31 = arith.constant 5.000000e-01 : f32
    %57 = vector.broadcast %cst_31 : f32 to vector<256x256xf32>
    %58 = arith.addf %56, %57 : vector<256x256xf32>
    %59 = arith.mulf %51, %58 : vector<256x256xf32>
    %60 = arith.truncf %59 : vector<256x256xf32> to vector<256x256xbf16>
    %c3_32 = arith.constant 3 : index
    %c0_33 = arith.constant 0 : index
    %c0_34 = arith.constant 0 : index
    %61 = vector.load %arg3[%c3_32, %c0_33, %c0_34] : memref<4x256x256xbf16, #tpu.memory_space<vmem>>, vector<1x256x256xbf16>
    %62 = vector.shape_cast %61 : vector<1x256x256xbf16> to vector<256x256xbf16>
    %cst_35 = arith.constant dense<0.000000e+00> : vector<256x256xf32>
    %63 = tpu.matmul %60, %62, %cst_35 {dimension_numbers = #tpu.dot_dimension_numbers<[1], [0], [0], [1], [0, 0, 1, 1], [], []>} : vector<256x256xbf16>, vector<256x256xbf16>, vector<256x256xf32> -> vector<256x256xf32>
    %c4 = arith.constant 4 : index
    %c0_36 = arith.constant 0 : index
    %64 = vector.load %arg5[%c4, %c0_36] : memref<5x256xf32, #tpu.memory_space<vmem>>, vector<1x256xf32>
    %65 = vector.broadcast %64 : vector<1x256xf32> to vector<256x256xf32>
    %66 = arith.addf %63, %65 : vector<256x256xf32>
    %cst_37 = arith.constant 5.000000e-01 : f32
    %67 = vector.broadcast %cst_37 : f32 to vector<256x256xf32>
    %68 = arith.mulf %67, %66 : vector<256x256xf32>
    %69 = math.tanh %68 : vector<256x256xf32>
    %cst_38 = arith.constant 5.000000e-01 : f32
    %70 = vector.broadcast %cst_38 : f32 to vector<256x256xf32>
    %71 = arith.mulf %70, %69 : vector<256x256xf32>
    %cst_39 = arith.constant 5.000000e-01 : f32
    %72 = vector.broadcast %cst_39 : f32 to vector<256x256xf32>
    %73 = arith.addf %71, %72 : vector<256x256xf32>
    %74 = arith.mulf %66, %73 : vector<256x256xf32>
    %75 = arith.truncf %74 : vector<256x256xf32> to vector<256x256xbf16>
    %c0_40 = arith.constant 0 : index
    %c0_41 = arith.constant 0 : index
    %76 = vector.load %arg4[%c0_40, %c0_41] : memref<256x128xbf16, #tpu.memory_space<vmem>>, vector<256x128xbf16>
    %cst_42 = arith.constant dense<0.000000e+00> : vector<256x128xf32>
    %77 = tpu.matmul %75, %76, %cst_42 {dimension_numbers = #tpu.dot_dimension_numbers<[1], [0], [0], [1], [0, 0, 1, 1], [], []>} : vector<256x256xbf16>, vector<256x128xbf16>, vector<256x128xf32> -> vector<256x128xf32>
    %c0_43 = arith.constant 0 : index
    %c0_44 = arith.constant 0 : index
    %78 = vector.load %arg6[%c0_43, %c0_44] : memref<1x128xf32, #tpu.memory_space<vmem>>, vector<1x128xf32>
    %79 = vector.broadcast %78 : vector<1x128xf32> to vector<256x128xf32>
    %80 = arith.addf %77, %79 : vector<256x128xf32>
    %c0_45 = arith.constant 0 : index
    %c0_46 = arith.constant 0 : index
    %81 = vector.load %arg7[%c0_45, %c0_46] : memref<256x128xf32, #tpu.memory_space<vmem>>, vector<256x128xf32>
    tpu.vector_store %arg7[%c0_45, %c0_46], %80 {strides = array<i32>} : memref<256x128xf32, #tpu.memory_space<vmem>>, vector<256x128xf32>,
    return
  }
  func.func @transform_0(%arg0: i32) -> (i32, i32) {
    %c0_i32 = arith.constant 0 : i32
    %c0_i32_0 = arith.constant 0 : i32
    return %arg0, %c0_i32 : i32, i32
  }
  func.func @transform_1(%arg0: i32) -> (i32, i32) {
    %c0_i32 = arith.constant 0 : i32
    %c0_i32_0 = arith.constant 0 : i32
    %c0_i32_1 = arith.constant 0 : i32
    return %c0_i32, %c0_i32_0 : i32, i32
  }
  func.func @transform_2(%arg0: i32) -> (i32, i32, i32) {
    %c0_i32 = arith.constant 0 : i32
    %c0_i32_0 = arith.constant 0 : i32
    %c0_i32_1 = arith.constant 0 : i32
    %c0_i32_2 = arith.constant 0 : i32
    return %c0_i32, %c0_i32_0, %c0_i32_1 : i32, i32, i32
  }
  func.func @transform_3(%arg0: i32) -> (i32, i32) {
    %c0_i32 = arith.constant 0 : i32
    %c0_i32_0 = arith.constant 0 : i32
    %c0_i32_1 = arith.constant 0 : i32
    return %c0_i32, %c0_i32_0 : i32, i32
  }
  func.func @transform_4(%arg0: i32) -> (i32, i32) {
    %c0_i32 = arith.constant 0 : i32
    %c0_i32_0 = arith.constant 0 : i32
    %c0_i32_1 = arith.constant 0 : i32
    return %c0_i32, %c0_i32_0 : i32, i32
  }
  func.func @transform_5(%arg0: i32) -> (i32, i32) {
    %c0_i32 = arith.constant 0 : i32
    %c0_i32_0 = arith.constant 0 : i32
    %c0_i32_1 = arith.constant 0 : i32
    return %c0_i32, %c0_i32_0 : i32, i32
  }
  func.func @transform_6(%arg0: i32) -> (i32, i32) {
    %c0_i32 = arith.constant 0 : i32
    %c0_i32_0 = arith.constant 0 : i32
    return %arg0, %c0_i32 : i32, i32
  }
}

</mosaic_0001>

<llo_original>
// kernel: tpu_custom_call.1
$region0: #{tpu_custom_call.1}
  #allocation0 [shape = 'u32[]', space=smem, size = 0x4, offset = 0x4, fixed_abs, tag = 'smem constant byte address 0x4 - core index']
  #allocation1 [shape = 'u32[72,128]{1,0:T(1,128)}', space=vmem, size = 0x9000, scoped, tag = 'internal scratch']
  %s0 = inlined_call_operand.vmem [shape: f32[512,11], index: 0, kind: input, shape index: {}]
  %s1 = inlined_call_operand.vmem [shape: bf16[11,256], index: 1, kind: input, shape index: {}]
  %s2 = inlined_call_operand.hbm [shape: bf16[4,256,256], index: 2, kind: input, shape index: {}]
  %s3 = inlined_call_operand.vmem [shape: bf16[256,128], index: 3, kind: input, shape index: {}]
  %s4 = inlined_call_operand.vmem [shape: f32[5,256], index: 4, kind: input, shape index: {}]
  %s5 = inlined_call_operand.vmem [shape: f32[1,128], index: 5, kind: input, shape index: {}]
  %s6 = inlined_call_operand.hbm [shape: f32[512,128], index: 6, kind: output, shape index: {}]
  %s7 = sld [smem:[#allocation0]]
  $region61: #{tpu_custom_call.1} parent=0
    _
  %s9 = ssub.s32 1, %s7
  %s10 = scalar_select 0, %s9, %s7
  $region1: #{tpu_custom_call.1} parent=0
    #allocation2 [shape = 'u8[524288]{0}', space=vmem, size = 0x80000, scoped, tag = 'input window, operand 2, single buffered']
    #allocation3 [shape = 's32[2]{0}', space=sflag, size = 0x8, scoped, tag = 'scoped memory for tpu_custom_call.1']
    #allocation4 [shape = 's32[2]{0}', space=sflag, size = 0x8, scoped, tag = 'scoped memory for tpu_custom_call.1']
    #allocation5 [shape = 'u8[262144]{0}', space=vmem, size = 0x40000, scoped, tag = 'output window, operand 0']
    %11 = vsyncpa [#allocation3], 0
    %12 = vsyncpa [#allocation4], 0
    %s13 = scalar_lea.sflag [#allocation4], 1
    %14 = vsyncpa %s13, 0
    loop: start=0, step=1, limit=4
    $region2: #{tpu_custom_call.1} parent=1 // loop_pre_header
      _
    $region3: #{tpu_custom_call.1} parent=1 // loop_header
      %s16 = sphi 0, %s20
      %p17 = scmp.ge.s32.totalorder %s16, 4
      %s26 = sphi 0, %s28
      %s29 = sphi 0, %s26
      %s30 = sphi 0, %s29
      %s46 = sphi 0, %s30
      %s50 = sphi 0, %s50
      %s52 = sphi 0, %s50
      %s53 = sphi 0, %s52
      %s67 = sphi 0, %s53
      %s71 = sphi 0, %s71
      %s73 = sphi 0, %s71
      %s74 = sphi 0, %s73
      %s88 = sphi 0, %s74
      %s92 = sphi 0, %s92
      %s94 = sphi 0, %s92
      %s95 = sphi 0, %s94
      %s109 = sphi 0, %s95
      %s113 = sphi 0, %s113
      %s115 = sphi 0, %s113
      %s116 = sphi 0, %s115
      %s130 = sphi 0, %s116
      %s134 = sphi 0, %s134
      %s136 = sphi 0, %s134
      %s137 = sphi 0, %s136
      %s151 = sphi 0, %s137
      %s157 = sphi 0, %s159
      %s160 = sphi 0, %s157
      %s161 = sphi 0, %s160
      %s177 = sphi 0, %s161
    $region4: #{tpu_custom_call.1} parent=1 // loop_header_branch
      %19 = sbr.rel (%p17) target = $region8
    $region5: #{tpu_custom_call.1} parent=1 // loop_body
      %s21 = ssub.s32 %s16, 1
      %s22 = ssub.s32 %s16, 2
      %s23 = sadd.s32 %s16, 1
      %s24 = ssub.s32 %s16, %s23
      %p25 = scmp.eq.s32.totalorder %s24, 0
      %s27 = sadd.s32 %s26, 1
      %s28 = scalar_select %p25, %s26, %s27
      %p31 = pneg %p25
      %p32 = scmp.eq.s32.totalorder %s16, 1
      %p33 = por %p31, %p32
      %p34 = scmp.ne.s32.totalorder %s26, %s29
      %p35 = scmp.eq.s32.totalorder %s16, 0
      %p36 = por %p34, %p35
      %p37 = scmp.ne.s32.totalorder %s26, %s29
      %p38 = scmp.eq.s32.totalorder %s21, 1
      %p39 = por %p37, %p38
      %p40 = scmp.ne.s32.totalorder %s29, %s30
      %p41 = scmp.eq.s32.totalorder %s21, 0
      %p42 = por %p40, %p41
      %p43 = scmp.ne.s32.totalorder %s29, %s30
      %p44 = scmp.eq.s32.totalorder %s22, 1
      %p45 = por %p43, %p44
      %p47 = scmp.ne.s32.totalorder %s30, %s46
      %p48 = scmp.eq.s32.totalorder %s22, 0
      %p49 = por %p47, %p48
      %s51 = sadd.s32 %s50, 1
      %p54 = scmp.eq.s32.totalorder %s16, 1
      %p55 = scmp.ne.s32.totalorder %s50, %s52
      %p56 = scmp.eq.s32.totalorder %s16, 0
      %p57 = por %p55, %p56
      %p58 = scmp.ne.s32.totalorder %s50, %s52
      %p59 = scmp.eq.s32.totalorder %s21, 1
      %p60 = por %p58, %p59
      %p61 = scmp.ne.s32.totalorder %s52, %s53
      %p62 = scmp.eq.s32.totalorder %s21, 0
      %p63 = por %p61, %p62
      %p64 = scmp.ne.s32.totalorder %s52, %s53
      %p65 = scmp.eq.s32.totalorder %s22, 1
      %p66 = por %p64, %p65
      %p68 = scmp.ne.s32.totalorder %s53, %s67
      %p69 = scmp.eq.s32.totalorder %s22, 0
      %p70 = por %p68, %p69
      %s72 = sadd.s32 %s71, 1
      %p75 = scmp.eq.s32.totalorder %s16, 1
      %p76 = scmp.ne.s32.totalorder %s71, %s73
      %p77 = scmp.eq.s32.totalorder %s16, 0
      %p78 = por %p76, %p77
      %p79 = scmp.ne.s32.totalorder %s71, %s73
      %p80 = scmp.eq.s32.totalorder %s21, 1
      %p81 = por %p79, %p80
      %p82 = scmp.ne.s32.totalorder %s73, %s74
      %p83 = scmp.eq.s32.totalorder %s21, 0
      %p84 = por %p82, %p83
      %p85 = scmp.ne.s32.totalorder %s73, %s74
      %p86 = scmp.eq.s32.totalorder %s22, 1
      %p87 = por %p85, %p86
      %p89 = scmp.ne.s32.totalorder %s74, %s88
      %p90 = scmp.eq.s32.totalorder %s22, 0
      %p91 = por %p89, %p90
      %s93 = sadd.s32 %s92, 1
      %p96 = scmp.eq.s32.totalorder %s16, 1
      %p97 = scmp.ne.s32.totalorder %s92, %s94
      %p98 = scmp.eq.s32.totalorder %s16, 0
      %p99 = por %p97, %p98
      %p100 = scmp.ne.s32.totalorder %s92, %s94
      %p101 = scmp.eq.s32.totalorder %s21, 1
      %p102 = por %p100, %p101
      %p103 = scmp.ne.s32.totalorder %s94, %s95
      %p104 = scmp.eq.s32.totalorder %s21, 0
      %p105 = por %p103, %p104
      %p106 = scmp.ne.s32.totalorder %s94, %s95
      %p107 = scmp.eq.s32.totalorder %s22, 1
      %p108 = por %p106, %p107
      %p110 = scmp.ne.s32.totalorder %s95, %s109
      %p111 = scmp.eq.s32.totalorder %s22, 0
      %p112 = por %p110, %p111
      %s114 = sadd.s32 %s113, 1
      %p117 = scmp.eq.s32.totalorder %s16, 1
      %p118 = scmp.ne.s32.totalorder %s113, %s115
      %p119 = scmp.eq.s32.totalorder %s16, 0
      %p120 = por %p118, %p119
      %p121 = scmp.ne.s32.totalorder %s113, %s115
      %p122 = scmp.eq.s32.totalorder %s21, 1
      %p123 = por %p121, %p122
      %p124 = scmp.ne.s32.totalorder %s115, %s116
      %p125 = scmp.eq.s32.totalorder %s21, 0
      %p126 = por %p124, %p125
      %p127 = scmp.ne.s32.totalorder %s115, %s116
      %p128 = scmp.eq.s32.totalorder %s22, 1
      %p129 = por %p127, %p128
      %p131 = scmp.ne.s32.totalorder %s116, %s130
      %p132 = scmp.eq.s32.totalorder %s22, 0
      %p133 = por %p131, %p132
      %s135 = sadd.s32 %s134, 1
      %p138 = scmp.eq.s32.totalorder %s16, 1
      %p139 = scmp.ne.s32.totalorder %s134, %s136
      %p140 = scmp.eq.s32.totalorder %s16, 0
      %p141 = por %p139, %p140
      %p142 = scmp.ne.s32.totalorder %s134, %s136
      %p143 = scmp.eq.s32.totalorder %s21, 1
      %p144 = por %p142, %p143
      %p145 = scmp.ne.s32.totalorder %s136, %s137
      %p146 = scmp.eq.s32.totalorder %s21, 0
      %p147 = por %p145, %p146
      %p148 = scmp.ne.s32.totalorder %s136, %s137
      %p149 = scmp.eq.s32.totalorder %s22, 1
      %p150 = por %p148, %p149
      %p152 = scmp.ne.s32.totalorder %s137, %s151
      %p153 = scmp.eq.s32.totalorder %s22, 0
      %p154 = por %p152, %p153
      %s155 = ssub.s32 %s16, %s23
      %p156 = scmp.eq.s32.totalorder %s155, 0
      %s158 = sadd.s32 %s157, 1
      %s159 = scalar_select %p156, %s157, %s158
      %p162 = pneg %p156
      %p163 = scmp.eq.s32.totalorder %s16, 1
      %p164 = por %p162, %p163
      %p165 = scmp.ne.s32.totalorder %s157, %s160
      %p166 = scmp.eq.s32.totalorder %s16, 0
      %p167 = por %p165, %p166
      %p168 = scmp.ne.s32.totalorder %s157, %s160
      %p169 = scmp.eq.s32.totalorder %s21, 1
      %p170 = por %p168, %p169
      %p171 = scmp.ne.s32.totalorder %s160, %s161
      %p172 = scmp.eq.s32.totalorder %s21, 0
      %p173 = por %p171, %p172
      %p174 = scmp.ne.s32.totalorder %s160, %s161
      %p175 = scmp.eq.s32.totalorder %s22, 1
      %p176 = por %p174, %p175
      %p178 = scmp.ne.s32.totalorder %s161, %s177
      %p179 = scmp.eq.s32.totalorder %s22, 0
      %p180 = por %p178, %p179
      %p181 = scmp.le.s32.totalorder 1, %s16
      %p182 = scmp.lt.s32.totalorder %s16, 3
      %p183 = pnand %p181, %p182
      %p184 = pneg %p183
      // Predicated region
      $region9: #{tpu_custom_call.1} parent=5 // pred_check
        _
      $region10: #{tpu_custom_call.1} parent=5 // pred_check_branch
        %186 = sbr.rel (%p183) target = $region12
      $region11: #{tpu_custom_call.1} parent=5 // pred_region
        %s187 = ssub.s32 %s16, 1
        // Predicated region
        $region13: #{tpu_custom_call.1} parent=11 // pred_check
          %p188 = pneg %p63
        $region14: #{tpu_custom_call.1} parent=11 // pred_check_branch
          %190 = sbr.rel (%p188) target = $region16
        $region15: #{tpu_custom_call.1} parent=11 // pred_region
          _
        $region16: #{tpu_custom_call.1} parent=11 // pred_fallthru
          _
        // Predicated region
        $region17: #{tpu_custom_call.1} parent=11 // pred_check
          %p191 = pneg %p84
        $region18: #{tpu_custom_call.1} parent=11 // pred_check_branch
          %193 = sbr.rel (%p191) target = $region20
        $region19: #{tpu_custom_call.1} parent=11 // pred_region
          %195 = vsyncadd [#allocation3], 0
          %s196 = sshll.u32 %s2, 4
          %s197 = int_to_ptr.hbm [resolvable:$true] %s196
          %s198 = sshll.u32 [#allocation2], 4
          %s199 = int_to_ptr.vmem [resolvable:$true] %s198
          %204 = dma.hbm_to_vmem [thread:$0]  %s197, 16384, %s199, [#allocation3], 128, 128, 8
        $region20: #{tpu_custom_call.1} parent=11 // pred_fallthru
          _
        // Predicated region
        $region21: #{tpu_custom_call.1} parent=11 // pred_check
          %p205 = pneg %p105
        $region22: #{tpu_custom_call.1} parent=11 // pred_check_branch
          %207 = sbr.rel (%p205) target = $region24
        $region23: #{tpu_custom_call.1} parent=11 // pred_region
          _
        $region24: #{tpu_custom_call.1} parent=11 // pred_fallthru
          _
        // Predicated region
        $region25: #{tpu_custom_call.1} parent=11 // pred_check
          %p208 = pneg %p126
        $region26: #{tpu_custom_call.1} parent=11 // pred_check_branch
          %210 = sbr.rel (%p208) target = $region28
        $region27: #{tpu_custom_call.1} parent=11 // pred_region
          _
        $region28: #{tpu_custom_call.1} parent=11 // pred_fallthru
          _
        // Predicated region
        $region29: #{tpu_custom_call.1} parent=11 // pred_check
          %p211 = pneg %p147
        $region30: #{tpu_custom_call.1} parent=11 // pred_check_branch
          %213 = sbr.rel (%p211) target = $region32
        $region31: #{tpu_custom_call.1} parent=11 // pred_region
          _
        $region32: #{tpu_custom_call.1} parent=11 // pred_fallthru
          _
      $region12: #{tpu_custom_call.1} parent=5 // pred_fallthru
        _
      %p214 = scmp.lt.s32.totalorder %s16, 2
      // Predicated region
      $region33: #{tpu_custom_call.1} parent=5 // pred_check
        %p215 = pneg %p214
      $region34: #{tpu_custom_call.1} parent=5 // pred_check_branch
        %217 = sbr.rel (%p215) target = $region36
      $region35: #{tpu_custom_call.1} parent=5 // pred_region
        // Predicated region
        $region37: #{tpu_custom_call.1} parent=35 // pred_check
          %p218 = pneg %p36
        $region38: #{tpu_custom_call.1} parent=35 // pred_check_branch
          %220 = sbr.rel (%p218) target = $region40
        $region39: #{tpu_custom_call.1} parent=35 // pred_region
          %s221 = smul.u32 32, %s16
          %p222 = scmp.lt.s32.totalorder %s221, 63
          %s223 = scalar_select %p222, %s221, 63
          %s224 = smul.addr %s223, 8
          %s225 = scalar_lea.vmem %s0, %s224
          %s226 = smul.u32 32, %s16
        $region40: #{tpu_custom_call.1} parent=35 // pred_fallthru
          _
      $region36: #{tpu_custom_call.1} parent=5 // pred_fallthru
        _
      %p227 = scmp.le.s32.totalorder 1, %s16
      %p228 = scmp.lt.s32.totalorder %s16, 3
      %p229 = pnand %p227, %p228
      %p230 = pneg %p229
      // Predicated region
      $region41: #{tpu_custom_call.1} parent=5 // pred_check
        _
      $region42: #{tpu_custom_call.1} parent=5 // pred_check_branch
        %232 = sbr.rel (%p229) target = $region44
      $region43: #{tpu_custom_call.1} parent=5 // pred_region
        %s233 = ssub.s32 %s16, 1
        // Predicated region
        $region45: #{tpu_custom_call.1} parent=43 // pred_check
          %p234 = pneg %p84
        $region46: #{tpu_custom_call.1} parent=43 // pred_check_branch
          %236 = sbr.rel (%p234) target = $region48
        $region47: #{tpu_custom_call.1} parent=43 // pred_region
          %238 = dma.done [#allocation3], 16384
        $region48: #{tpu_custom_call.1} parent=43 // pred_fallthru
          _
        %s239 = smul.u32 32, %s21
        %p240 = scmp.lt.s32.totalorder %s239, 63
        %s241 = scalar_select %p240, %s239, 63
        %s242 = smul.addr %s241, 8
        %s243 = scalar_lea.vmem %s0, %s242
        %p244 = pneg %p42
        %p245 = pneg %p39
        %p246 = pneg %p63
        %p247 = pneg %p60
        %p248 = pneg %p84
        %p249 = pneg %p81
        %p250 = pneg %p105
        %p251 = pneg %p102
        %p252 = pneg %p126
        %p253 = pneg %p123
        %p254 = pneg %p147
        %p255 = pneg %p144
        %p256 = pneg %p173
        %p257 = pneg %p170
        %s258 = sand.u32 %s160, 1
        %s259 = scalar_lea.sflag [#allocation4], %s258
        %s260 = sand.u32 %s160, 1
        %s261 = smul.addr %s260, 256
        %s262 = scalar_lea.vmem [#allocation5], %s261
        %s263 = smul.u32 32, %s21
        %p264 = scmp.lt.s32.totalorder %s263, 63
        %s265 = scalar_select %p264, %s263, 63
        %s266 = smul.addr %s265, 8
        %s267 = scalar_lea.vmem %s0, %s266
        %s268 = smul.u32 32, %s21
        %s269 = smul.u32 32, %s21
        %v271 = vld [vmem:[%s267] sm:$0xff]
        %v272 = vld [vmem:[%s267 + $0x8] sm:$0xff]
        %v273 = vld [vmem:[%s267 + $0x10] sm:$0xff]
        %v274 = vld [vmem:[%s267 + $0x18] sm:$0xff]
        %v275 = vld [vmem:[%s267 + $0x20] sm:$0xff]
        %v276 = vld [vmem:[%s267 + $0x28] sm:$0xff]
        %v277 = vld [vmem:[%s267 + $0x30] sm:$0xff]
        %v278 = vld [vmem:[%s267 + $0x38] sm:$0xff]
        %v279 = vld [vmem:[%s267 + $0x40] sm:$0xff]
        %v280 = vld [vmem:[%s267 + $0x48] sm:$0xff]
        %v281 = vld [vmem:[%s267 + $0x50] sm:$0xff]
        %v282 = vld [vmem:[%s267 + $0x58] sm:$0xff]
        %v283 = vld [vmem:[%s267 + $0x60] sm:$0xff]
        %v284 = vld [vmem:[%s267 + $0x68] sm:$0xff]
        %v285 = vld [vmem:[%s267 + $0x70] sm:$0xff]
        %v286 = vld [vmem:[%s267 + $0x78] sm:$0xff]
        %v287 = vld [vmem:[%s267 + $0x80] sm:$0xff]
        %v288 = vld [vmem:[%s267 + $0x88] sm:$0xff]
        %v289 = vld [vmem:[%s267 + $0x90] sm:$0xff]
        %v290 = vld [vmem:[%s267 + $0x98] sm:$0xff]
        %v291 = vld [vmem:[%s267 + $0xa0] sm:$0xff]
        %v292 = vld [vmem:[%s267 + $0xa8] sm:$0xff]
        %v293 = vld [vmem:[%s267 + $0xb0] sm:$0xff]
        %v294 = vld [vmem:[%s267 + $0xb8] sm:$0xff]
        %v295 = vld [vmem:[%s267 + $0xc0] sm:$0xff]
        %v296 = vld [vmem:[%s267 + $0xc8] sm:$0xff]
        %v297 = vld [vmem:[%s267 + $0xd0] sm:$0xff]
        %v298 = vld [vmem:[%s267 + $0xd8] sm:$0xff]
        %v299 = vld [vmem:[%s267 + $0xe0] sm:$0xff]
        %v300 = vld [vmem:[%s267 + $0xe8] sm:$0xff]
        %v301 = vld [vmem:[%s267 + $0xf0] sm:$0xff]
        %v302 = vld [vmem:[%s267 + $0xf8] sm:$0xff]
        %v303 = vpack.c.bf16 %v272, %v271
        %v304 = vpack.c.bf16 %v274, %v273
        %v305 = vpack.c.bf16 %v276, %v275
        %v306 = vpack.c.bf16 %v278, %v277
        %v307 = vpack.c.bf16 %v280, %v279
        %v308 = vpack.c.bf16 %v282, %v281
        %v309 = vpack.c.bf16 %v284, %v283
        %v310 = vpack.c.bf16 %v286, %v285
        %v311 = vpack.c.bf16 %v288, %v287
        %v312 = vpack.c.bf16 %v290, %v289
        %v313 = vpack.c.bf16 %v292, %v291
        %v314 = vpack.c.bf16 %v294, %v293
        %v315 = vpack.c.bf16 %v296, %v295
        %v316 = vpack.c.bf16 %v298, %v297
        %v317 = vpack.c.bf16 %v300, %v299
        %v318 = vpack.c.bf16 %v302, %v301
        %v319 = vld [vmem:[%s1] sm:$0xff]
        %v320 = vld [vmem:[%s1 + $0x8] sm:$0x33]
        %v321 = vld [vmem:[%s4] ss:$8 sm:$0x3]
        %v323 = vperm.slane %v321, 0
        %v324 = vperm.slane %v321, 1
        %v329 = vunpack.c.l.b16 %v319
        %v330 = vunpack.c.h.b16 %v319
        %v331 = vunpack.c.l.b16 %v320
        %v332 = vunpack.c.h.b16 %v320
        %v333 = vpack.c.b16 %v331, %v329
        %v334 = vpack.c.b16 %v332, %v330
        %vm335 = vcmask 89088
        %v337 = vsel %vm335, %v303, 0
        %v340 = vsel %vm335, %v304, 0
        %v343 = vsel %vm335, %v305, 0
        %v346 = vsel %vm335, %v306, 0
        %v349 = vsel %vm335, %v307, 0
        %v352 = vsel %vm335, %v308, 0
        %v355 = vsel %vm335, %v309, 0
        %v358 = vsel %vm335, %v310, 0
        %v361 = vsel %vm335, %v311, 0
        %v364 = vsel %vm335, %v312, 0
        %v367 = vsel %vm335, %v313, 0
        %v370 = vsel %vm335, %v314, 0
        %v373 = vsel %vm335, %v315, 0
        %v376 = vsel %vm335, %v316, 0
        %v379 = vsel %vm335, %v317, 0
        %v382 = vsel %vm335, %v318, 0
        %vm384 = vcmask 1044480
        %vm385 = vcmask 1045504
        %v386 = vsel %vm384, 4294967295, 65535
        %v387 = vsel %vm385, %v386, 0
        %v389 = vand.u32 %v333, %v387
        %v392 = vand.u32 %v334, %v387
        %394 = vmatpush.bf16.msra.mxu0 0
        %395 = vmatpush.bf16.msra.mxu0 0
        %396 = vmatpush.bf16.msra.mxu0 0
        %397 = vmatpush.bf16.msra.mxu0 0
        %398 = vmatpush.bf16.msra.mxu0 0
        %399 = vmatpush.bf16.msra.mxu0 0
        %400 = vmatpush.bf16.msra.mxu0 0
        %401 = vmatpush.bf16.msra.mxu0 %v389
        %402 = vmatmul.bf16.gmra.mxu0 %v337
        %v403 = vpop.f32.mrf.mxu0
        %v404 = vadd.f32 %v323, %v403
        %v405 = vpop.f32.mrf.mxu0
        %v406 = vadd.f32 %v323, %v405
        %407 = vmatmul.bf16.gmra.mxu0 %v340
        %v408 = vpop.f32.mrf.mxu0
        %v409 = vadd.f32 %v323, %v408
        %v410 = vpop.f32.mrf.mxu0
        %v411 = vadd.f32 %v323, %v410
        %412 = vmatmul.bf16.gmra.mxu0 %v343
        %v413 = vpop.f32.mrf.mxu0
        %v414 = vadd.f32 %v323, %v413
        %v415 = vpop.f32.mrf.mxu0
        %v416 = vadd.f32 %v323, %v415
        %417 = vmatmul.bf16.gmra.mxu0 %v346
        %v418 = vpop.f32.mrf.mxu0
        %v419 = vadd.f32 %v323, %v418
        %v420 = vpop.f32.mrf.mxu0
        %v421 = vadd.f32 %v323, %v420
        %422 = vmatmul.bf16.gmra.mxu0 %v349
        %v423 = vpop.f32.mrf.mxu0
        %v424 = vadd.f32 %v323, %v423
        %v425 = vpop.f32.mrf.mxu0
        %v426 = vadd.f32 %v323, %v425
        %427 = vmatmul.bf16.gmra.mxu0 %v352
        %v428 = vpop.f32.mrf.mxu0
        %v429 = vadd.f32 %v323, %v428
        %v430 = vpop.f32.mrf.mxu0
        %v431 = vadd.f32 %v323, %v430
        %432 = vmatmul.bf16.gmra.mxu0 %v355
        %v433 = vpop.f32.mrf.mxu0
        %v434 = vadd.f32 %v323, %v433
        %v435 = vpop.f32.mrf.mxu0
        %v436 = vadd.f32 %v323, %v435
        %437 = vmatmul.bf16.gmra.mxu0 %v358
        %v438 = vpop.f32.mrf.mxu0
        %v439 = vadd.f32 %v323, %v438
        %v440 = vpop.f32.mrf.mxu0
        %v441 = vadd.f32 %v323, %v440
        %442 = vmatmul.bf16.gmra.mxu0 %v361
        %v443 = vpop.f32.mrf.mxu0
        %v444 = vadd.f32 %v323, %v443
        %v445 = vpop.f32.mrf.mxu0
        %v446 = vadd.f32 %v323, %v445
        %447 = vmatmul.bf16.gmra.mxu0 %v364
        %v448 = vpop.f32.mrf.mxu0
        %v449 = vadd.f32 %v323, %v448
        %v450 = vpop.f32.mrf.mxu0
        %v451 = vadd.f32 %v323, %v450
        %452 = vmatmul.bf16.gmra.mxu0 %v367
        %v453 = vpop.f32.mrf.mxu0
        %v454 = vadd.f32 %v323, %v453
        %v455 = vpop.f32.mrf.mxu0
        %v456 = vadd.f32 %v323, %v455
        %457 = vmatmul.bf16.gmra.mxu0 %v370
        %v458 = vpop.f32.mrf.mxu0
        %v459 = vadd.f32 %v323, %v458
        %v460 = vpop.f32.mrf.mxu0
        %v461 = vadd.f32 %v323, %v460
        %462 = vmatmul.bf16.gmra.mxu0 %v373
        %v463 = vpop.f32.mrf.mxu0
        %v464 = vadd.f32 %v323, %v463
        %v465 = vpop.f32.mrf.mxu0
        %v466 = vadd.f32 %v323, %v465
        %467 = vmatmul.bf16.gmra.mxu0 %v376
        %v468 = vpop.f32.mrf.mxu0
        %v469 = vadd.f32 %v323, %v468
        %v470 = vpop.f32.mrf.mxu0
        %v471 = vadd.f32 %v323, %v470
        %472 = vmatmul.bf16.gmra.mxu0 %v379
        %v473 = vpop.f32.mrf.mxu0
        %v474 = vadd.f32 %v323, %v473
        %v475 = vpop.f32.mrf.mxu0
        %v476 = vadd.f32 %v323, %v475
        %477 = vmatmul.bf16.gmra.mxu0 %v382
        %v478 = vpop.f32.mrf.mxu0
        %v479 = vadd.f32 %v323, %v478
        %v480 = vpop.f32.mrf.mxu0
        %v481 = vadd.f32 %v323, %v480
        %482 = vdwg.mxu0
        %483 = vmatpush.bf16.msra.mxu0 0
        %484 = vmatpush.bf16.msra.mxu0 0
        %485 = vmatpush.bf16.msra.mxu0 0
        %486 = vmatpush.bf16.msra.mxu0 0
        %487 = vmatpush.bf16.msra.mxu0 0
        %488 = vmatpush.bf16.msra.mxu0 0
        %489 = vmatpush.bf16.msra.mxu0 0
        %490 = vmatpush.bf16.msra.mxu0 %v392
        %491 = vmatmul.bf16.gmra.mxu0 %v337
        %v492 = vpop.f32.mrf.mxu0
        %v493 = vadd.f32 %v324, %v492
        %v494 = vpop.f32.mrf.mxu0
        %v495 = vadd.f32 %v324, %v494
        %496 = vmatmul.bf16.gmra.mxu0 %v340
        %v497 = vpop.f32.mrf.mxu0
        %v498 = vadd.f32 %v324, %v497
        %v499 = vpop.f32.mrf.mxu0
        %v500 = vadd.f32 %v324, %v499
        %501 = vmatmul.bf16.gmra.mxu0 %v343
        %v502 = vpop.f32.mrf.mxu0
        %v503 = vadd.f32 %v324, %v502
        %v504 = vpop.f32.mrf.mxu0
        %v505 = vadd.f32 %v324, %v504
        %506 = vmatmul.bf16.gmra.mxu0 %v346
        %v507 = vpop.f32.mrf.mxu0
        %v508 = vadd.f32 %v324, %v507
        %v509 = vpop.f32.mrf.mxu0
        %v510 = vadd.f32 %v324, %v509
        %511 = vmatmul.bf16.gmra.mxu0 %v349
        %v512 = vpop.f32.mrf.mxu0
        %v513 = vadd.f32 %v324, %v512
        %v514 = vpop.f32.mrf.mxu0
        %v515 = vadd.f32 %v324, %v514
        %516 = vmatmul.bf16.gmra.mxu0 %v352
        %v517 = vpop.f32.mrf.mxu0
        %v518 = vadd.f32 %v324, %v517
        %v519 = vpop.f32.mrf.mxu0
        %v520 = vadd.f32 %v324, %v519
        %521 = vmatmul.bf16.gmra.mxu0 %v355
        %v522 = vpop.f32.mrf.mxu0
        %v523 = vadd.f32 %v324, %v522
        %v524 = vpop.f32.mrf.mxu0
        %v525 = vadd.f32 %v324, %v524
        %526 = vmatmul.bf16.gmra.mxu0 %v358
        %v527 = vpop.f32.mrf.mxu0
        %v528 = vadd.f32 %v324, %v527
        %v529 = vpop.f32.mrf.mxu0
        %v530 = vadd.f32 %v324, %v529
        %531 = vmatmul.bf16.gmra.mxu0 %v361
        %v532 = vpop.f32.mrf.mxu0
        %v533 = vadd.f32 %v324, %v532
        %v534 = vpop.f32.mrf.mxu0
        %v535 = vadd.f32 %v324, %v534
        %536 = vmatmul.bf16.gmra.mxu0 %v364
        %v537 = vpop.f32.mrf.mxu0
        %v538 = vadd.f32 %v324, %v537
        %v539 = vpop.f32.mrf.mxu0
        %v540 = vadd.f32 %v324, %v539
        %541 = vmatmul.bf16.gmra.mxu0 %v367
        %v542 = vpop.f32.mrf.mxu0
        %v543 = vadd.f32 %v324, %v542
        %v544 = vpop.f32.mrf.mxu0
        %v545 = vadd.f32 %v324, %v544
        %546 = vmatmul.bf16.gmra.mxu0 %v370
        %v547 = vpop.f32.mrf.mxu0
        %v548 = vadd.f32 %v324, %v547
        %v549 = vpop.f32.mrf.mxu0
        %v550 = vadd.f32 %v324, %v549
        %551 = vmatmul.bf16.gmra.mxu0 %v373
        %v552 = vpop.f32.mrf.mxu0
        %v553 = vadd.f32 %v324, %v552
        %v554 = vpop.f32.mrf.mxu0
        %v555 = vadd.f32 %v324, %v554
        %556 = vmatmul.bf16.gmra.mxu0 %v376
        %v557 = vpop.f32.mrf.mxu0
        %v558 = vadd.f32 %v324, %v557
        %v559 = vpop.f32.mrf.mxu0
        %v560 = vadd.f32 %v324, %v559
        %561 = vmatmul.bf16.gmra.mxu0 %v379
        %v562 = vpop.f32.mrf.mxu0
        %v563 = vadd.f32 %v324, %v562
        %v564 = vpop.f32.mrf.mxu0
        %v565 = vadd.f32 %v324, %v564
        %566 = vmatmul.bf16.gmra.mxu0 %v382
        %v567 = vpop.f32.mrf.mxu0
        %v568 = vadd.f32 %v324, %v567
        %v569 = vpop.f32.mrf.mxu0
        %v570 = vadd.f32 %v324, %v569
        %571 = vdwg.mxu0
        %v572 = vmul.f32 %v404, 0.5
        %v573 = vmul.f32 %v493, 0.5
        %v574 = vmul.f32 %v406, 0.5
        %v575 = vmul.f32 %v495, 0.5
        %v576 = vmul.f32 %v409, 0.5
        %v577 = vmul.f32 %v498, 0.5
        %v578 = vmul.f32 %v411, 0.5
        %v579 = vmul.f32 %v500, 0.5
        %v580 = vmul.f32 %v414, 0.5
        %v581 = vmul.f32 %v503, 0.5
        %v582 = vmul.f32 %v416, 0.5
        %v583 = vmul.f32 %v505, 0.5
        %v584 = vmul.f32 %v419, 0.5
        %v585 = vmul.f32 %v508, 0.5
        %v586 = vmul.f32 %v421, 0.5
        %v587 = vmul.f32 %v510, 0.5
        %v588 = vmul.f32 %v424, 0.5
        %v589 = vmul.f32 %v513, 0.5
        %v590 = vmul.f32 %v426, 0.5
        %v591 = vmul.f32 %v515, 0.5
        %v592 = vmul.f32 %v429, 0.5
        %v593 = vmul.f32 %v518, 0.5
        %v594 = vmul.f32 %v431, 0.5
        %v595 = vmul.f32 %v520, 0.5
        %v596 = vmul.f32 %v434, 0.5
        %v597 = vmul.f32 %v523, 0.5
        %v598 = vmul.f32 %v436, 0.5
        %v599 = vmul.f32 %v525, 0.5
        %v600 = vmul.f32 %v439, 0.5
        %v601 = vmul.f32 %v528, 0.5
        %v602 = vmul.f32 %v441, 0.5
        %v603 = vmul.f32 %v530, 0.5
        %v604 = vmul.f32 %v444, 0.5
        %v605 = vmul.f32 %v533, 0.5
        %v606 = vmul.f32 %v446, 0.5
        %v607 = vmul.f32 %v535, 0.5
        %v608 = vmul.f32 %v449, 0.5
        %v609 = vmul.f32 %v538, 0.5
        %v610 = vmul.f32 %v451, 0.5
        %v611 = vmul.f32 %v540, 0.5
        %v612 = vmul.f32 %v454, 0.5
        %v613 = vmul.f32 %v543, 0.5
        %v614 = vmul.f32 %v456, 0.5
        %v615 = vmul.f32 %v545, 0.5
        %v616 = vmul.f32 %v459, 0.5
        %v617 = vmul.f32 %v548, 0.5
        %v618 = vmul.f32 %v461, 0.5
        %v619 = vmul.f32 %v550, 0.5
        %v620 = vmul.f32 %v464, 0.5
        %v621 = vmul.f32 %v553, 0.5
        %v622 = vmul.f32 %v466, 0.5
        %v623 = vmul.f32 %v555, 0.5
        %v624 = vmul.f32 %v469, 0.5
        %v625 = vmul.f32 %v558, 0.5
        %v626 = vmul.f32 %v471, 0.5
        %v627 = vmul.f32 %v560, 0.5
        %v628 = vmul.f32 %v474, 0.5
        %v629 = vmul.f32 %v563, 0.5
        %v630 = vmul.f32 %v476, 0.5
        %v631 = vmul.f32 %v565, 0.5
        %v632 = vmul.f32 %v479, 0.5
        %v633 = vmul.f32 %v568, 0.5
        %v634 = vmul.f32 %v481, 0.5
        %v635 = vmul.f32 %v570, 0.5
        %v636 = vtanh.pop %v572
        %v637 = vtanh.pop %v573
        %v638 = vtanh.pop %v574
        %v639 = vtanh.pop %v575
        %v640 = vtanh.pop %v576
        %v641 = vtanh.pop %v577
        %v642 = vtanh.pop %v578
        %v643 = vtanh.pop %v579
        %v644 = vtanh.pop %v580
        %v645 = vtanh.pop %v581
        %v646 = vtanh.pop %v582
        %v647 = vtanh.pop %v583
        %v648 = vtanh.pop %v584
        %v649 = vtanh.pop %v585
        %v650 = vtanh.pop %v586
        %v651 = vtanh.pop %v587
        %v652 = vtanh.pop %v588
        %v653 = vtanh.pop %v589
        %v654 = vtanh.pop %v590
        %v655 = vtanh.pop %v591
        %v656 = vtanh.pop %v592
        %v657 = vtanh.pop %v593
        %v658 = vtanh.pop %v594
        %v659 = vtanh.pop %v595
        %v660 = vtanh.pop %v596
        %v661 = vtanh.pop %v597
        %v662 = vtanh.pop %v598
        %v663 = vtanh.pop %v599
        %v664 = vtanh.pop %v600
        %v665 = vtanh.pop %v601
        %v666 = vtanh.pop %v602
        %v667 = vtanh.pop %v603
        %v668 = vtanh.pop %v604
        %v669 = vtanh.pop %v605
        %v670 = vtanh.pop %v606
        %v671 = vtanh.pop %v607
        %v672 = vtanh.pop %v608
        %v673 = vtanh.pop %v609
        %v674 = vtanh.pop %v610
        %v675 = vtanh.pop %v611
        %v676 = vtanh.pop %v612
        %v677 = vtanh.pop %v613
        %v678 = vtanh.pop %v614
        %v679 = vtanh.pop %v615
        %v680 = vtanh.pop %v616
        %v681 = vtanh.pop %v617
        %v682 = vtanh.pop %v618
        %v683 = vtanh.pop %v619
        %v684 = vtanh.pop %v620
        %v685 = vtanh.pop %v621
        %v686 = vtanh.pop %v622
        %v687 = vtanh.pop %v623
        %v688 = vtanh.pop %v624
        %v689 = vtanh.pop %v625
        %v690 = vtanh.pop %v626
        %v691 = vtanh.pop %v627
        %v692 = vtanh.pop %v628
        %v693 = vtanh.pop %v629
        %v694 = vtanh.pop %v630
        %v695 = vtanh.pop %v631
        %v696 = vtanh.pop %v632
        %v697 = vtanh.pop %v633
        %v698 = vtanh.pop %v634
        %v699 = vtanh.pop %v635
        %v700 = vmul.f32 %v636, 0.5
        %v701 = vmul.f32 %v637, 0.5
        %v702 = vmul.f32 %v638, 0.5
        %v703 = vmul.f32 %v639, 0.5
        %v704 = vmul.f32 %v640, 0.5
        %v705 = vmul.f32 %v641, 0.5
        %v706 = vmul.f32 %v642, 0.5
        %v707 = vmul.f32 %v643, 0.5
        %v708 = vmul.f32 %v644, 0.5
        %v709 = vmul.f32 %v645, 0.5
        %v710 = vmul.f32 %v646, 0.5
        %v711 = vmul.f32 %v647, 0.5
        %v712 = vmul.f32 %v648, 0.5
        %v713 = vmul.f32 %v649, 0.5
        %v714 = vmul.f32 %v650, 0.5
        %v715 = vmul.f32 %v651, 0.5
        %v716 = vmul.f32 %v652, 0.5
        %v717 = vmul.f32 %v653, 0.5
        %v718 = vmul.f32 %v654, 0.5
        %v719 = vmul.f32 %v655, 0.5
        %v720 = vmul.f32 %v656, 0.5
        %v721 = vmul.f32 %v657, 0.5
        %v722 = vmul.f32 %v658, 0.5
        %v723 = vmul.f32 %v659, 0.5
        %v724 = vmul.f32 %v660, 0.5
        %v725 = vmul.f32 %v661, 0.5
        %v726 = vmul.f32 %v662, 0.5
        %v727 = vmul.f32 %v663, 0.5
        %v728 = vmul.f32 %v664, 0.5
        %v729 = vmul.f32 %v665, 0.5
        %v730 = vmul.f32 %v666, 0.5
        %v731 = vmul.f32 %v667, 0.5
        %v732 = vmul.f32 %v668, 0.5
        %v733 = vmul.f32 %v669, 0.5
        %v734 = vmul.f32 %v670, 0.5
        %v735 = vmul.f32 %v671, 0.5
        %v736 = vmul.f32 %v672, 0.5
        %v737 = vmul.f32 %v673, 0.5
        %v738 = vmul.f32 %v674, 0.5
        %v739 = vmul.f32 %v675, 0.5
        %v740 = vmul.f32 %v676, 0.5
        %v741 = vmul.f32 %v677, 0.5
        %v742 = vmul.f32 %v678, 0.5
        %v743 = vmul.f32 %v679, 0.5
        %v744 = vmul.f32 %v680, 0.5
        %v745 = vmul.f32 %v681, 0.5
        %v746 = vmul.f32 %v682, 0.5
        %v747 = vmul.f32 %v683, 0.5
        %v748 = vmul.f32 %v684, 0.5
        %v749 = vmul.f32 %v685, 0.5
        %v750 = vmul.f32 %v686, 0.5
        %v751 = vmul.f32 %v687, 0.5
        %v752 = vmul.f32 %v688, 0.5
        %v753 = vmul.f32 %v689, 0.5
        %v754 = vmul.f32 %v690, 0.5
        %v755 = vmul.f32 %v691, 0.5
        %v756 = vmul.f32 %v692, 0.5
        %v757 = vmul.f32 %v693, 0.5
        %v758 = vmul.f32 %v694, 0.5
        %v759 = vmul.f32 %v695, 0.5
        %v760 = vmul.f32 %v696, 0.5
        %v761 = vmul.f32 %v697, 0.5
        %v762 = vmul.f32 %v698, 0.5
        %v763 = vmul.f32 %v699, 0.5
        %v764 = vadd.f32 %v700, 0.5
        %v765 = vadd.f32 %v701, 0.5
        %v766 = vadd.f32 %v702, 0.5
        %v767 = vadd.f32 %v703, 0.5
        %v768 = vadd.f32 %v704, 0.5
        %v769 = vadd.f32 %v705, 0.5
        %v770 = vadd.f32 %v706, 0.5
        %v771 = vadd.f32 %v707, 0.5
        %v772 = vadd.f32 %v708, 0.5
        %v773 = vadd.f32 %v709, 0.5
        %v774 = vadd.f32 %v710, 0.5
        %v775 = vadd.f32 %v711, 0.5
        %v776 = vadd.f32 %v712, 0.5
        %v777 = vadd.f32 %v713, 0.5
        %v778 = vadd.f32 %v714, 0.5
        %v779 = vadd.f32 %v715, 0.5
        %v780 = vadd.f32 %v716, 0.5
        %v781 = vadd.f32 %v717, 0.5
        %v782 = vadd.f32 %v718, 0.5
        %v783 = vadd.f32 %v719, 0.5
        %v784 = vadd.f32 %v720, 0.5
        %v785 = vadd.f32 %v721, 0.5
        %v786 = vadd.f32 %v722, 0.5
        %v787 = vadd.f32 %v723, 0.5
        %v788 = vadd.f32 %v724, 0.5
        %v789 = vadd.f32 %v725, 0.5
        %v790 = vadd.f32 %v726, 0.5
        %v791 = vadd.f32 %v727, 0.5
        %v792 = vadd.f32 %v728, 0.5
        %v793 = vadd.f32 %v729, 0.5
        %v794 = vadd.f32 %v730, 0.5
        %v795 = vadd.f32 %v731, 0.5
        %v796 = vadd.f32 %v732, 0.5
        %v797 = vadd.f32 %v733, 0.5
        %v798 = vadd.f32 %v734, 0.5
        %v799 = vadd.f32 %v735, 0.5
        %v800 = vadd.f32 %v736, 0.5
        %v801 = vadd.f32 %v737, 0.5
        %v802 = vadd.f32 %v738, 0.5
        %v803 = vadd.f32 %v739, 0.5
        %v804 = vadd.f32 %v740, 0.5
        %v805 = vadd.f32 %v741, 0.5
        %v806 = vadd.f32 %v742, 0.5
        %v807 = vadd.f32 %v743, 0.5
        %v808 = vadd.f32 %v744, 0.5
        %v809 = vadd.f32 %v745, 0.5
        %v810 = vadd.f32 %v746, 0.5
        %v811 = vadd.f32 %v747, 0.5
        %v812 = vadd.f32 %v748, 0.5
        %v813 = vadd.f32 %v749, 0.5
        %v814 = vadd.f32 %v750, 0.5
        %v815 = vadd.f32 %v751, 0.5
        %v816 = vadd.f32 %v752, 0.5
        %v817 = vadd.f32 %v753, 0.5
        %v818 = vadd.f32 %v754, 0.5
        %v819 = vadd.f32 %v755, 0.5
        %v820 = vadd.f32 %v756, 0.5
        %v821 = vadd.f32 %v757, 0.5
        %v822 = vadd.f32 %v758, 0.5
        %v823 = vadd.f32 %v759, 0.5
        %v824 = vadd.f32 %v760, 0.5
        %v825 = vadd.f32 %v761, 0.5
        %v826 = vadd.f32 %v762, 0.5
        %v827 = vadd.f32 %v763, 0.5
        %v828 = vmul.f32 %v404, %v764
        %v829 = vmul.f32 %v493, %v765
        %v830 = vmul.f32 %v406, %v766
        %v831 = vmul.f32 %v495, %v767
        %v832 = vmul.f32 %v409, %v768
        %v833 = vmul.f32 %v498, %v769
        %v834 = vmul.f32 %v411, %v770
        %v835 = vmul.f32 %v500, %v771
        %v836 = vmul.f32 %v414, %v772
        %v837 = vmul.f32 %v503, %v773
        %v838 = vmul.f32 %v416, %v774
        %v839 = vmul.f32 %v505, %v775
        %v840 = vmul.f32 %v419, %v776
        %v841 = vmul.f32 %v508, %v777
        %v842 = vmul.f32 %v421, %v778
        %v843 = vmul.f32 %v510, %v779
        %v844 = vmul.f32 %v424, %v780
        %v845 = vmul.f32 %v513, %v781
        %v846 = vmul.f32 %v426, %v782
        %v847 = vmul.f32 %v515, %v783
        %v848 = vmul.f32 %v429, %v784
        %v849 = vmul.f32 %v518, %v785
        %v850 = vmul.f32 %v431, %v786
        %v851 = vmul.f32 %v520, %v787
        %v852 = vmul.f32 %v434, %v788
        %v853 = vmul.f32 %v523, %v789
        %v854 = vmul.f32 %v436, %v790
        %v855 = vmul.f32 %v525, %v791
        %v856 = vmul.f32 %v439, %v792
        %v857 = vmul.f32 %v528, %v793
        %v858 = vmul.f32 %v441, %v794
        %v859 = vmul.f32 %v530, %v795
        %v860 = vmul.f32 %v444, %v796
        %v861 = vmul.f32 %v533, %v797
        %v862 = vmul.f32 %v446, %v798
        %v863 = vmul.f32 %v535, %v799
        %v864 = vmul.f32 %v449, %v800
        %v865 = vmul.f32 %v538, %v801
        %v866 = vmul.f32 %v451, %v802
        %v867 = vmul.f32 %v540, %v803
        %v868 = vmul.f32 %v454, %v804
        %v869 = vmul.f32 %v543, %v805
        %v870 = vmul.f32 %v456, %v806
        %v871 = vmul.f32 %v545, %v807
        %v872 = vmul.f32 %v459, %v808
        %v873 = vmul.f32 %v548, %v809
        %v874 = vmul.f32 %v461, %v810
        %v875 = vmul.f32 %v550, %v811
        %v876 = vmul.f32 %v464, %v812
        %v877 = vmul.f32 %v553, %v813
        %v878 = vmul.f32 %v466, %v814
        %v879 = vmul.f32 %v555, %v815
        %v880 = vmul.f32 %v469, %v816
        %v881 = vmul.f32 %v558, %v817
        %v882 = vmul.f32 %v471, %v818
        %v883 = vmul.f32 %v560, %v819
        %v884 = vmul.f32 %v474, %v820
        %v885 = vmul.f32 %v563, %v821
        %v886 = vmul.f32 %v476, %v822
        %v887 = vmul.f32 %v565, %v823
        %v888 = vmul.f32 %v479, %v824
        %v889 = vmul.f32 %v568, %v825
        %v890 = vmul.f32 %v481, %v826
        %v891 = vmul.f32 %v570, %v827
        %v892 = vpack.c.bf16 %v830, %v828
        %v893 = vpack.c.bf16 %v831, %v829
        %v894 = vpack.c.bf16 %v834, %v832
        %v895 = vpack.c.bf16 %v835, %v833
        %v896 = vpack.c.bf16 %v838, %v836
        %v897 = vpack.c.bf16 %v839, %v837
        %v898 = vpack.c.bf16 %v842, %v840
        %v899 = vpack.c.bf16 %v843, %v841
        %v900 = vpack.c.bf16 %v846, %v844
        %v901 = vpack.c.bf16 %v847, %v845
        %v902 = vpack.c.bf16 %v850, %v848
        %v903 = vpack.c.bf16 %v851, %v849
        %v904 = vpack.c.bf16 %v854, %v852
        %v905 = vpack.c.bf16 %v855, %v853
        %v906 = vpack.c.bf16 %v858, %v856
        %v907 = vpack.c.bf16 %v859, %v857
        %v908 = vpack.c.bf16 %v862, %v860
        %v909 = vpack.c.bf16 %v863, %v861
        %v910 = vpack.c.bf16 %v866, %v864
        %v911 = vpack.c.bf16 %v867, %v865
        %v912 = vpack.c.bf16 %v870, %v868
        %v913 = vpack.c.bf16 %v871, %v869
        %v914 = vpack.c.bf16 %v874, %v872
        %v915 = vpack.c.bf16 %v875, %v873
        %v916 = vpack.c.bf16 %v878, %v876
        %v917 = vpack.c.bf16 %v879, %v877
        %v918 = vpack.c.bf16 %v882, %v880
        %v919 = vpack.c.bf16 %v883, %v881
        %v920 = vpack.c.bf16 %v886, %v884
        %v921 = vpack.c.bf16 %v887, %v885
        %v922 = vpack.c.bf16 %v890, %v888
        %v923 = vpack.c.bf16 %v891, %v889
        %v924 = vld [vmem:[#allocation2] sm:$0xff]
        %v925 = vld [vmem:[#allocation2 + $0x8] sm:$0xff]
        %v926 = vld [vmem:[#allocation2 + $0x10] sm:$0xff]
        %v927 = vld [vmem:[#allocation2 + $0x18] sm:$0xff]
        %v928 = vld [vmem:[#allocation2 + $0x20] sm:$0xff]
        %v929 = vld [vmem:[#allocation2 + $0x28] sm:$0xff]
        %v930 = vld [vmem:[#allocation2 + $0x30] sm:$0xff]
        %v931 = vld [vmem:[#allocation2 + $0x38] sm:$0xff]
        %v932 = vld [vmem:[#allocation2 + $0x40] sm:$0xff]
        %v933 = vld [vmem:[#allocation2 + $0x48] sm:$0xff]
        %v934 = vld [vmem:[#allocation2 + $0x50] sm:$0xff]
        %v935 = vld [vmem:[#allocation2 + $0x58] sm:$0xff]
        %v936 = vld [vmem:[#allocation2 + $0x60] sm:$0xff]
        %v937 = vld [vmem:[#allocation2 + $0x68] sm:$0xff]
        %v938 = vld [vmem:[#allocation2 + $0x70] sm:$0xff]
        %v939 = vld [vmem:[#allocation2 + $0x78] sm:$0xff]
        %v940 = vld [vmem:[#allocation2 + $0x80] sm:$0xff]
        %v941 = vld [vmem:[#allocation2 + $0x88] sm:$0xff]
        %v942 = vld [vmem:[#allocation2 + $0x90] sm:$0xff]
        %v943 = vld [vmem:[#allocation2 + $0x98] sm:$0xff]
        %v944 = vld [vmem:[#allocation2 + $0xa0] sm:$0xff]
        %v945 = vld [vmem:[#allocation2 + $0xa8] sm:$0xff]
        %v946 = vld [vmem:[#allocation2 + $0xb0] sm:$0xff]
        %v947 = vld [vmem:[#allocation2 + $0xb8] sm:$0xff]
        %v948 = vld [vmem:[#allocation2 + $0xc0] sm:$0xff]
        %v949 = vld [vmem:[#allocation2 + $0xc8] sm:$0xff]
        %v950 = vld [vmem:[#allocation2 + $0xd0] sm:$0xff]
        %v951 = vld [vmem:[#allocation2 + $0xd8] sm:$0xff]
        %v952 = vld [vmem:[#allocation2 + $0xe0] sm:$0xff]
        %v953 = vld [vmem:[#allocation2 + $0xe8] sm:$0xff]
        %v954 = vld [vmem:[#allocation2 + $0xf0] sm:$0xff]
        %v955 = vld [vmem:[#allocation2 + $0xf8] sm:$0xff]
        %s956 = scalar_lea.vmem %s4, 1
        %v957 = vld [vmem:[%s956] ss:$8 sm:$0x3]
        %v959 = vperm.slane %v957, 0
        %v960 = vperm.slane %v957, 1
        %v995 = vunpack.c.l.b16 %v924
        %v996 = vunpack.c.h.b16 %v924
        %v997 = vunpack.c.l.b16 %v925
        %v998 = vunpack.c.h.b16 %v925
        %v999 = vunpack.c.l.b16 %v926
        %v1000 = vunpack.c.h.b16 %v926
        %v1001 = vunpack.c.l.b16 %v927
        %v1002 = vunpack.c.h.b16 %v927
        %v1003 = vunpack.c.l.b16 %v928
        %v1004 = vunpack.c.h.b16 %v928
        %v1005 = vunpack.c.l.b16 %v929
        %v1006 = vunpack.c.h.b16 %v929
        %v1007 = vunpack.c.l.b16 %v930
        %v1008 = vunpack.c.h.b16 %v930
        %v1009 = vunpack.c.l.b16 %v931
        %v1010 = vunpack.c.h.b16 %v931
        %v1011 = vunpack.c.l.b16 %v932
        %v1012 = vunpack.c.h.b16 %v932
        %v1013 = vunpack.c.l.b16 %v933
        %v1014 = vunpack.c.h.b16 %v933
        %v1015 = vunpack.c.l.b16 %v934
        %v1016 = vunpack.c.h.b16 %v934
        %v1017 = vunpack.c.l.b16 %v935
        %v1018 = vunpack.c.h.b16 %v935
        %v1019 = vunpack.c.l.b16 %v936
        %v1020 = vunpack.c.h.b16 %v936
        %v1021 = vunpack.c.l.b16 %v937
        %v1022 = vunpack.c.h.b16 %v937
        %v1023 = vunpack.c.l.b16 %v938
        %v1024 = vunpack.c.h.b16 %v938
        %v1025 = vunpack.c.l.b16 %v939
        %v1026 = vunpack.c.h.b16 %v939
        %v1027 = vunpack.c.l.b16 %v940
        %v1028 = vunpack.c.h.b16 %v940
        %v1029 = vunpack.c.l.b16 %v941
        %v1030 = vunpack.c.h.b16 %v941
        %v1031 = vunpack.c.l.b16 %v942
        %v1032 = vunpack.c.h.b16 %v942
        %v1033 = vunpack.c.l.b16 %v943
        %v1034 = vunpack.c.h.b16 %v943
        %v1035 = vunpack.c.l.b16 %v944
        %v1036 = vunpack.c.h.b16 %v944
        %v1037 = vunpack.c.l.b16 %v945
        %v1038 = vunpack.c.h.b16 %v945
        %v1039 = vunpack.c.l.b16 %v946
        %v1040 = vunpack.c.h.b16 %v946
        %v1041 = vunpack.c.l.b16 %v947
        %v1042 = vunpack.c.h.b16 %v947
        %v1043 = vunpack.c.l.b16 %v948
        %v1044 = vunpack.c.h.b16 %v948
        %v1045 = vunpack.c.l.b16 %v949
        %v1046 = vunpack.c.h.b16 %v949
        %v1047 = vunpack.c.l.b16 %v950
        %v1048 = vunpack.c.h.b16 %v950
        %v1049 = vunpack.c.l.b16 %v951
        %v1050 = vunpack.c.h.b16 %v951
        %v1051 = vunpack.c.l.b16 %v952
        %v1052 = vunpack.c.h.b16 %v952
        %v1053 = vunpack.c.l.b16 %v953
        %v1054 = vunpack.c.h.b16 %v953
        %v1055 = vunpack.c.l.b16 %v954
        %v1056 = vunpack.c.h.b16 %v954
        %v1057 = vunpack.c.l.b16 %v955
        %v1058 = vunpack.c.h.b16 %v955
        %v1059 = vpack.c.b16 %v997, %v995
        %v1060 = vpack.c.b16 %v998, %v996
        %v1061 = vpack.c.b16 %v1001, %v999
        %v1062 = vpack.c.b16 %v1002, %v1000
        %v1063 = vpack.c.b16 %v1005, %v1003
        %v1064 = vpack.c.b16 %v1006, %v1004
        %v1065 = vpack.c.b16 %v1009, %v1007
        %v1066 = vpack.c.b16 %v1010, %v1008
        %v1067 = vpack.c.b16 %v1013, %v1011
        %v1068 = vpack.c.b16 %v1014, %v1012
        %v1069 = vpack.c.b16 %v1017, %v1015
        %v1070 = vpack.c.b16 %v1018, %v1016
        %v1071 = vpack.c.b16 %v1021, %v1019
        %v1072 = vpack.c.b16 %v1022, %v1020
        %v1073 = vpack.c.b16 %v1025, %v1023
        %v1074 = vpack.c.b16 %v1026, %v1024
        %v1075 = vpack.c.b16 %v1029, %v1027
        %v1076 = vpack.c.b16 %v1030, %v1028
        %v1077 = vpack.c.b16 %v1033, %v1031
        %v1078 = vpack.c.b16 %v1034, %v1032
        %v1079 = vpack.c.b16 %v1037, %v1035
        %v1080 = vpack.c.b16 %v1038, %v1036
        %v1081 = vpack.c.b16 %v1041, %v1039
        %v1082 = vpack.c.b16 %v1042, %v1040
        %v1083 = vpack.c.b16 %v1045, %v1043
        %v1084 = vpack.c.b16 %v1046, %v1044
        %v1085 = vpack.c.b16 %v1049, %v1047
        %v1086 = vpack.c.b16 %v1050, %v1048
        %v1087 = vpack.c.b16 %v1053, %v1051
        %v1088 = vpack.c.b16 %v1054, %v1052
        %v1089 = vpack.c.b16 %v1057, %v1055
        %v1090 = vpack.c.b16 %v1058, %v1056
        %1123 = vmatpush.bf16.msra.mxu0 %v1073
        %1124 = vmatpush.bf16.msra.mxu0 %v1071
        %1125 = vmatpush.bf16.msra.mxu0 %v1069
        %1126 = vmatpush.bf16.msra.mxu0 %v1067
        %1127 = vmatpush.bf16.msra.mxu0 %v1065
        %1128 = vmatpush.bf16.msra.mxu0 %v1063
        %1129 = vmatpush.bf16.msra.mxu0 %v1061
        %1130 = vmatpush.bf16.msra.mxu0 %v1059
        %1131 = vmatmul.bf16.gmra.mxu0 %v892
        %v1132 = vpop.f32.mrf.mxu0
        %v1133 = vadd.f32 %v959, %v1132
        %v1134 = vpop.f32.mrf.mxu0
        %v1135 = vadd.f32 %v959, %v1134
        %1136 = vmatmul.bf16.gmra.mxu0 %v894
        %v1137 = vpop.f32.mrf.mxu0
        %v1138 = vadd.f32 %v959, %v1137
        %v1139 = vpop.f32.mrf.mxu0
        %v1140 = vadd.f32 %v959, %v1139
        %1141 = vmatmul.bf16.gmra.mxu0 %v896
        %v1142 = vpop.f32.mrf.mxu0
        %v1143 = vadd.f32 %v959, %v1142
        %v1144 = vpop.f32.mrf.mxu0
        %v1145 = vadd.f32 %v959, %v1144
        %1146 = vmatmul.bf16.gmra.mxu0 %v898
        %v1147 = vpop.f32.mrf.mxu0
        %v1148 = vadd.f32 %v959, %v1147
        %v1149 = vpop.f32.mrf.mxu0
        %v1150 = vadd.f32 %v959, %v1149
        %1151 = vmatmul.bf16.gmra.mxu0 %v900
        %v1152 = vpop.f32.mrf.mxu0
        %v1153 = vadd.f32 %v959, %v1152
        %v1154 = vpop.f32.mrf.mxu0
        %v1155 = vadd.f32 %v959, %v1154
        %1156 = vmatmul.bf16.gmra.mxu0 %v902
        %v1157 = vpop.f32.mrf.mxu0
        %v1158 = vadd.f32 %v959, %v1157
        %v1159 = vpop.f32.mrf.mxu0
        %v1160 = vadd.f32 %v959, %v1159
        %1161 = vmatmul.bf16.gmra.mxu0 %v904
        %v1162 = vpop.f32.mrf.mxu0
        %v1163 = vadd.f32 %v959, %v1162
        %v1164 = vpop.f32.mrf.mxu0
        %v1165 = vadd.f32 %v959, %v1164
        %1166 = vmatmul.bf16.gmra.mxu0 %v906
        %v1167 = vpop.f32.mrf.mxu0
        %v1168 = vadd.f32 %v959, %v1167
        %v1169 = vpop.f32.mrf.mxu0
        %v1170 = vadd.f32 %v959, %v1169
        %1171 = vmatmul.bf16.gmra.mxu0 %v908
        %v1172 = vpop.f32.mrf.mxu0
        %v1173 = vadd.f32 %v959, %v1172
        %v1174 = vpop.f32.mrf.mxu0
        %v1175 = vadd.f32 %v959, %v1174
        %1176 = vmatmul.bf16.gmra.mxu0 %v910
        %v1177 = vpop.f32.mrf.mxu0
        %v1178 = vadd.f32 %v959, %v1177
        %v1179 = vpop.f32.mrf.mxu0
        %v1180 = vadd.f32 %v959, %v1179
        %1181 = vmatmul.bf16.gmra.mxu0 %v912
        %v1182 = vpop.f32.mrf.mxu0
        %v1183 = vadd.f32 %v959, %v1182
        %v1184 = vpop.f32.mrf.mxu0
        %v1185 = vadd.f32 %v959, %v1184
        %1186 = vmatmul.bf16.gmra.mxu0 %v914
        %v1187 = vpop.f32.mrf.mxu0
        %v1188 = vadd.f32 %v959, %v1187
        %v1189 = vpop.f32.mrf.mxu0
        %v1190 = vadd.f32 %v959, %v1189
        %1191 = vmatmul.bf16.gmra.mxu0 %v916
        %v1192 = vpop.f32.mrf.mxu0
        %v1193 = vadd.f32 %v959, %v1192
        %v1194 = vpop.f32.mrf.mxu0
        %v1195 = vadd.f32 %v959, %v1194
        %1196 = vmatmul.bf16.gmra.mxu0 %v918
        %v1197 = vpop.f32.mrf.mxu0
        %v1198 = vadd.f32 %v959, %v1197
        %v1199 = vpop.f32.mrf.mxu0
        %v1200 = vadd.f32 %v959, %v1199
        %1201 = vmatmul.bf16.gmra.mxu0 %v920
        %v1202 = vpop.f32.mrf.mxu0
        %v1203 = vadd.f32 %v959, %v1202
        %v1204 = vpop.f32.mrf.mxu0
        %v1205 = vadd.f32 %v959, %v1204
        %1206 = vmatmul.bf16.gmra.mxu0 %v922
        %v1207 = vpop.f32.mrf.mxu0
        %v1208 = vadd.f32 %v959, %v1207
        %v1209 = vpop.f32.mrf.mxu0
        %v1210 = vadd.f32 %v959, %v1209
        %1211 = vdwg.mxu0
        %1212 = vmatpush.bf16.msra.mxu0 %v1089
        %1213 = vmatpush.bf16.msra.mxu0 %v1087
        %1214 = vmatpush.bf16.msra.mxu0 %v1085
        %1215 = vmatpush.bf16.msra.mxu0 %v1083
        %1216 = vmatpush.bf16.msra.mxu0 %v1081
        %1217 = vmatpush.bf16.msra.mxu0 %v1079
        %1218 = vmatpush.bf16.msra.mxu0 %v1077
        %1219 = vmatpush.bf16.msra.mxu0 %v1075
        %1220 = vmatmul.bf16.gmra.mxu0 %v893
        %v1221 = vpop.f32.mrf.mxu0
        %v1222 = vadd.f32 %v1133, %v1221
        %v1223 = vpop.f32.mrf.mxu0
        %v1224 = vadd.f32 %v1135, %v1223
        %1225 = vmatmul.bf16.gmra.mxu0 %v895
        %v1226 = vpop.f32.mrf.mxu0
        %v1227 = vadd.f32 %v1138, %v1226
        %v1228 = vpop.f32.mrf.mxu0
        %v1229 = vadd.f32 %v1140, %v1228
        %1230 = vmatmul.bf16.gmra.mxu0 %v897
        %v1231 = vpop.f32.mrf.mxu0
        %v1232 = vadd.f32 %v1143, %v1231
        %v1233 = vpop.f32.mrf.mxu0
        %v1234 = vadd.f32 %v1145, %v1233
        %1235 = vmatmul.bf16.gmra.mxu0 %v899
        %v1236 = vpop.f32.mrf.mxu0
        %v1237 = vadd.f32 %v1148, %v1236
        %v1238 = vpop.f32.mrf.mxu0
        %v1239 = vadd.f32 %v1150, %v1238
        %1240 = vmatmul.bf16.gmra.mxu0 %v901
        %v1241 = vpop.f32.mrf.mxu0
        %v1242 = vadd.f32 %v1153, %v1241
        %v1243 = vpop.f32.mrf.mxu0
        %v1244 = vadd.f32 %v1155, %v1243
        %1245 = vmatmul.bf16.gmra.mxu0 %v903
        %v1246 = vpop.f32.mrf.mxu0
        %v1247 = vadd.f32 %v1158, %v1246
        %v1248 = vpop.f32.mrf.mxu0
        %v1249 = vadd.f32 %v1160, %v1248
        %1250 = vmatmul.bf16.gmra.mxu0 %v905
        %v1251 = vpop.f32.mrf.mxu0
        %v1252 = vadd.f32 %v1163, %v1251
        %v1253 = vpop.f32.mrf.mxu0
        %v1254 = vadd.f32 %v1165, %v1253
        %1255 = vmatmul.bf16.gmra.mxu0 %v907
        %v1256 = vpop.f32.mrf.mxu0
        %v1257 = vadd.f32 %v1168, %v1256
        %v1258 = vpop.f32.mrf.mxu0
        %v1259 = vadd.f32 %v1170, %v1258
        %1260 = vmatmul.bf16.gmra.mxu0 %v909
        %v1261 = vpop.f32.mrf.mxu0
        %v1262 = vadd.f32 %v1173, %v1261
        %v1263 = vpop.f32.mrf.mxu0
        %v1264 = vadd.f32 %v1175, %v1263
        %1265 = vmatmul.bf16.gmra.mxu0 %v911
        %v1266 = vpop.f32.mrf.mxu0
        %v1267 = vadd.f32 %v1178, %v1266
        %v1268 = vpop.f32.mrf.mxu0
        %v1269 = vadd.f32 %v1180, %v1268
        %1270 = vmatmul.bf16.gmra.mxu0 %v913
        %v1271 = vpop.f32.mrf.mxu0
        %v1272 = vadd.f32 %v1183, %v1271
        %v1273 = vpop.f32.mrf.mxu0
        %v1274 = vadd.f32 %v1185, %v1273
        %1275 = vmatmul.bf16.gmra.mxu0 %v915
        %v1276 = vpop.f32.mrf.mxu0
        %v1277 = vadd.f32 %v1188, %v1276
        %v1278 = vpop.f32.mrf.mxu0
        %v1279 = vadd.f32 %v1190, %v1278
        %1280 = vmatmul.bf16.gmra.mxu0 %v917
        %v1281 = vpop.f32.mrf.mxu0
        %v1282 = vadd.f32 %v1193, %v1281
        %v1283 = vpop.f32.mrf.mxu0
        %v1284 = vadd.f32 %v1195, %v1283
        %1285 = vmatmul.bf16.gmra.mxu0 %v919
        %v1286 = vpop.f32.mrf.mxu0
        %v1287 = vadd.f32 %v1198, %v1286
        %v1288 = vpop.f32.mrf.mxu0
        %v1289 = vadd.f32 %v1200, %v1288
        %1290 = vmatmul.bf16.gmra.mxu0 %v921
        %v1291 = vpop.f32.mrf.mxu0
        %v1292 = vadd.f32 %v1203, %v1291
        %v1293 = vpop.f32.mrf.mxu0
        %v1294 = vadd.f32 %v1205, %v1293
        %1295 = vmatmul.bf16.gmra.mxu0 %v923
        %v1296 = vpop.f32.mrf.mxu0
        %v1297 = vadd.f32 %v1208, %v1296
        %v1298 = vpop.f32.mrf.mxu0
        %v1299 = vadd.f32 %v1210, %v1298
        %1300 = vdwg.mxu0
        %1301 = vmatpush.bf16.msra.mxu0 %v1074
        %1302 = vmatpush.bf16.msra.mxu0 %v1072
        %1303 = vmatpush.bf16.msra.mxu0 %v1070
        %1304 = vmatpush.bf16.msra.mxu0 %v1068
        %1305 = vmatpush.bf16.msra.mxu0 %v1066
        %1306 = vmatpush.bf16.msra.mxu0 %v1064
        %1307 = vmatpush.bf16.msra.mxu0 %v1062
        %1308 = vmatpush.bf16.msra.mxu0 %v1060
        %1309 = vmatmul.bf16.gmra.mxu0 %v892
        %v1310 = vpop.f32.mrf.mxu0
        %v1311 = vadd.f32 %v960, %v1310
        %v1312 = vpop.f32.mrf.mxu0
        %v1313 = vadd.f32 %v960, %v1312
        %1314 = vmatmul.bf16.gmra.mxu0 %v894
        %v1315 = vpop.f32.mrf.mxu0
        %v1316 = vadd.f32 %v960, %v1315
        %v1317 = vpop.f32.mrf.mxu0
        %v1318 = vadd.f32 %v960, %v1317
        %1319 = vmatmul.bf16.gmra.mxu0 %v896
        %v1320 = vpop.f32.mrf.mxu0
        %v1321 = vadd.f32 %v960, %v1320
        %v1322 = vpop.f32.mrf.mxu0
        %v1323 = vadd.f32 %v960, %v1322
        %1324 = vmatmul.bf16.gmra.mxu0 %v898
        %v1325 = vpop.f32.mrf.mxu0
        %v1326 = vadd.f32 %v960, %v1325
        %v1327 = vpop.f32.mrf.mxu0
        %v1328 = vadd.f32 %v960, %v1327
        %1329 = vmatmul.bf16.gmra.mxu0 %v900
        %v1330 = vpop.f32.mrf.mxu0
        %v1331 = vadd.f32 %v960, %v1330
        %v1332 = vpop.f32.mrf.mxu0
        %v1333 = vadd.f32 %v960, %v1332
        %1334 = vmatmul.bf16.gmra.mxu0 %v902
        %v1335 = vpop.f32.mrf.mxu0
        %v1336 = vadd.f32 %v960, %v1335
        %v1337 = vpop.f32.mrf.mxu0
        %v1338 = vadd.f32 %v960, %v1337
        %1339 = vmatmul.bf16.gmra.mxu0 %v904
        %v1340 = vpop.f32.mrf.mxu0
        %v1341 = vadd.f32 %v960, %v1340
        %v1342 = vpop.f32.mrf.mxu0
        %v1343 = vadd.f32 %v960, %v1342
        %1344 = vmatmul.bf16.gmra.mxu0 %v906
        %v1345 = vpop.f32.mrf.mxu0
        %v1346 = vadd.f32 %v960, %v1345
        %v1347 = vpop.f32.mrf.mxu0
        %v1348 = vadd.f32 %v960, %v1347
        %1349 = vmatmul.bf16.gmra.mxu0 %v908
        %v1350 = vpop.f32.mrf.mxu0
        %v1351 = vadd.f32 %v960, %v1350
        %v1352 = vpop.f32.mrf.mxu0
        %v1353 = vadd.f32 %v960, %v1352
        %1354 = vmatmul.bf16.gmra.mxu0 %v910
        %v1355 = vpop.f32.mrf.mxu0
        %v1356 = vadd.f32 %v960, %v1355
        %v1357 = vpop.f32.mrf.mxu0
        %v1358 = vadd.f32 %v960, %v1357
        %1359 = vmatmul.bf16.gmra.mxu0 %v912
        %v1360 = vpop.f32.mrf.mxu0
        %v1361 = vadd.f32 %v960, %v1360
        %v1362 = vpop.f32.mrf.mxu0
        %v1363 = vadd.f32 %v960, %v1362
        %1364 = vmatmul.bf16.gmra.mxu0 %v914
        %v1365 = vpop.f32.mrf.mxu0
        %v1366 = vadd.f32 %v960, %v1365
        %v1367 = vpop.f32.mrf.mxu0
        %v1368 = vadd.f32 %v960, %v1367
        %1369 = vmatmul.bf16.gmra.mxu0 %v916
        %v1370 = vpop.f32.mrf.mxu0
        %v1371 = vadd.f32 %v960, %v1370
        %v1372 = vpop.f32.mrf.mxu0
        %v1373 = vadd.f32 %v960, %v1372
        %1374 = vmatmul.bf16.gmra.mxu0 %v918
        %v1375 = vpop.f32.mrf.mxu0
        %v1376 = vadd.f32 %v960, %v1375
        %v1377 = vpop.f32.mrf.mxu0
        %v1378 = vadd.f32 %v960, %v1377
        %1379 = vmatmul.bf16.gmra.mxu0 %v920
        %v1380 = vpop.f32.mrf.mxu0
        %v1381 = vadd.f32 %v960, %v1380
        %v1382 = vpop.f32.mrf.mxu0
        %v1383 = vadd.f32 %v960, %v1382
        %1384 = vmatmul.bf16.gmra.mxu0 %v922
        %v1385 = vpop.f32.mrf.mxu0
        %v1386 = vadd.f32 %v960, %v1385
        %v1387 = vpop.f32.mrf.mxu0
        %v1388 = vadd.f32 %v960, %v1387
        %1389 = vdwg.mxu0
        %1390 = vmatpush.bf16.msra.mxu0 %v1090
        %1391 = vmatpush.bf16.msra.mxu0 %v1088
        %1392 = vmatpush.bf16.msra.mxu0 %v1086
        %1393 = vmatpush.bf16.msra.mxu0 %v1084
        %1394 = vmatpush.bf16.msra.mxu0 %v1082
        %1395 = vmatpush.bf16.msra.mxu0 %v1080
        %1396 = vmatpush.bf16.msra.mxu0 %v1078
        %1397 = vmatpush.bf16.msra.mxu0 %v1076
        %1398 = vmatmul.bf16.gmra.mxu0 %v893
        %v1399 = vpop.f32.mrf.mxu0
        %v1400 = vadd.f32 %v1311, %v1399
        %v1401 = vpop.f32.mrf.mxu0
        %v1402 = vadd.f32 %v1313, %v1401
        %1403 = vmatmul.bf16.gmra.mxu0 %v895
        %v1404 = vpop.f32.mrf.mxu0
        %v1405 = vadd.f32 %v1316, %v1404
        %v1406 = vpop.f32.mrf.mxu0
        %v1407 = vadd.f32 %v1318, %v1406
        %1408 = vmatmul.bf16.gmra.mxu0 %v897
        %v1409 = vpop.f32.mrf.mxu0
        %v1410 = vadd.f32 %v1321, %v1409
        %v1411 = vpop.f32.mrf.mxu0
        %v1412 = vadd.f32 %v1323, %v1411
        %1413 = vmatmul.bf16.gmra.mxu0 %v899
        %v1414 = vpop.f32.mrf.mxu0
        %v1415 = vadd.f32 %v1326, %v1414
        %v1416 = vpop.f32.mrf.mxu0
        %v1417 = vadd.f32 %v1328, %v1416
        %1418 = vmatmul.bf16.gmra.mxu0 %v901
        %v1419 = vpop.f32.mrf.mxu0
        %v1420 = vadd.f32 %v1331, %v1419
        %v1421 = vpop.f32.mrf.mxu0
        %v1422 = vadd.f32 %v1333, %v1421
        %1423 = vmatmul.bf16.gmra.mxu0 %v903
        %v1424 = vpop.f32.mrf.mxu0
        %v1425 = vadd.f32 %v1336, %v1424
        %v1426 = vpop.f32.mrf.mxu0
        %v1427 = vadd.f32 %v1338, %v1426
        %1428 = vmatmul.bf16.gmra.mxu0 %v905
        %v1429 = vpop.f32.mrf.mxu0
        %v1430 = vadd.f32 %v1341, %v1429
        %v1431 = vpop.f32.mrf.mxu0
        %v1432 = vadd.f32 %v1343, %v1431
        %1433 = vmatmul.bf16.gmra.mxu0 %v907
        %v1434 = vpop.f32.mrf.mxu0
        %v1435 = vadd.f32 %v1346, %v1434
        %v1436 = vpop.f32.mrf.mxu0
        %v1437 = vadd.f32 %v1348, %v1436
        %1438 = vmatmul.bf16.gmra.mxu0 %v909
        %v1439 = vpop.f32.mrf.mxu0
        %v1440 = vadd.f32 %v1351, %v1439
        %v1441 = vpop.f32.mrf.mxu0
        %v1442 = vadd.f32 %v1353, %v1441
        %1443 = vmatmul.bf16.gmra.mxu0 %v911
        %v1444 = vpop.f32.mrf.mxu0
        %v1445 = vadd.f32 %v1356, %v1444
        %v1446 = vpop.f32.mrf.mxu0
        %v1447 = vadd.f32 %v1358, %v1446
        %1448 = vmatmul.bf16.gmra.mxu0 %v913
        %v1449 = vpop.f32.mrf.mxu0
        %v1450 = vadd.f32 %v1361, %v1449
        %v1451 = vpop.f32.mrf.mxu0
        %v1452 = vadd.f32 %v1363, %v1451
        %1453 = vmatmul.bf16.gmra.mxu0 %v915
        %v1454 = vpop.f32.mrf.mxu0
        %v1455 = vadd.f32 %v1366, %v1454
        %v1456 = vpop.f32.mrf.mxu0
        %v1457 = vadd.f32 %v1368, %v1456
        %1458 = vmatmul.bf16.gmra.mxu0 %v917
        %v1459 = vpop.f32.mrf.mxu0
        %v1460 = vadd.f32 %v1371, %v1459
        %v1461 = vpop.f32.mrf.mxu0
        %v1462 = vadd.f32 %v1373, %v1461
        %1463 = vmatmul.bf16.gmra.mxu0 %v919
        %v1464 = vpop.f32.mrf.mxu0
        %v1465 = vadd.f32 %v1376, %v1464
        %v1466 = vpop.f32.mrf.mxu0
        %v1467 = vadd.f32 %v1378, %v1466
        %1468 = vmatmul.bf16.gmra.mxu0 %v921
        %v1469 = vpop.f32.mrf.mxu0
        %v1470 = vadd.f32 %v1381, %v1469
        %v1471 = vpop.f32.mrf.mxu0
        %v1472 = vadd.f32 %v1383, %v1471
        %1473 = vmatmul.bf16.gmra.mxu0 %v923
        %v1474 = vpop.f32.mrf.mxu0
        %v1475 = vadd.f32 %v1386, %v1474
        %v1476 = vpop.f32.mrf.mxu0
        %v1477 = vadd.f32 %v1388, %v1476
        %1478 = vdwg.mxu0
        %v1479 = vmul.f32 %v1222, 0.5
        %v1480 = vmul.f32 %v1400, 0.5
        %v1481 = vmul.f32 %v1224, 0.5
        %v1482 = vmul.f32 %v1402, 0.5
        %v1483 = vmul.f32 %v1227, 0.5
        %v1484 = vmul.f32 %v1405, 0.5
        %v1485 = vmul.f32 %v1229, 0.5
        %v1486 = vmul.f32 %v1407, 0.5
        %v1487 = vmul.f32 %v1232, 0.5
        %v1488 = vmul.f32 %v1410, 0.5
        %v1489 = vmul.f32 %v1234, 0.5
        %v1490 = vmul.f32 %v1412, 0.5
        %v1491 = vmul.f32 %v1237, 0.5
        %v1492 = vmul.f32 %v1415, 0.5
        %v1493 = vmul.f32 %v1239, 0.5
        %v1494 = vmul.f32 %v1417, 0.5
        %v1495 = vmul.f32 %v1242, 0.5
        %v1496 = vmul.f32 %v1420, 0.5
        %v1497 = vmul.f32 %v1244, 0.5
        %v1498 = vmul.f32 %v1422, 0.5
        %v1499 = vmul.f32 %v1247, 0.5
        %v1500 = vmul.f32 %v1425, 0.5
        %v1501 = vmul.f32 %v1249, 0.5
        %v1502 = vmul.f32 %v1427, 0.5
        %v1503 = vmul.f32 %v1252, 0.5
        %v1504 = vmul.f32 %v1430, 0.5
        %v1505 = vmul.f32 %v1254, 0.5
        %v1506 = vmul.f32 %v1432, 0.5
        %v1507 = vmul.f32 %v1257, 0.5
        %v1508 = vmul.f32 %v1435, 0.5
        %v1509 = vmul.f32 %v1259, 0.5
        %v1510 = vmul.f32 %v1437, 0.5
        %v1511 = vmul.f32 %v1262, 0.5
        %v1512 = vmul.f32 %v1440, 0.5
        %v1513 = vmul.f32 %v1264, 0.5
        %v1514 = vmul.f32 %v1442, 0.5
        %v1515 = vmul.f32 %v1267, 0.5
        %v1516 = vmul.f32 %v1445, 0.5
        %v1517 = vmul.f32 %v1269, 0.5
        %v1518 = vmul.f32 %v1447, 0.5
        %v1519 = vmul.f32 %v1272, 0.5
        %v1520 = vmul.f32 %v1450, 0.5
        %v1521 = vmul.f32 %v1274, 0.5
        %v1522 = vmul.f32 %v1452, 0.5
        %v1523 = vmul.f32 %v1277, 0.5
        %v1524 = vmul.f32 %v1455, 0.5
        %v1525 = vmul.f32 %v1279, 0.5
        %v1526 = vmul.f32 %v1457, 0.5
        %v1527 = vmul.f32 %v1282, 0.5
        %v1528 = vmul.f32 %v1460, 0.5
        %v1529 = vmul.f32 %v1284, 0.5
        %v1530 = vmul.f32 %v1462, 0.5
        %v1531 = vmul.f32 %v1287, 0.5
        %v1532 = vmul.f32 %v1465, 0.5
        %v1533 = vmul.f32 %v1289, 0.5
        %v1534 = vmul.f32 %v1467, 0.5
        %v1535 = vmul.f32 %v1292, 0.5
        %v1536 = vmul.f32 %v1470, 0.5
        %v1537 = vmul.f32 %v1294, 0.5
        %v1538 = vmul.f32 %v1472, 0.5
        %v1539 = vmul.f32 %v1297, 0.5
        %v1540 = vmul.f32 %v1475, 0.5
        %v1541 = vmul.f32 %v1299, 0.5
        %v1542 = vmul.f32 %v1477, 0.5
        %v1543 = vtanh.pop %v1479
        %v1544 = vtanh.pop %v1480
        %v1545 = vtanh.pop %v1481
        %v1546 = vtanh.pop %v1482
        %v1547 = vtanh.pop %v1483
        %v1548 = vtanh.pop %v1484
        %v1549 = vtanh.pop %v1485
        %v1550 = vtanh.pop %v1486
        %v1551 = vtanh.pop %v1487
        %v1552 = vtanh.pop %v1488
        %v1553 = vtanh.pop %v1489
        %v1554 = vtanh.pop %v1490
        %v1555 = vtanh.pop %v1491
        %v1556 = vtanh.pop %v1492
        %v1557 = vtanh.pop %v1493
        %v1558 = vtanh.pop %v1494
        %v1559 = vtanh.pop %v1495
        %v1560 = vtanh.pop %v1496
        %v1561 = vtanh.pop %v1497
        %v1562 = vtanh.pop %v1498
        %v1563 = vtanh.pop %v1499
        %v1564 = vtanh.pop %v1500
        %v1565 = vtanh.pop %v1501
        %v1566 = vtanh.pop %v1502
        %v1567 = vtanh.pop %v1503
        %v1568 = vtanh.pop %v1504
        %v1569 = vtanh.pop %v1505
        %v1570 = vtanh.pop %v1506
        %v1571 = vtanh.pop %v1507
        %v1572 = vtanh.pop %v1508
        %v1573 = vtanh.pop %v1509
        %v1574 = vtanh.pop %v1510
        %v1575 = vtanh.pop %v1511
        %v1576 = vtanh.pop %v1512
        %v1577 = vtanh.pop %v1513
        %v1578 = vtanh.pop %v1514
        %v1579 = vtanh.pop %v1515
        %v1580 = vtanh.pop %v1516
        %v1581 = vtanh.pop %v1517
        %v1582 = vtanh.pop %v1518
        %v1583 = vtanh.pop %v1519
        %v1584 = vtanh.pop %v1520
        %v1585 = vtanh.pop %v1521
        %v1586 = vtanh.pop %v1522
        %v1587 = vtanh.pop %v1523
        %v1588 = vtanh.pop %v1524
        %v1589 = vtanh.pop %v1525
        %v1590 = vtanh.pop %v1526
        %v1591 = vtanh.pop %v1527
        %v1592 = vtanh.pop %v1528
        %v1593 = vtanh.pop %v1529
        %v1594 = vtanh.pop %v1530
        %v1595 = vtanh.pop %v1531
        %v1596 = vtanh.pop %v1532
        %v1597 = vtanh.pop %v1533
        %v1598 = vtanh.pop %v1534
        %v1599 = vtanh.pop %v1535
        %v1600 = vtanh.pop %v1536
        %v1601 = vtanh.pop %v1537
        %v1602 = vtanh.pop %v1538
        %v1603 = vtanh.pop %v1539
        %v1604 = vtanh.pop %v1540
        %v1605 = vtanh.pop %v1541
        %v1606 = vtanh.pop %v1542
        %v1607 = vmul.f32 %v1543, 0.5
        %v1608 = vmul.f32 %v1544, 0.5
        %v1609 = vmul.f32 %v1545, 0.5
        %v1610 = vmul.f32 %v1546, 0.5
        %v1611 = vmul.f32 %v1547, 0.5
        %v1612 = vmul.f32 %v1548, 0.5
        %v1613 = vmul.f32 %v1549, 0.5
        %v1614 = vmul.f32 %v1550, 0.5
        %v1615 = vmul.f32 %v1551, 0.5
        %v1616 = vmul.f32 %v1552, 0.5
        %v1617 = vmul.f32 %v1553, 0.5
        %v1618 = vmul.f32 %v1554, 0.5
        %v1619 = vmul.f32 %v1555, 0.5
        %v1620 = vmul.f32 %v1556, 0.5
        %v1621 = vmul.f32 %v1557, 0.5
        %v1622 = vmul.f32 %v1558, 0.5
        %v1623 = vmul.f32 %v1559, 0.5
        %v1624 = vmul.f32 %v1560, 0.5
        %v1625 = vmul.f32 %v1561, 0.5
        %v1626 = vmul.f32 %v1562, 0.5
        %v1627 = vmul.f32 %v1563, 0.5
        %v1628 = vmul.f32 %v1564, 0.5
        %v1629 = vmul.f32 %v1565, 0.5
        %v1630 = vmul.f32 %v1566, 0.5
        %v1631 = vmul.f32 %v1567, 0.5
        %v1632 = vmul.f32 %v1568, 0.5
        %v1633 = vmul.f32 %v1569, 0.5
        %v1634 = vmul.f32 %v1570, 0.5
        %v1635 = vmul.f32 %v1571, 0.5
        %v1636 = vmul.f32 %v1572, 0.5
        %v1637 = vmul.f32 %v1573, 0.5
        %v1638 = vmul.f32 %v1574, 0.5
        %v1639 = vmul.f32 %v1575, 0.5
        %v1640 = vmul.f32 %v1576, 0.5
        %v1641 = vmul.f32 %v1577, 0.5
        %v1642 = vmul.f32 %v1578, 0.5
        %v1643 = vmul.f32 %v1579, 0.5
        %v1644 = vmul.f32 %v1580, 0.5
        %v1645 = vmul.f32 %v1581, 0.5
        %v1646 = vmul.f32 %v1582, 0.5
        %v1647 = vmul.f32 %v1583, 0.5
        %v1648 = vmul.f32 %v1584, 0.5
        %v1649 = vmul.f32 %v1585, 0.5
        %v1650 = vmul.f32 %v1586, 0.5
        %v1651 = vmul.f32 %v1587, 0.5
        %v1652 = vmul.f32 %v1588, 0.5
        %v1653 = vmul.f32 %v1589, 0.5
        %v1654 = vmul.f32 %v1590, 0.5
        %v1655 = vmul.f32 %v1591, 0.5
        %v1656 = vmul.f32 %v1592, 0.5
        %v1657 = vmul.f32 %v1593, 0.5
        %v1658 = vmul.f32 %v1594, 0.5
        %v1659 = vmul.f32 %v1595, 0.5
        %v1660 = vmul.f32 %v1596, 0.5
        %v1661 = vmul.f32 %v1597, 0.5
        %v1662 = vmul.f32 %v1598, 0.5
        %v1663 = vmul.f32 %v1599, 0.5
        %v1664 = vmul.f32 %v1600, 0.5
        %v1665 = vmul.f32 %v1601, 0.5
        %v1666 = vmul.f32 %v1602, 0.5
        %v1667 = vmul.f32 %v1603, 0.5
        %v1668 = vmul.f32 %v1604, 0.5
        %v1669 = vmul.f32 %v1605, 0.5
        %v1670 = vmul.f32 %v1606, 0.5
        %v1671 = vadd.f32 %v1607, 0.5
        %v1672 = vadd.f32 %v1608, 0.5
        %v1673 = vadd.f32 %v1609, 0.5
        %v1674 = vadd.f32 %v1610, 0.5
        %v1675 = vadd.f32 %v1611, 0.5
        %v1676 = vadd.f32 %v1612, 0.5
        %v1677 = vadd.f32 %v1613, 0.5
        %v1678 = vadd.f32 %v1614, 0.5
        %v1679 = vadd.f32 %v1615, 0.5
        %v1680 = vadd.f32 %v1616, 0.5
        %v1681 = vadd.f32 %v1617, 0.5
        %v1682 = vadd.f32 %v1618, 0.5
        %v1683 = vadd.f32 %v1619, 0.5
        %v1684 = vadd.f32 %v1620, 0.5
        %v1685 = vadd.f32 %v1621, 0.5
        %v1686 = vadd.f32 %v1622, 0.5
        %v1687 = vadd.f32 %v1623, 0.5
        %v1688 = vadd.f32 %v1624, 0.5
        %v1689 = vadd.f32 %v1625, 0.5
        %v1690 = vadd.f32 %v1626, 0.5
        %v1691 = vadd.f32 %v1627, 0.5
        %v1692 = vadd.f32 %v1628, 0.5
        %v1693 = vadd.f32 %v1629, 0.5
        %v1694 = vadd.f32 %v1630, 0.5
        %v1695 = vadd.f32 %v1631, 0.5
        %v1696 = vadd.f32 %v1632, 0.5
        %v1697 = vadd.f32 %v1633, 0.5
        %v1698 = vadd.f32 %v1634, 0.5
        %v1699 = vadd.f32 %v1635, 0.5
        %v1700 = vadd.f32 %v1636, 0.5
        %v1701 = vadd.f32 %v1637, 0.5
        %v1702 = vadd.f32 %v1638, 0.5
        %v1703 = vadd.f32 %v1639, 0.5
        %v1704 = vadd.f32 %v1640, 0.5
        %v1705 = vadd.f32 %v1641, 0.5
        %v1706 = vadd.f32 %v1642, 0.5
        %v1707 = vadd.f32 %v1643, 0.5
        %v1708 = vadd.f32 %v1644, 0.5
        %v1709 = vadd.f32 %v1645, 0.5
        %v1710 = vadd.f32 %v1646, 0.5
        %v1711 = vadd.f32 %v1647, 0.5
        %v1712 = vadd.f32 %v1648, 0.5
        %v1713 = vadd.f32 %v1649, 0.5
        %v1714 = vadd.f32 %v1650, 0.5
        %v1715 = vadd.f32 %v1651, 0.5
        %v1716 = vadd.f32 %v1652, 0.5
        %v1717 = vadd.f32 %v1653, 0.5
        %v1718 = vadd.f32 %v1654, 0.5
        %v1719 = vadd.f32 %v1655, 0.5
        %v1720 = vadd.f32 %v1656, 0.5
        %v1721 = vadd.f32 %v1657, 0.5
        %v1722 = vadd.f32 %v1658, 0.5
        %v1723 = vadd.f32 %v1659, 0.5
        %v1724 = vadd.f32 %v1660, 0.5
        %v1725 = vadd.f32 %v1661, 0.5
        %v1726 = vadd.f32 %v1662, 0.5
        %v1727 = vadd.f32 %v1663, 0.5
        %v1728 = vadd.f32 %v1664, 0.5
        %v1729 = vadd.f32 %v1665, 0.5
        %v1730 = vadd.f32 %v1666, 0.5
        %v1731 = vadd.f32 %v1667, 0.5
        %v1732 = vadd.f32 %v1668, 0.5
        %v1733 = vadd.f32 %v1669, 0.5
        %v1734 = vadd.f32 %v1670, 0.5
        %v1735 = vmul.f32 %v1222, %v1671
        %v1736 = vmul.f32 %v1400, %v1672
        %v1737 = vmul.f32 %v1224, %v1673
        %v1738 = vmul.f32 %v1402, %v1674
        %v1739 = vmul.f32 %v1227, %v1675
        %v1740 = vmul.f32 %v1405, %v1676
        %v1741 = vmul.f32 %v1229, %v1677
        %v1742 = vmul.f32 %v1407, %v1678
        %v1743 = vmul.f32 %v1232, %v1679
        %v1744 = vmul.f32 %v1410, %v1680
        %v1745 = vmul.f32 %v1234, %v1681
        %v1746 = vmul.f32 %v1412, %v1682
        %v1747 = vmul.f32 %v1237, %v1683
        %v1748 = vmul.f32 %v1415, %v1684
        %v1749 = vmul.f32 %v1239, %v1685
        %v1750 = vmul.f32 %v1417, %v1686
        %v1751 = vmul.f32 %v1242, %v1687
        %v1752 = vmul.f32 %v1420, %v1688
        %v1753 = vmul.f32 %v1244, %v1689
        %v1754 = vmul.f32 %v1422, %v1690
        %v1755 = vmul.f32 %v1247, %v1691
        %v1756 = vmul.f32 %v1425, %v1692
        %v1757 = vmul.f32 %v1249, %v1693
        %v1758 = vmul.f32 %v1427, %v1694
        %v1759 = vmul.f32 %v1252, %v1695
        %v1760 = vmul.f32 %v1430, %v1696
        %v1761 = vmul.f32 %v1254, %v1697
        %v1762 = vmul.f32 %v1432, %v1698
        %v1763 = vmul.f32 %v1257, %v1699
        %v1764 = vmul.f32 %v1435, %v1700
        %v1765 = vmul.f32 %v1259, %v1701
        %v1766 = vmul.f32 %v1437, %v1702
        %v1767 = vmul.f32 %v1262, %v1703
        %v1768 = vmul.f32 %v1440, %v1704
        %v1769 = vmul.f32 %v1264, %v1705
        %v1770 = vmul.f32 %v1442, %v1706
        %v1771 = vmul.f32 %v1267, %v1707
        %v1772 = vmul.f32 %v1445, %v1708
        %v1773 = vmul.f32 %v1269, %v1709
        %v1774 = vmul.f32 %v1447, %v1710
        %v1775 = vmul.f32 %v1272, %v1711
        %v1776 = vmul.f32 %v1450, %v1712
        %v1777 = vmul.f32 %v1274, %v1713
        %v1778 = vmul.f32 %v1452, %v1714
        %v1779 = vmul.f32 %v1277, %v1715
        %v1780 = vmul.f32 %v1455, %v1716
        %v1781 = vmul.f32 %v1279, %v1717
        %v1782 = vmul.f32 %v1457, %v1718
        %v1783 = vmul.f32 %v1282, %v1719
        %v1784 = vmul.f32 %v1460, %v1720
        %v1785 = vmul.f32 %v1284, %v1721
        %v1786 = vmul.f32 %v1462, %v1722
        %v1787 = vmul.f32 %v1287, %v1723
        %v1788 = vmul.f32 %v1465, %v1724
        %v1789 = vmul.f32 %v1289, %v1725
        %v1790 = vmul.f32 %v1467, %v1726
        %v1791 = vmul.f32 %v1292, %v1727
        %v1792 = vmul.f32 %v1470, %v1728
        %v1793 = vmul.f32 %v1294, %v1729
        %v1794 = vmul.f32 %v1472, %v1730
        %v1795 = vmul.f32 %v1297, %v1731
        %v1796 = vmul.f32 %v1475, %v1732
        %v1797 = vmul.f32 %v1299, %v1733
        %v1798 = vmul.f32 %v1477, %v1734
        %v1799 = vpack.c.bf16 %v1737, %v1735
        %v1800 = vpack.c.bf16 %v1738, %v1736
        %v1801 = vpack.c.bf16 %v1741, %v1739
        %v1802 = vpack.c.bf16 %v1742, %v1740
        %v1803 = vpack.c.bf16 %v1745, %v1743
        %v1804 = vpack.c.bf16 %v1746, %v1744
        %v1805 = vpack.c.bf16 %v1749, %v1747
        %v1806 = vpack.c.bf16 %v1750, %v1748
        %v1807 = vpack.c.bf16 %v1753, %v1751
        %v1808 = vpack.c.bf16 %v1754, %v1752
        %v1809 = vpack.c.bf16 %v1757, %v1755
        %v1810 = vpack.c.bf16 %v1758, %v1756
        %v1811 = vpack.c.bf16 %v1761, %v1759
        %v1812 = vpack.c.bf16 %v1762, %v1760
        %v1813 = vpack.c.bf16 %v1765, %v1763
        %v1814 = vpack.c.bf16 %v1766, %v1764
        %v1815 = vpack.c.bf16 %v1769, %v1767
        %v1816 = vpack.c.bf16 %v1770, %v1768
        %v1817 = vpack.c.bf16 %v1773, %v1771
        %v1818 = vpack.c.bf16 %v1774, %v1772
        %v1819 = vpack.c.bf16 %v1777, %v1775
        %v1820 = vpack.c.bf16 %v1778, %v1776
        %v1821 = vpack.c.bf16 %v1781, %v1779
        %v1822 = vpack.c.bf16 %v1782, %v1780
        %v1823 = vpack.c.bf16 %v1785, %v1783
        %v1824 = vpack.c.bf16 %v1786, %v1784
        %v1825 = vpack.c.bf16 %v1789, %v1787
        %v1826 = vpack.c.bf16 %v1790, %v1788
        %v1827 = vpack.c.bf16 %v1793, %v1791
        %v1828 = vpack.c.bf16 %v1794, %v1792
        %v1829 = vpack.c.bf16 %v1797, %v1795
        %v1830 = vpack.c.bf16 %v1798, %v1796
        %s1831 = scalar_lea.vmem [#allocation2], 256
        %v1832 = vld [vmem:[%s1831] sm:$0xff]
        %v1833 = vld [vmem:[%s1831 + $0x8] sm:$0xff]
        %v1834 = vld [vmem:[%s1831 + $0x10] sm:$0xff]
        %v1835 = vld [vmem:[%s1831 + $0x18] sm:$0xff]
        %v1836 = vld [vmem:[%s1831 + $0x20] sm:$0xff]
        %v1837 = vld [vmem:[%s1831 + $0x28] sm:$0xff]
        %v1838 = vld [vmem:[%s1831 + $0x30] sm:$0xff]
        %v1839 = vld [vmem:[%s1831 + $0x38] sm:$0xff]
        %v1840 = vld [vmem:[%s1831 + $0x40] sm:$0xff]
        %v1841 = vld [vmem:[%s1831 + $0x48] sm:$0xff]
        %v1842 = vld [vmem:[%s1831 + $0x50] sm:$0xff]
        %v1843 = vld [vmem:[%s1831 + $0x58] sm:$0xff]
        %v1844 = vld [vmem:[%s1831 + $0x60] sm:$0xff]
        %v1845 = vld [vmem:[%s1831 + $0x68] sm:$0xff]
        %v1846 = vld [vmem:[%s1831 + $0x70] sm:$0xff]
        %v1847 = vld [vmem:[%s1831 + $0x78] sm:$0xff]
        %v1848 = vld [vmem:[%s1831 + $0x80] sm:$0xff]
        %v1849 = vld [vmem:[%s1831 + $0x88] sm:$0xff]
        %v1850 = vld [vmem:[%s1831 + $0x90] sm:$0xff]
        %v1851 = vld [vmem:[%s1831 + $0x98] sm:$0xff]
        %v1852 = vld [vmem:[%s1831 + $0xa0] sm:$0xff]
        %v1853 = vld [vmem:[%s1831 + $0xa8] sm:$0xff]
        %v1854 = vld [vmem:[%s1831 + $0xb0] sm:$0xff]
        %v1855 = vld [vmem:[%s1831 + $0xb8] sm:$0xff]
        %v1856 = vld [vmem:[%s1831 + $0xc0] sm:$0xff]
        %v1857 = vld [vmem:[%s1831 + $0xc8] sm:$0xff]
        %v1858 = vld [vmem:[%s1831 + $0xd0] sm:$0xff]
        %v1859 = vld [vmem:[%s1831 + $0xd8] sm:$0xff]
        %v1860 = vld [vmem:[%s1831 + $0xe0] sm:$0xff]
        %v1861 = vld [vmem:[%s1831 + $0xe8] sm:$0xff]
        %v1862 = vld [vmem:[%s1831 + $0xf0] sm:$0xff]
        %v1863 = vld [vmem:[%s1831 + $0xf8] sm:$0xff]
        %s1864 = scalar_lea.vmem %s4, 2
        %v1865 = vld [vmem:[%s1864] ss:$8 sm:$0x3]
        %v1867 = vperm.slane %v1865, 0
        %v1868 = vperm.slane %v1865, 1
        %v1903 = vunpack.c.l.b16 %v1832
        %v1904 = vunpack.c.h.b16 %v1832
        %v1905 = vunpack.c.l.b16 %v1833
        %v1906 = vunpack.c.h.b16 %v1833
        %v1907 = vunpack.c.l.b16 %v1834
        %v1908 = vunpack.c.h.b16 %v1834
        %v1909 = vunpack.c.l.b16 %v1835
        %v1910 = vunpack.c.h.b16 %v1835
        %v1911 = vunpack.c.l.b16 %v1836
        %v1912 = vunpack.c.h.b16 %v1836
        %v1913 = vunpack.c.l.b16 %v1837
        %v1914 = vunpack.c.h.b16 %v1837
        %v1915 = vunpack.c.l.b16 %v1838
        %v1916 = vunpack.c.h.b16 %v1838
        %v1917 = vunpack.c.l.b16 %v1839
        %v1918 = vunpack.c.h.b16 %v1839
        %v1919 = vunpack.c.l.b16 %v1840
        %v1920 = vunpack.c.h.b16 %v1840
        %v1921 = vunpack.c.l.b16 %v1841
        %v1922 = vunpack.c.h.b16 %v1841
        %v1923 = vunpack.c.l.b16 %v1842
        %v1924 = vunpack.c.h.b16 %v1842
        %v1925 = vunpack.c.l.b16 %v1843
        %v1926 = vunpack.c.h.b16 %v1843
        %v1927 = vunpack.c.l.b16 %v1844
        %v1928 = vunpack.c.h.b16 %v1844
        %v1929 = vunpack.c.l.b16 %v1845
        %v1930 = vunpack.c.h.b16 %v1845
        %v1931 = vunpack.c.l.b16 %v1846
        %v1932 = vunpack.c.h.b16 %v1846
        %v1933 = vunpack.c.l.b16 %v1847
        %v1934 = vunpack.c.h.b16 %v1847
        %v1935 = vunpack.c.l.b16 %v1848
        %v1936 = vunpack.c.h.b16 %v1848
        %v1937 = vunpack.c.l.b16 %v1849
        %v1938 = vunpack.c.h.b16 %v1849
        %v1939 = vunpack.c.l.b16 %v1850
        %v1940 = vunpack.c.h.b16 %v1850
        %v1941 = vunpack.c.l.b16 %v1851
        %v1942 = vunpack.c.h.b16 %v1851
        %v1943 = vunpack.c.l.b16 %v1852
        %v1944 = vunpack.c.h.b16 %v1852
        %v1945 = vunpack.c.l.b16 %v1853
        %v1946 = vunpack.c.h.b16 %v1853
        %v1947 = vunpack.c.l.b16 %v1854
        %v1948 = vunpack.c.h.b16 %v1854
        %v1949 = vunpack.c.l.b16 %v1855
        %v1950 = vunpack.c.h.b16 %v1855
        %v1951 = vunpack.c.l.b16 %v1856
        %v1952 = vunpack.c.h.b16 %v1856
        %v1953 = vunpack.c.l.b16 %v1857
        %v1954 = vunpack.c.h.b16 %v1857
        %v1955 = vunpack.c.l.b16 %v1858
        %v1956 = vunpack.c.h.b16 %v1858
        %v1957 = vunpack.c.l.b16 %v1859
        %v1958 = vunpack.c.h.b16 %v1859
        %v1959 = vunpack.c.l.b16 %v1860
        %v1960 = vunpack.c.h.b16 %v1860
        %v1961 = vunpack.c.l.b16 %v1861
        %v1962 = vunpack.c.h.b16 %v1861
        %v1963 = vunpack.c.l.b16 %v1862
        %v1964 = vunpack.c.h.b16 %v1862
        %v1965 = vunpack.c.l.b16 %v1863
        %v1966 = vunpack.c.h.b16 %v1863
        %v1967 = vpack.c.b16 %v1905, %v1903
        %v1968 = vpack.c.b16 %v1906, %v1904
        %v1969 = vpack.c.b16 %v1909, %v1907
        %v1970 = vpack.c.b16 %v1910, %v1908
        %v1971 = vpack.c.b16 %v1913, %v1911
        %v1972 = vpack.c.b16 %v1914, %v1912
        %v1973 = vpack.c.b16 %v1917, %v1915
        %v1974 = vpack.c.b16 %v1918, %v1916
        %v1975 = vpack.c.b16 %v1921, %v1919
        %v1976 = vpack.c.b16 %v1922, %v1920
        %v1977 = vpack.c.b16 %v1925, %v1923
        %v1978 = vpack.c.b16 %v1926, %v1924
        %v1979 = vpack.c.b16 %v1929, %v1927
        %v1980 = vpack.c.b16 %v1930, %v1928
        %v1981 = vpack.c.b16 %v1933, %v1931
        %v1982 = vpack.c.b16 %v1934, %v1932
        %v1983 = vpack.c.b16 %v1937, %v1935
        %v1984 = vpack.c.b16 %v1938, %v1936
        %v1985 = vpack.c.b16 %v1941, %v1939
        %v1986 = vpack.c.b16 %v1942, %v1940
        %v1987 = vpack.c.b16 %v1945, %v1943
        %v1988 = vpack.c.b16 %v1946, %v1944
        %v1989 = vpack.c.b16 %v1949, %v1947
        %v1990 = vpack.c.b16 %v1950, %v1948
        %v1991 = vpack.c.b16 %v1953, %v1951
        %v1992 = vpack.c.b16 %v1954, %v1952
        %v1993 = vpack.c.b16 %v1957, %v1955
        %v1994 = vpack.c.b16 %v1958, %v1956
        %v1995 = vpack.c.b16 %v1961, %v1959
        %v1996 = vpack.c.b16 %v1962, %v1960
        %v1997 = vpack.c.b16 %v1965, %v1963
        %v1998 = vpack.c.b16 %v1966, %v1964
        %2031 = vmatpush.bf16.msra.mxu0 %v1981
        %2032 = vmatpush.bf16.msra.mxu0 %v1979
        %2033 = vmatpush.bf16.msra.mxu0 %v1977
        %2034 = vmatpush.bf16.msra.mxu0 %v1975
        %2035 = vmatpush.bf16.msra.mxu0 %v1973
        %2036 = vmatpush.bf16.msra.mxu0 %v1971
        %2037 = vmatpush.bf16.msra.mxu0 %v1969
        %2038 = vmatpush.bf16.msra.mxu0 %v1967
        %2039 = vmatmul.bf16.gmra.mxu0 %v1799
        %v2040 = vpop.f32.mrf.mxu0
        %v2041 = vadd.f32 %v1867, %v2040
        %v2042 = vpop.f32.mrf.mxu0
        %v2043 = vadd.f32 %v1867, %v2042
        %2044 = vmatmul.bf16.gmra.mxu0 %v1801
        %v2045 = vpop.f32.mrf.mxu0
        %v2046 = vadd.f32 %v1867, %v2045
        %v2047 = vpop.f32.mrf.mxu0
        %v2048 = vadd.f32 %v1867, %v2047
        %2049 = vmatmul.bf16.gmra.mxu0 %v1803
        %v2050 = vpop.f32.mrf.mxu0
        %v2051 = vadd.f32 %v1867, %v2050
        %v2052 = vpop.f32.mrf.mxu0
        %v2053 = vadd.f32 %v1867, %v2052
        %2054 = vmatmul.bf16.gmra.mxu0 %v1805
        %v2055 = vpop.f32.mrf.mxu0
        %v2056 = vadd.f32 %v1867, %v2055
        %v2057 = vpop.f32.mrf.mxu0
        %v2058 = vadd.f32 %v1867, %v2057
        %2059 = vmatmul.bf16.gmra.mxu0 %v1807
        %v2060 = vpop.f32.mrf.mxu0
        %v2061 = vadd.f32 %v1867, %v2060
        %v2062 = vpop.f32.mrf.mxu0
        %v2063 = vadd.f32 %v1867, %v2062
        %2064 = vmatmul.bf16.gmra.mxu0 %v1809
        %v2065 = vpop.f32.mrf.mxu0
        %v2066 = vadd.f32 %v1867, %v2065
        %v2067 = vpop.f32.mrf.mxu0
        %v2068 = vadd.f32 %v1867, %v2067
        %2069 = vmatmul.bf16.gmra.mxu0 %v1811
        %v2070 = vpop.f32.mrf.mxu0
        %v2071 = vadd.f32 %v1867, %v2070
        %v2072 = vpop.f32.mrf.mxu0
        %v2073 = vadd.f32 %v1867, %v2072
        %2074 = vmatmul.bf16.gmra.mxu0 %v1813
        %v2075 = vpop.f32.mrf.mxu0
        %v2076 = vadd.f32 %v1867, %v2075
        %v2077 = vpop.f32.mrf.mxu0
        %v2078 = vadd.f32 %v1867, %v2077
        %2079 = vmatmul.bf16.gmra.mxu0 %v1815
        %v2080 = vpop.f32.mrf.mxu0
        %v2081 = vadd.f32 %v1867, %v2080
        %v2082 = vpop.f32.mrf.mxu0
        %v2083 = vadd.f32 %v1867, %v2082
        %2084 = vmatmul.bf16.gmra.mxu0 %v1817
        %v2085 = vpop.f32.mrf.mxu0
        %v2086 = vadd.f32 %v1867, %v2085
        %v2087 = vpop.f32.mrf.mxu0
        %v2088 = vadd.f32 %v1867, %v2087
        %2089 = vmatmul.bf16.gmra.mxu0 %v1819
        %v2090 = vpop.f32.mrf.mxu0
        %v2091 = vadd.f32 %v1867, %v2090
        %v2092 = vpop.f32.mrf.mxu0
        %v2093 = vadd.f32 %v1867, %v2092
        %2094 = vmatmul.bf16.gmra.mxu0 %v1821
        %v2095 = vpop.f32.mrf.mxu0
        %v2096 = vadd.f32 %v1867, %v2095
        %v2097 = vpop.f32.mrf.mxu0
        %v2098 = vadd.f32 %v1867, %v2097
        %2099 = vmatmul.bf16.gmra.mxu0 %v1823
        %v2100 = vpop.f32.mrf.mxu0
        %v2101 = vadd.f32 %v1867, %v2100
        %v2102 = vpop.f32.mrf.mxu0
        %v2103 = vadd.f32 %v1867, %v2102
        %2104 = vmatmul.bf16.gmra.mxu0 %v1825
        %v2105 = vpop.f32.mrf.mxu0
        %v2106 = vadd.f32 %v1867, %v2105
        %v2107 = vpop.f32.mrf.mxu0
        %v2108 = vadd.f32 %v1867, %v2107
        %2109 = vmatmul.bf16.gmra.mxu0 %v1827
        %v2110 = vpop.f32.mrf.mxu0
        %v2111 = vadd.f32 %v1867, %v2110
        %v2112 = vpop.f32.mrf.mxu0
        %v2113 = vadd.f32 %v1867, %v2112
        %2114 = vmatmul.bf16.gmra.mxu0 %v1829
        %v2115 = vpop.f32.mrf.mxu0
        %v2116 = vadd.f32 %v1867, %v2115
        %v2117 = vpop.f32.mrf.mxu0
        %v2118 = vadd.f32 %v1867, %v2117
        %2119 = vdwg.mxu0
        %2120 = vmatpush.bf16.msra.mxu0 %v1997
        %2121 = vmatpush.bf16.msra.mxu0 %v1995
        %2122 = vmatpush.bf16.msra.mxu0 %v1993
        %2123 = vmatpush.bf16.msra.mxu0 %v1991
        %2124 = vmatpush.bf16.msra.mxu0 %v1989
        %2125 = vmatpush.bf16.msra.mxu0 %v1987
        %2126 = vmatpush.bf16.msra.mxu0 %v1985
        %2127 = vmatpush.bf16.msra.mxu0 %v1983
        %2128 = vmatmul.bf16.gmra.mxu0 %v1800
        %v2129 = vpop.f32.mrf.mxu0
        %v2130 = vadd.f32 %v2041, %v2129
        %v2131 = vpop.f32.mrf.mxu0
        %v2132 = vadd.f32 %v2043, %v2131
        %2133 = vmatmul.bf16.gmra.mxu0 %v1802
        %v2134 = vpop.f32.mrf.mxu0
        %v2135 = vadd.f32 %v2046, %v2134
        %v2136 = vpop.f32.mrf.mxu0
        %v2137 = vadd.f32 %v2048, %v2136
        %2138 = vmatmul.bf16.gmra.mxu0 %v1804
        %v2139 = vpop.f32.mrf.mxu0
        %v2140 = vadd.f32 %v2051, %v2139
        %v2141 = vpop.f32.mrf.mxu0
        %v2142 = vadd.f32 %v2053, %v2141
        %2143 = vmatmul.bf16.gmra.mxu0 %v1806
        %v2144 = vpop.f32.mrf.mxu0
        %v2145 = vadd.f32 %v2056, %v2144
        %v2146 = vpop.f32.mrf.mxu0
        %v2147 = vadd.f32 %v2058, %v2146
        %2148 = vmatmul.bf16.gmra.mxu0 %v1808
        %v2149 = vpop.f32.mrf.mxu0
        %v2150 = vadd.f32 %v2061, %v2149
        %v2151 = vpop.f32.mrf.mxu0
        %v2152 = vadd.f32 %v2063, %v2151
        %2153 = vmatmul.bf16.gmra.mxu0 %v1810
        %v2154 = vpop.f32.mrf.mxu0
        %v2155 = vadd.f32 %v2066, %v2154
        %v2156 = vpop.f32.mrf.mxu0
        %v2157 = vadd.f32 %v2068, %v2156
        %2158 = vmatmul.bf16.gmra.mxu0 %v1812
        %v2159 = vpop.f32.mrf.mxu0
        %v2160 = vadd.f32 %v2071, %v2159
        %v2161 = vpop.f32.mrf.mxu0
        %v2162 = vadd.f32 %v2073, %v2161
        %2163 = vmatmul.bf16.gmra.mxu0 %v1814
        %v2164 = vpop.f32.mrf.mxu0
        %v2165 = vadd.f32 %v2076, %v2164
        %v2166 = vpop.f32.mrf.mxu0
        %v2167 = vadd.f32 %v2078, %v2166
        %2168 = vmatmul.bf16.gmra.mxu0 %v1816
        %v2169 = vpop.f32.mrf.mxu0
        %v2170 = vadd.f32 %v2081, %v2169
        %v2171 = vpop.f32.mrf.mxu0
        %v2172 = vadd.f32 %v2083, %v2171
        %2173 = vmatmul.bf16.gmra.mxu0 %v1818
        %v2174 = vpop.f32.mrf.mxu0
        %v2175 = vadd.f32 %v2086, %v2174
        %v2176 = vpop.f32.mrf.mxu0
        %v2177 = vadd.f32 %v2088, %v2176
        %2178 = vmatmul.bf16.gmra.mxu0 %v1820
        %v2179 = vpop.f32.mrf.mxu0
        %v2180 = vadd.f32 %v2091, %v2179
        %v2181 = vpop.f32.mrf.mxu0
        %v2182 = vadd.f32 %v2093, %v2181
        %2183 = vmatmul.bf16.gmra.mxu0 %v1822
        %v2184 = vpop.f32.mrf.mxu0
        %v2185 = vadd.f32 %v2096, %v2184
        %v2186 = vpop.f32.mrf.mxu0
        %v2187 = vadd.f32 %v2098, %v2186
        %2188 = vmatmul.bf16.gmra.mxu0 %v1824
        %v2189 = vpop.f32.mrf.mxu0
        %v2190 = vadd.f32 %v2101, %v2189
        %v2191 = vpop.f32.mrf.mxu0
        %v2192 = vadd.f32 %v2103, %v2191
        %2193 = vmatmul.bf16.gmra.mxu0 %v1826
        %v2194 = vpop.f32.mrf.mxu0
        %v2195 = vadd.f32 %v2106, %v2194
        %v2196 = vpop.f32.mrf.mxu0
        %v2197 = vadd.f32 %v2108, %v2196
        %2198 = vmatmul.bf16.gmra.mxu0 %v1828
        %v2199 = vpop.f32.mrf.mxu0
        %v2200 = vadd.f32 %v2111, %v2199
        %v2201 = vpop.f32.mrf.mxu0
        %v2202 = vadd.f32 %v2113, %v2201
        %2203 = vmatmul.bf16.gmra.mxu0 %v1830
        %v2204 = vpop.f32.mrf.mxu0
        %v2205 = vadd.f32 %v2116, %v2204
        %v2206 = vpop.f32.mrf.mxu0
        %v2207 = vadd.f32 %v2118, %v2206
        %2208 = vdwg.mxu0
        %2209 = vmatpush.bf16.msra.mxu0 %v1982
        %2210 = vmatpush.bf16.msra.mxu0 %v1980
        %2211 = vmatpush.bf16.msra.mxu0 %v1978
        %2212 = vmatpush.bf16.msra.mxu0 %v1976
        %2213 = vmatpush.bf16.msra.mxu0 %v1974
        %2214 = vmatpush.bf16.msra.mxu0 %v1972
        %2215 = vmatpush.bf16.msra.mxu0 %v1970
        %2216 = vmatpush.bf16.msra.mxu0 %v1968
        %2217 = vmatmul.bf16.gmra.mxu0 %v1799
        %v2218 = vpop.f32.mrf.mxu0
        %v2219 = vadd.f32 %v1868, %v2218
        %v2220 = vpop.f32.mrf.mxu0
        %v2221 = vadd.f32 %v1868, %v2220
        %2222 = vmatmul.bf16.gmra.mxu0 %v1801
        %v2223 = vpop.f32.mrf.mxu0
        %v2224 = vadd.f32 %v1868, %v2223
        %v2225 = vpop.f32.mrf.mxu0
        %v2226 = vadd.f32 %v1868, %v2225
        %2227 = vmatmul.bf16.gmra.mxu0 %v1803
        %v2228 = vpop.f32.mrf.mxu0
        %v2229 = vadd.f32 %v1868, %v2228
        %v2230 = vpop.f32.mrf.mxu0
        %v2231 = vadd.f32 %v1868, %v2230
        %2232 = vmatmul.bf16.gmra.mxu0 %v1805
        %v2233 = vpop.f32.mrf.mxu0
        %v2234 = vadd.f32 %v1868, %v2233
        %v2235 = vpop.f32.mrf.mxu0
        %v2236 = vadd.f32 %v1868, %v2235
        %2237 = vmatmul.bf16.gmra.mxu0 %v1807
        %v2238 = vpop.f32.mrf.mxu0
        %v2239 = vadd.f32 %v1868, %v2238
        %v2240 = vpop.f32.mrf.mxu0
        %v2241 = vadd.f32 %v1868, %v2240
        %2242 = vmatmul.bf16.gmra.mxu0 %v1809
        %v2243 = vpop.f32.mrf.mxu0
        %v2244 = vadd.f32 %v1868, %v2243
        %v2245 = vpop.f32.mrf.mxu0
        %v2246 = vadd.f32 %v1868, %v2245
        %2247 = vmatmul.bf16.gmra.mxu0 %v1811
        %v2248 = vpop.f32.mrf.mxu0
        %v2249 = vadd.f32 %v1868, %v2248
        %v2250 = vpop.f32.mrf.mxu0
        %v2251 = vadd.f32 %v1868, %v2250
        %2252 = vmatmul.bf16.gmra.mxu0 %v1813
        %v2253 = vpop.f32.mrf.mxu0
        %v2254 = vadd.f32 %v1868, %v2253
        %v2255 = vpop.f32.mrf.mxu0
        %v2256 = vadd.f32 %v1868, %v2255
        %2257 = vmatmul.bf16.gmra.mxu0 %v1815
        %v2258 = vpop.f32.mrf.mxu0
        %v2259 = vadd.f32 %v1868, %v2258
        %v2260 = vpop.f32.mrf.mxu0
        %v2261 = vadd.f32 %v1868, %v2260
        %2262 = vmatmul.bf16.gmra.mxu0 %v1817
        %v2263 = vpop.f32.mrf.mxu0
        %v2264 = vadd.f32 %v1868, %v2263
        %v2265 = vpop.f32.mrf.mxu0
        %v2266 = vadd.f32 %v1868, %v2265
        %2267 = vmatmul.bf16.gmra.mxu0 %v1819
        %v2268 = vpop.f32.mrf.mxu0
        %v2269 = vadd.f32 %v1868, %v2268
        %v2270 = vpop.f32.mrf.mxu0
        %v2271 = vadd.f32 %v1868, %v2270
        %2272 = vmatmul.bf16.gmra.mxu0 %v1821
        %v2273 = vpop.f32.mrf.mxu0
        %v2274 = vadd.f32 %v1868, %v2273
        %v2275 = vpop.f32.mrf.mxu0
        %v2276 = vadd.f32 %v1868, %v2275
        %2277 = vmatmul.bf16.gmra.mxu0 %v1823
        %v2278 = vpop.f32.mrf.mxu0
        %v2279 = vadd.f32 %v1868, %v2278
        %v2280 = vpop.f32.mrf.mxu0
        %v2281 = vadd.f32 %v1868, %v2280
        %2282 = vmatmul.bf16.gmra.mxu0 %v1825
        %v2283 = vpop.f32.mrf.mxu0
        %v2284 = vadd.f32 %v1868, %v2283
        %v2285 = vpop.f32.mrf.mxu0
        %v2286 = vadd.f32 %v1868, %v2285
        %2287 = vmatmul.bf16.gmra.mxu0 %v1827
        %v2288 = vpop.f32.mrf.mxu0
        %v2289 = vadd.f32 %v1868, %v2288
        %v2290 = vpop.f32.mrf.mxu0
        %v2291 = vadd.f32 %v1868, %v2290
        %2292 = vmatmul.bf16.gmra.mxu0 %v1829
        %v2293 = vpop.f32.mrf.mxu0
        %v2294 = vadd.f32 %v1868, %v2293
        %v2295 = vpop.f32.mrf.mxu0
        %v2296 = vadd.f32 %v1868, %v2295
        %2297 = vdwg.mxu0
        %2298 = vmatpush.bf16.msra.mxu0 %v1998
        %2299 = vmatpush.bf16.msra.mxu0 %v1996
        %2300 = vmatpush.bf16.msra.mxu0 %v1994
        %2301 = vmatpush.bf16.msra.mxu0 %v1992
        %2302 = vmatpush.bf16.msra.mxu0 %v1990
        %2303 = vmatpush.bf16.msra.mxu0 %v1988
        %2304 = vmatpush.bf16.msra.mxu0 %v1986
        %2305 = vmatpush.bf16.msra.mxu0 %v1984
        %2306 = vmatmul.bf16.gmra.mxu0 %v1800
        %v2307 = vpop.f32.mrf.mxu0
        %v2308 = vadd.f32 %v2219, %v2307
        %v2309 = vpop.f32.mrf.mxu0
        %v2310 = vadd.f32 %v2221, %v2309
        %2311 = vmatmul.bf16.gmra.mxu0 %v1802
        %v2312 = vpop.f32.mrf.mxu0
        %v2313 = vadd.f32 %v2224, %v2312
        %v2314 = vpop.f32.mrf.mxu0
        %v2315 = vadd.f32 %v2226, %v2314
        %2316 = vmatmul.bf16.gmra.mxu0 %v1804
        %v2317 = vpop.f32.mrf.mxu0
        %v2318 = vadd.f32 %v2229, %v2317
        %v2319 = vpop.f32.mrf.mxu0
        %v2320 = vadd.f32 %v2231, %v2319
        %2321 = vmatmul.bf16.gmra.mxu0 %v1806
        %v2322 = vpop.f32.mrf.mxu0
        %v2323 = vadd.f32 %v2234, %v2322
        %v2324 = vpop.f32.mrf.mxu0
        %v2325 = vadd.f32 %v2236, %v2324
        %2326 = vmatmul.bf16.gmra.mxu0 %v1808
        %v2327 = vpop.f32.mrf.mxu0
        %v2328 = vadd.f32 %v2239, %v2327
        %v2329 = vpop.f32.mrf.mxu0
        %v2330 = vadd.f32 %v2241, %v2329
        %2331 = vmatmul.bf16.gmra.mxu0 %v1810
        %v2332 = vpop.f32.mrf.mxu0
        %v2333 = vadd.f32 %v2244, %v2332
        %v2334 = vpop.f32.mrf.mxu0
        %v2335 = vadd.f32 %v2246, %v2334
        %2336 = vmatmul.bf16.gmra.mxu0 %v1812
        %v2337 = vpop.f32.mrf.mxu0
        %v2338 = vadd.f32 %v2249, %v2337
        %v2339 = vpop.f32.mrf.mxu0
        %v2340 = vadd.f32 %v2251, %v2339
        %2341 = vmatmul.bf16.gmra.mxu0 %v1814
        %v2342 = vpop.f32.mrf.mxu0
        %v2343 = vadd.f32 %v2254, %v2342
        %v2344 = vpop.f32.mrf.mxu0
        %v2345 = vadd.f32 %v2256, %v2344
        %2346 = vmatmul.bf16.gmra.mxu0 %v1816
        %v2347 = vpop.f32.mrf.mxu0
        %v2348 = vadd.f32 %v2259, %v2347
        %v2349 = vpop.f32.mrf.mxu0
        %v2350 = vadd.f32 %v2261, %v2349
        %2351 = vmatmul.bf16.gmra.mxu0 %v1818
        %v2352 = vpop.f32.mrf.mxu0
        %v2353 = vadd.f32 %v2264, %v2352
        %v2354 = vpop.f32.mrf.mxu0
        %v2355 = vadd.f32 %v2266, %v2354
        %2356 = vmatmul.bf16.gmra.mxu0 %v1820
        %v2357 = vpop.f32.mrf.mxu0
        %v2358 = vadd.f32 %v2269, %v2357
        %v2359 = vpop.f32.mrf.mxu0
        %v2360 = vadd.f32 %v2271, %v2359
        %2361 = vmatmul.bf16.gmra.mxu0 %v1822
        %v2362 = vpop.f32.mrf.mxu0
        %v2363 = vadd.f32 %v2274, %v2362
        %v2364 = vpop.f32.mrf.mxu0
        %v2365 = vadd.f32 %v2276, %v2364
        %2366 = vmatmul.bf16.gmra.mxu0 %v1824
        %v2367 = vpop.f32.mrf.mxu0
        %v2368 = vadd.f32 %v2279, %v2367
        %v2369 = vpop.f32.mrf.mxu0
        %v2370 = vadd.f32 %v2281, %v2369
        %2371 = vmatmul.bf16.gmra.mxu0 %v1826
        %v2372 = vpop.f32.mrf.mxu0
        %v2373 = vadd.f32 %v2284, %v2372
        %v2374 = vpop.f32.mrf.mxu0
        %v2375 = vadd.f32 %v2286, %v2374
        %2376 = vmatmul.bf16.gmra.mxu0 %v1828
        %v2377 = vpop.f32.mrf.mxu0
        %v2378 = vadd.f32 %v2289, %v2377
        %v2379 = vpop.f32.mrf.mxu0
        %v2380 = vadd.f32 %v2291, %v2379
        %2381 = vmatmul.bf16.gmra.mxu0 %v1830
        %v2382 = vpop.f32.mrf.mxu0
        %v2383 = vadd.f32 %v2294, %v2382
        %v2384 = vpop.f32.mrf.mxu0
        %v2385 = vadd.f32 %v2296, %v2384
        %2386 = vdwg.mxu0
        %v2387 = vmul.f32 %v2130, 0.5
        %v2388 = vmul.f32 %v2308, 0.5
        %v2389 = vmul.f32 %v2132, 0.5
        %v2390 = vmul.f32 %v2310, 0.5
        %v2391 = vmul.f32 %v2135, 0.5
        %v2392 = vmul.f32 %v2313, 0.5
        %v2393 = vmul.f32 %v2137, 0.5
        %v2394 = vmul.f32 %v2315, 0.5
        %v2395 = vmul.f32 %v2140, 0.5
        %v2396 = vmul.f32 %v2318, 0.5
        %v2397 = vmul.f32 %v2142, 0.5
        %v2398 = vmul.f32 %v2320, 0.5
        %v2399 = vmul.f32 %v2145, 0.5
        %v2400 = vmul.f32 %v2323, 0.5
        %v2401 = vmul.f32 %v2147, 0.5
        %v2402 = vmul.f32 %v2325, 0.5
        %v2403 = vmul.f32 %v2150, 0.5
        %v2404 = vmul.f32 %v2328, 0.5
        %v2405 = vmul.f32 %v2152, 0.5
        %v2406 = vmul.f32 %v2330, 0.5
        %v2407 = vmul.f32 %v2155, 0.5
        %v2408 = vmul.f32 %v2333, 0.5
        %v2409 = vmul.f32 %v2157, 0.5
        %v2410 = vmul.f32 %v2335, 0.5
        %v2411 = vmul.f32 %v2160, 0.5
        %v2412 = vmul.f32 %v2338, 0.5
        %v2413 = vmul.f32 %v2162, 0.5
        %v2414 = vmul.f32 %v2340, 0.5
        %v2415 = vmul.f32 %v2165, 0.5
        %v2416 = vmul.f32 %v2343, 0.5
        %v2417 = vmul.f32 %v2167, 0.5
        %v2418 = vmul.f32 %v2345, 0.5
        %v2419 = vmul.f32 %v2170, 0.5
        %v2420 = vmul.f32 %v2348, 0.5
        %v2421 = vmul.f32 %v2172, 0.5
        %v2422 = vmul.f32 %v2350, 0.5
        %v2423 = vmul.f32 %v2175, 0.5
        %v2424 = vmul.f32 %v2353, 0.5
        %v2425 = vmul.f32 %v2177, 0.5
        %v2426 = vmul.f32 %v2355, 0.5
        %v2427 = vmul.f32 %v2180, 0.5
        %v2428 = vmul.f32 %v2358, 0.5
        %v2429 = vmul.f32 %v2182, 0.5
        %v2430 = vmul.f32 %v2360, 0.5
        %v2431 = vmul.f32 %v2185, 0.5
        %v2432 = vmul.f32 %v2363, 0.5
        %v2433 = vmul.f32 %v2187, 0.5
        %v2434 = vmul.f32 %v2365, 0.5
        %v2435 = vmul.f32 %v2190, 0.5
        %v2436 = vmul.f32 %v2368, 0.5
        %v2437 = vmul.f32 %v2192, 0.5
        %v2438 = vmul.f32 %v2370, 0.5
        %v2439 = vmul.f32 %v2195, 0.5
        %v2440 = vmul.f32 %v2373, 0.5
        %v2441 = vmul.f32 %v2197, 0.5
        %v2442 = vmul.f32 %v2375, 0.5
        %v2443 = vmul.f32 %v2200, 0.5
        %v2444 = vmul.f32 %v2378, 0.5
        %v2445 = vmul.f32 %v2202, 0.5
        %v2446 = vmul.f32 %v2380, 0.5
        %v2447 = vmul.f32 %v2205, 0.5
        %v2448 = vmul.f32 %v2383, 0.5
        %v2449 = vmul.f32 %v2207, 0.5
        %v2450 = vmul.f32 %v2385, 0.5
        %v2451 = vtanh.pop %v2387
        %v2452 = vtanh.pop %v2388
        %v2453 = vtanh.pop %v2389
        %v2454 = vtanh.pop %v2390
        %v2455 = vtanh.pop %v2391
        %v2456 = vtanh.pop %v2392
        %v2457 = vtanh.pop %v2393
        %v2458 = vtanh.pop %v2394
        %v2459 = vtanh.pop %v2395
        %v2460 = vtanh.pop %v2396
        %v2461 = vtanh.pop %v2397
        %v2462 = vtanh.pop %v2398
        %v2463 = vtanh.pop %v2399
        %v2464 = vtanh.pop %v2400
        %v2465 = vtanh.pop %v2401
        %v2466 = vtanh.pop %v2402
        %v2467 = vtanh.pop %v2403
        %v2468 = vtanh.pop %v2404
        %v2469 = vtanh.pop %v2405
        %v2470 = vtanh.pop %v2406
        %v2471 = vtanh.pop %v2407
        %v2472 = vtanh.pop %v2408
        %v2473 = vtanh.pop %v2409
        %v2474 = vtanh.pop %v2410
        %v2475 = vtanh.pop %v2411
        %v2476 = vtanh.pop %v2412
        %v2477 = vtanh.pop %v2413
        %v2478 = vtanh.pop %v2414
        %v2479 = vtanh.pop %v2415
        %v2480 = vtanh.pop %v2416
        %v2481 = vtanh.pop %v2417
        %v2482 = vtanh.pop %v2418
        %v2483 = vtanh.pop %v2419
        %v2484 = vtanh.pop %v2420
        %v2485 = vtanh.pop %v2421
        %v2486 = vtanh.pop %v2422
        %v2487 = vtanh.pop %v2423
        %v2488 = vtanh.pop %v2424
        %v2489 = vtanh.pop %v2425
        %v2490 = vtanh.pop %v2426
        %v2491 = vtanh.pop %v2427
        %v2492 = vtanh.pop %v2428
        %v2493 = vtanh.pop %v2429
        %v2494 = vtanh.pop %v2430
        %v2495 = vtanh.pop %v2431
        %v2496 = vtanh.pop %v2432
        %v2497 = vtanh.pop %v2433
        %v2498 = vtanh.pop %v2434
        %v2499 = vtanh.pop %v2435
        %v2500 = vtanh.pop %v2436
        %v2501 = vtanh.pop %v2437
        %v2502 = vtanh.pop %v2438
        %v2503 = vtanh.pop %v2439
        %v2504 = vtanh.pop %v2440
        %v2505 = vtanh.pop %v2441
        %v2506 = vtanh.pop %v2442
        %v2507 = vtanh.pop %v2443
        %v2508 = vtanh.pop %v2444
        %v2509 = vtanh.pop %v2445
        %v2510 = vtanh.pop %v2446
        %v2511 = vtanh.pop %v2447
        %v2512 = vtanh.pop %v2448
        %v2513 = vtanh.pop %v2449
        %v2514 = vtanh.pop %v2450
        %v2515 = vmul.f32 %v2451, 0.5
        %v2516 = vmul.f32 %v2452, 0.5
        %v2517 = vmul.f32 %v2453, 0.5
        %v2518 = vmul.f32 %v2454, 0.5
        %v2519 = vmul.f32 %v2455, 0.5
        %v2520 = vmul.f32 %v2456, 0.5
        %v2521 = vmul.f32 %v2457, 0.5
        %v2522 = vmul.f32 %v2458, 0.5
        %v2523 = vmul.f32 %v2459, 0.5
        %v2524 = vmul.f32 %v2460, 0.5
        %v2525 = vmul.f32 %v2461, 0.5
        %v2526 = vmul.f32 %v2462, 0.5
        %v2527 = vmul.f32 %v2463, 0.5
        %v2528 = vmul.f32 %v2464, 0.5
        %v2529 = vmul.f32 %v2465, 0.5
        %v2530 = vmul.f32 %v2466, 0.5
        %v2531 = vmul.f32 %v2467, 0.5
        %v2532 = vmul.f32 %v2468, 0.5
        %v2533 = vmul.f32 %v2469, 0.5
        %v2534 = vmul.f32 %v2470, 0.5
        %v2535 = vmul.f32 %v2471, 0.5
        %v2536 = vmul.f32 %v2472, 0.5
        %v2537 = vmul.f32 %v2473, 0.5
        %v2538 = vmul.f32 %v2474, 0.5
        %v2539 = vmul.f32 %v2475, 0.5
        %v2540 = vmul.f32 %v2476, 0.5
        %v2541 = vmul.f32 %v2477, 0.5
        %v2542 = vmul.f32 %v2478, 0.5
        %v2543 = vmul.f32 %v2479, 0.5
        %v2544 = vmul.f32 %v2480, 0.5
        %v2545 = vmul.f32 %v2481, 0.5
        %v2546 = vmul.f32 %v2482, 0.5
        %v2547 = vmul.f32 %v2483, 0.5
        %v2548 = vmul.f32 %v2484, 0.5
        %v2549 = vmul.f32 %v2485, 0.5
        %v2550 = vmul.f32 %v2486, 0.5
        %v2551 = vmul.f32 %v2487, 0.5
        %v2552 = vmul.f32 %v2488, 0.5
        %v2553 = vmul.f32 %v2489, 0.5
        %v2554 = vmul.f32 %v2490, 0.5
        %v2555 = vmul.f32 %v2491, 0.5
        %v2556 = vmul.f32 %v2492, 0.5
        %v2557 = vmul.f32 %v2493, 0.5
        %v2558 = vmul.f32 %v2494, 0.5
        %v2559 = vmul.f32 %v2495, 0.5
        %v2560 = vmul.f32 %v2496, 0.5
        %v2561 = vmul.f32 %v2497, 0.5
        %v2562 = vmul.f32 %v2498, 0.5
        %v2563 = vmul.f32 %v2499, 0.5
        %v2564 = vmul.f32 %v2500, 0.5
        %v2565 = vmul.f32 %v2501, 0.5
        %v2566 = vmul.f32 %v2502, 0.5
        %v2567 = vmul.f32 %v2503, 0.5
        %v2568 = vmul.f32 %v2504, 0.5
        %v2569 = vmul.f32 %v2505, 0.5
        %v2570 = vmul.f32 %v2506, 0.5
        %v2571 = vmul.f32 %v2507, 0.5
        %v2572 = vmul.f32 %v2508, 0.5
        %v2573 = vmul.f32 %v2509, 0.5
        %v2574 = vmul.f32 %v2510, 0.5
        %v2575 = vmul.f32 %v2511, 0.5
        %v2576 = vmul.f32 %v2512, 0.5
        %v2577 = vmul.f32 %v2513, 0.5
        %v2578 = vmul.f32 %v2514, 0.5
        %v2579 = vadd.f32 %v2515, 0.5
        %v2580 = vadd.f32 %v2516, 0.5
        %v2581 = vadd.f32 %v2517, 0.5
        %v2582 = vadd.f32 %v2518, 0.5
        %v2583 = vadd.f32 %v2519, 0.5
        %v2584 = vadd.f32 %v2520, 0.5
        %v2585 = vadd.f32 %v2521, 0.5
        %v2586 = vadd.f32 %v2522, 0.5
        %v2587 = vadd.f32 %v2523, 0.5
        %v2588 = vadd.f32 %v2524, 0.5
        %v2589 = vadd.f32 %v2525, 0.5
        %v2590 = vadd.f32 %v2526, 0.5
        %v2591 = vadd.f32 %v2527, 0.5
        %v2592 = vadd.f32 %v2528, 0.5
        %v2593 = vadd.f32 %v2529, 0.5
        %v2594 = vadd.f32 %v2530, 0.5
        %v2595 = vadd.f32 %v2531, 0.5
        %v2596 = vadd.f32 %v2532, 0.5
        %v2597 = vadd.f32 %v2533, 0.5
        %v2598 = vadd.f32 %v2534, 0.5
        %v2599 = vadd.f32 %v2535, 0.5
        %v2600 = vadd.f32 %v2536, 0.5
        %v2601 = vadd.f32 %v2537, 0.5
        %v2602 = vadd.f32 %v2538, 0.5
        %v2603 = vadd.f32 %v2539, 0.5
        %v2604 = vadd.f32 %v2540, 0.5
        %v2605 = vadd.f32 %v2541, 0.5
        %v2606 = vadd.f32 %v2542, 0.5
        %v2607 = vadd.f32 %v2543, 0.5
        %v2608 = vadd.f32 %v2544, 0.5
        %v2609 = vadd.f32 %v2545, 0.5
        %v2610 = vadd.f32 %v2546, 0.5
        %v2611 = vadd.f32 %v2547, 0.5
        %v2612 = vadd.f32 %v2548, 0.5
        %v2613 = vadd.f32 %v2549, 0.5
        %v2614 = vadd.f32 %v2550, 0.5
        %v2615 = vadd.f32 %v2551, 0.5
        %v2616 = vadd.f32 %v2552, 0.5
        %v2617 = vadd.f32 %v2553, 0.5
        %v2618 = vadd.f32 %v2554, 0.5
        %v2619 = vadd.f32 %v2555, 0.5
        %v2620 = vadd.f32 %v2556, 0.5
        %v2621 = vadd.f32 %v2557, 0.5
        %v2622 = vadd.f32 %v2558, 0.5
        %v2623 = vadd.f32 %v2559, 0.5
        %v2624 = vadd.f32 %v2560, 0.5
        %v2625 = vadd.f32 %v2561, 0.5
        %v2626 = vadd.f32 %v2562, 0.5
        %v2627 = vadd.f32 %v2563, 0.5
        %v2628 = vadd.f32 %v2564, 0.5
        %v2629 = vadd.f32 %v2565, 0.5
        %v2630 = vadd.f32 %v2566, 0.5
        %v2631 = vadd.f32 %v2567, 0.5
        %v2632 = vadd.f32 %v2568, 0.5
        %v2633 = vadd.f32 %v2569, 0.5
        %v2634 = vadd.f32 %v2570, 0.5
        %v2635 = vadd.f32 %v2571, 0.5
        %v2636 = vadd.f32 %v2572, 0.5
        %v2637 = vadd.f32 %v2573, 0.5
        %v2638 = vadd.f32 %v2574, 0.5
        %v2639 = vadd.f32 %v2575, 0.5
        %v2640 = vadd.f32 %v2576, 0.5
        %v2641 = vadd.f32 %v2577, 0.5
        %v2642 = vadd.f32 %v2578, 0.5
        %v2643 = vmul.f32 %v2130, %v2579
        %v2644 = vmul.f32 %v2308, %v2580
        %v2645 = vmul.f32 %v2132, %v2581
        %v2646 = vmul.f32 %v2310, %v2582
        %v2647 = vmul.f32 %v2135, %v2583
        %v2648 = vmul.f32 %v2313, %v2584
        %v2649 = vmul.f32 %v2137, %v2585
        %v2650 = vmul.f32 %v2315, %v2586
        %v2651 = vmul.f32 %v2140, %v2587
        %v2652 = vmul.f32 %v2318, %v2588
        %v2653 = vmul.f32 %v2142, %v2589
        %v2654 = vmul.f32 %v2320, %v2590
        %v2655 = vmul.f32 %v2145, %v2591
        %v2656 = vmul.f32 %v2323, %v2592
        %v2657 = vmul.f32 %v2147, %v2593
        %v2658 = vmul.f32 %v2325, %v2594
        %v2659 = vmul.f32 %v2150, %v2595
        %v2660 = vmul.f32 %v2328, %v2596
        %v2661 = vmul.f32 %v2152, %v2597
        %v2662 = vmul.f32 %v2330, %v2598
        %v2663 = vmul.f32 %v2155, %v2599
        %v2664 = vmul.f32 %v2333, %v2600
        %v2665 = vmul.f32 %v2157, %v2601
        %v2666 = vmul.f32 %v2335, %v2602
        %v2667 = vmul.f32 %v2160, %v2603
        %v2668 = vmul.f32 %v2338, %v2604
        %v2669 = vmul.f32 %v2162, %v2605
        %v2670 = vmul.f32 %v2340, %v2606
        %v2671 = vmul.f32 %v2165, %v2607
        %v2672 = vmul.f32 %v2343, %v2608
        %v2673 = vmul.f32 %v2167, %v2609
        %v2674 = vmul.f32 %v2345, %v2610
        %v2675 = vmul.f32 %v2170, %v2611
        %v2676 = vmul.f32 %v2348, %v2612
        %v2677 = vmul.f32 %v2172, %v2613
        %v2678 = vmul.f32 %v2350, %v2614
        %v2679 = vmul.f32 %v2175, %v2615
        %v2680 = vmul.f32 %v2353, %v2616
        %v2681 = vmul.f32 %v2177, %v2617
        %v2682 = vmul.f32 %v2355, %v2618
        %v2683 = vmul.f32 %v2180, %v2619
        %v2684 = vmul.f32 %v2358, %v2620
        %v2685 = vmul.f32 %v2182, %v2621
        %v2686 = vmul.f32 %v2360, %v2622
        %v2687 = vmul.f32 %v2185, %v2623
        %v2688 = vmul.f32 %v2363, %v2624
        %v2689 = vmul.f32 %v2187, %v2625
        %v2690 = vmul.f32 %v2365, %v2626
        %v2691 = vmul.f32 %v2190, %v2627
        %v2692 = vmul.f32 %v2368, %v2628
        %v2693 = vmul.f32 %v2192, %v2629
        %v2694 = vmul.f32 %v2370, %v2630
        %v2695 = vmul.f32 %v2195, %v2631
        %v2696 = vmul.f32 %v2373, %v2632
        %v2697 = vmul.f32 %v2197, %v2633
        %v2698 = vmul.f32 %v2375, %v2634
        %v2699 = vmul.f32 %v2200, %v2635
        %v2700 = vmul.f32 %v2378, %v2636
        %v2701 = vmul.f32 %v2202, %v2637
        %v2702 = vmul.f32 %v2380, %v2638
        %v2703 = vmul.f32 %v2205, %v2639
        %v2704 = vmul.f32 %v2383, %v2640
        %v2705 = vmul.f32 %v2207, %v2641
        %v2706 = vmul.f32 %v2385, %v2642
        %v2707 = vpack.c.bf16 %v2645, %v2643
        %v2708 = vpack.c.bf16 %v2646, %v2644
        %v2709 = vpack.c.bf16 %v2649, %v2647
        %v2710 = vpack.c.bf16 %v2650, %v2648
        %v2711 = vpack.c.bf16 %v2653, %v2651
        %v2712 = vpack.c.bf16 %v2654, %v2652
        %v2713 = vpack.c.bf16 %v2657, %v2655
        %v2714 = vpack.c.bf16 %v2658, %v2656
        %v2715 = vpack.c.bf16 %v2661, %v2659
        %v2716 = vpack.c.bf16 %v2662, %v2660
        %v2717 = vpack.c.bf16 %v2665, %v2663
        %v2718 = vpack.c.bf16 %v2666, %v2664
        %v2719 = vpack.c.bf16 %v2669, %v2667
        %v2720 = vpack.c.bf16 %v2670, %v2668
        %v2721 = vpack.c.bf16 %v2673, %v2671
        %v2722 = vpack.c.bf16 %v2674, %v2672
        %v2723 = vpack.c.bf16 %v2677, %v2675
        %v2724 = vpack.c.bf16 %v2678, %v2676
        %v2725 = vpack.c.bf16 %v2681, %v2679
        %v2726 = vpack.c.bf16 %v2682, %v2680
        %v2727 = vpack.c.bf16 %v2685, %v2683
        %v2728 = vpack.c.bf16 %v2686, %v2684
        %v2729 = vpack.c.bf16 %v2689, %v2687
        %v2730 = vpack.c.bf16 %v2690, %v2688
        %v2731 = vpack.c.bf16 %v2693, %v2691
        %v2732 = vpack.c.bf16 %v2694, %v2692
        %v2733 = vpack.c.bf16 %v2697, %v2695
        %v2734 = vpack.c.bf16 %v2698, %v2696
        %v2735 = vpack.c.bf16 %v2701, %v2699
        %v2736 = vpack.c.bf16 %v2702, %v2700
        %v2737 = vpack.c.bf16 %v2705, %v2703
        %v2738 = vpack.c.bf16 %v2706, %v2704
        %s2739 = scalar_lea.vmem [#allocation2], 512
        %v2740 = vld [vmem:[%s2739] sm:$0xff]
        %v2741 = vld [vmem:[%s2739 + $0x8] sm:$0xff]
        %v2742 = vld [vmem:[%s2739 + $0x10] sm:$0xff]
        %v2743 = vld [vmem:[%s2739 + $0x18] sm:$0xff]
        %v2744 = vld [vmem:[%s2739 + $0x20] sm:$0xff]
        %v2745 = vld [vmem:[%s2739 + $0x28] sm:$0xff]
        %v2746 = vld [vmem:[%s2739 + $0x30] sm:$0xff]
        %v2747 = vld [vmem:[%s2739 + $0x38] sm:$0xff]
        %v2748 = vld [vmem:[%s2739 + $0x40] sm:$0xff]
        %v2749 = vld [vmem:[%s2739 + $0x48] sm:$0xff]
        %v2750 = vld [vmem:[%s2739 + $0x50] sm:$0xff]
        %v2751 = vld [vmem:[%s2739 + $0x58] sm:$0xff]
        %v2752 = vld [vmem:[%s2739 + $0x60] sm:$0xff]
        %v2753 = vld [vmem:[%s2739 + $0x68] sm:$0xff]
        %v2754 = vld [vmem:[%s2739 + $0x70] sm:$0xff]
        %v2755 = vld [vmem:[%s2739 + $0x78] sm:$0xff]
        %v2756 = vld [vmem:[%s2739 + $0x80] sm:$0xff]
        %v2757 = vld [vmem:[%s2739 + $0x88] sm:$0xff]
        %v2758 = vld [vmem:[%s2739 + $0x90] sm:$0xff]
        %v2759 = vld [vmem:[%s2739 + $0x98] sm:$0xff]
        %v2760 = vld [vmem:[%s2739 + $0xa0] sm:$0xff]
        %v2761 = vld [vmem:[%s2739 + $0xa8] sm:$0xff]
        %v2762 = vld [vmem:[%s2739 + $0xb0] sm:$0xff]
        %v2763 = vld [vmem:[%s2739 + $0xb8] sm:$0xff]
        %v2764 = vld [vmem:[%s2739 + $0xc0] sm:$0xff]
        %v2765 = vld [vmem:[%s2739 + $0xc8] sm:$0xff]
        %v2766 = vld [vmem:[%s2739 + $0xd0] sm:$0xff]
        %v2767 = vld [vmem:[%s2739 + $0xd8] sm:$0xff]
        %v2768 = vld [vmem:[%s2739 + $0xe0] sm:$0xff]
        %v2769 = vld [vmem:[%s2739 + $0xe8] sm:$0xff]
        %v2770 = vld [vmem:[%s2739 + $0xf0] sm:$0xff]
        %v2771 = vld [vmem:[%s2739 + $0xf8] sm:$0xff]
        %s2772 = scalar_lea.vmem %s4, 3
        %v2773 = vld [vmem:[%s2772] ss:$8 sm:$0x3]
        %v2775 = vperm.slane %v2773, 0
        %v2776 = vperm.slane %v2773, 1
        %v2811 = vunpack.c.l.b16 %v2740
        %v2812 = vunpack.c.h.b16 %v2740
        %v2813 = vunpack.c.l.b16 %v2741
        %v2814 = vunpack.c.h.b16 %v2741
        %v2815 = vunpack.c.l.b16 %v2742
        %v2816 = vunpack.c.h.b16 %v2742
        %v2817 = vunpack.c.l.b16 %v2743
        %v2818 = vunpack.c.h.b16 %v2743
        %v2819 = vunpack.c.l.b16 %v2744
        %v2820 = vunpack.c.h.b16 %v2744
        %v2821 = vunpack.c.l.b16 %v2745
        %v2822 = vunpack.c.h.b16 %v2745
        %v2823 = vunpack.c.l.b16 %v2746
        %v2824 = vunpack.c.h.b16 %v2746
        %v2825 = vunpack.c.l.b16 %v2747
        %v2826 = vunpack.c.h.b16 %v2747
        %v2827 = vunpack.c.l.b16 %v2748
        %v2828 = vunpack.c.h.b16 %v2748
        %v2829 = vunpack.c.l.b16 %v2749
        %v2830 = vunpack.c.h.b16 %v2749
        %v2831 = vunpack.c.l.b16 %v2750
        %v2832 = vunpack.c.h.b16 %v2750
        %v2833 = vunpack.c.l.b16 %v2751
        %v2834 = vunpack.c.h.b16 %v2751
        %v2835 = vunpack.c.l.b16 %v2752
        %v2836 = vunpack.c.h.b16 %v2752
        %v2837 = vunpack.c.l.b16 %v2753
        %v2838 = vunpack.c.h.b16 %v2753
        %v2839 = vunpack.c.l.b16 %v2754
        %v2840 = vunpack.c.h.b16 %v2754
        %v2841 = vunpack.c.l.b16 %v2755
        %v2842 = vunpack.c.h.b16 %v2755
        %v2843 = vunpack.c.l.b16 %v2756
        %v2844 = vunpack.c.h.b16 %v2756
        %v2845 = vunpack.c.l.b16 %v2757
        %v2846 = vunpack.c.h.b16 %v2757
        %v2847 = vunpack.c.l.b16 %v2758
        %v2848 = vunpack.c.h.b16 %v2758
        %v2849 = vunpack.c.l.b16 %v2759
        %v2850 = vunpack.c.h.b16 %v2759
        %v2851 = vunpack.c.l.b16 %v2760
        %v2852 = vunpack.c.h.b16 %v2760
        %v2853 = vunpack.c.l.b16 %v2761
        %v2854 = vunpack.c.h.b16 %v2761
        %v2855 = vunpack.c.l.b16 %v2762
        %v2856 = vunpack.c.h.b16 %v2762
        %v2857 = vunpack.c.l.b16 %v2763
        %v2858 = vunpack.c.h.b16 %v2763
        %v2859 = vunpack.c.l.b16 %v2764
        %v2860 = vunpack.c.h.b16 %v2764
        %v2861 = vunpack.c.l.b16 %v2765
        %v2862 = vunpack.c.h.b16 %v2765
        %v2863 = vunpack.c.l.b16 %v2766
        %v2864 = vunpack.c.h.b16 %v2766
        %v2865 = vunpack.c.l.b16 %v2767
        %v2866 = vunpack.c.h.b16 %v2767
        %v2867 = vunpack.c.l.b16 %v2768
        %v2868 = vunpack.c.h.b16 %v2768
        %v2869 = vunpack.c.l.b16 %v2769
        %v2870 = vunpack.c.h.b16 %v2769
        %v2871 = vunpack.c.l.b16 %v2770
        %v2872 = vunpack.c.h.b16 %v2770
        %v2873 = vunpack.c.l.b16 %v2771
        %v2874 = vunpack.c.h.b16 %v2771
        %v2875 = vpack.c.b16 %v2813, %v2811
        %v2876 = vpack.c.b16 %v2814, %v2812
        %v2877 = vpack.c.b16 %v2817, %v2815
        %v2878 = vpack.c.b16 %v2818, %v2816
        %v2879 = vpack.c.b16 %v2821, %v2819
        %v2880 = vpack.c.b16 %v2822, %v2820
        %v2881 = vpack.c.b16 %v2825, %v2823
        %v2882 = vpack.c.b16 %v2826, %v2824
        %v2883 = vpack.c.b16 %v2829, %v2827
        %v2884 = vpack.c.b16 %v2830, %v2828
        %v2885 = vpack.c.b16 %v2833, %v2831
        %v2886 = vpack.c.b16 %v2834, %v2832
        %v2887 = vpack.c.b16 %v2837, %v2835
        %v2888 = vpack.c.b16 %v2838, %v2836
        %v2889 = vpack.c.b16 %v2841, %v2839
        %v2890 = vpack.c.b16 %v2842, %v2840
        %v2891 = vpack.c.b16 %v2845, %v2843
        %v2892 = vpack.c.b16 %v2846, %v2844
        %v2893 = vpack.c.b16 %v2849, %v2847
        %v2894 = vpack.c.b16 %v2850, %v2848
        %v2895 = vpack.c.b16 %v2853, %v2851
        %v2896 = vpack.c.b16 %v2854, %v2852
        %v2897 = vpack.c.b16 %v2857, %v2855
        %v2898 = vpack.c.b16 %v2858, %v2856
        %v2899 = vpack.c.b16 %v2861, %v2859
        %v2900 = vpack.c.b16 %v2862, %v2860
        %v2901 = vpack.c.b16 %v2865, %v2863
        %v2902 = vpack.c.b16 %v2866, %v2864
        %v2903 = vpack.c.b16 %v2869, %v2867
        %v2904 = vpack.c.b16 %v2870, %v2868
        %v2905 = vpack.c.b16 %v2873, %v2871
        %v2906 = vpack.c.b16 %v2874, %v2872
        %2939 = vmatpush.bf16.msra.mxu0 %v2889
        %2940 = vmatpush.bf16.msra.mxu0 %v2887
        %2941 = vmatpush.bf16.msra.mxu0 %v2885
        %2942 = vmatpush.bf16.msra.mxu0 %v2883
        %2943 = vmatpush.bf16.msra.mxu0 %v2881
        %2944 = vmatpush.bf16.msra.mxu0 %v2879
        %2945 = vmatpush.bf16.msra.mxu0 %v2877
        %2946 = vmatpush.bf16.msra.mxu0 %v2875
        %2947 = vmatmul.bf16.gmra.mxu0 %v2707
        %v2948 = vpop.f32.mrf.mxu0
        %v2949 = vadd.f32 %v2775, %v2948
        %v2950 = vpop.f32.mrf.mxu0
        %v2951 = vadd.f32 %v2775, %v2950
        %2952 = vmatmul.bf16.gmra.mxu0 %v2709
        %v2953 = vpop.f32.mrf.mxu0
        %v2954 = vadd.f32 %v2775, %v2953
        %v2955 = vpop.f32.mrf.mxu0
        %v2956 = vadd.f32 %v2775, %v2955
        %2957 = vmatmul.bf16.gmra.mxu0 %v2711
        %v2958 = vpop.f32.mrf.mxu0
        %v2959 = vadd.f32 %v2775, %v2958
        %v2960 = vpop.f32.mrf.mxu0
        %v2961 = vadd.f32 %v2775, %v2960
        %2962 = vmatmul.bf16.gmra.mxu0 %v2713
        %v2963 = vpop.f32.mrf.mxu0
        %v2964 = vadd.f32 %v2775, %v2963
        %v2965 = vpop.f32.mrf.mxu0
        %v2966 = vadd.f32 %v2775, %v2965
        %2967 = vmatmul.bf16.gmra.mxu0 %v2715
        %v2968 = vpop.f32.mrf.mxu0
        %v2969 = vadd.f32 %v2775, %v2968
        %v2970 = vpop.f32.mrf.mxu0
        %v2971 = vadd.f32 %v2775, %v2970
        %2972 = vmatmul.bf16.gmra.mxu0 %v2717
        %v2973 = vpop.f32.mrf.mxu0
        %v2974 = vadd.f32 %v2775, %v2973
        %v2975 = vpop.f32.mrf.mxu0
        %v2976 = vadd.f32 %v2775, %v2975
        %2977 = vmatmul.bf16.gmra.mxu0 %v2719
        %v2978 = vpop.f32.mrf.mxu0
        %v2979 = vadd.f32 %v2775, %v2978
        %v2980 = vpop.f32.mrf.mxu0
        %v2981 = vadd.f32 %v2775, %v2980
        %2982 = vmatmul.bf16.gmra.mxu0 %v2721
        %v2983 = vpop.f32.mrf.mxu0
        %v2984 = vadd.f32 %v2775, %v2983
        %v2985 = vpop.f32.mrf.mxu0
        %v2986 = vadd.f32 %v2775, %v2985
        %2987 = vmatmul.bf16.gmra.mxu0 %v2723
        %v2988 = vpop.f32.mrf.mxu0
        %v2989 = vadd.f32 %v2775, %v2988
        %v2990 = vpop.f32.mrf.mxu0
        %v2991 = vadd.f32 %v2775, %v2990
        %2992 = vmatmul.bf16.gmra.mxu0 %v2725
        %v2993 = vpop.f32.mrf.mxu0
        %v2994 = vadd.f32 %v2775, %v2993
        %v2995 = vpop.f32.mrf.mxu0
        %v2996 = vadd.f32 %v2775, %v2995
        %2997 = vmatmul.bf16.gmra.mxu0 %v2727
        %v2998 = vpop.f32.mrf.mxu0
        %v2999 = vadd.f32 %v2775, %v2998
        %v3000 = vpop.f32.mrf.mxu0
        %v3001 = vadd.f32 %v2775, %v3000
        %3002 = vmatmul.bf16.gmra.mxu0 %v2729
        %v3003 = vpop.f32.mrf.mxu0
        %v3004 = vadd.f32 %v2775, %v3003
        %v3005 = vpop.f32.mrf.mxu0
        %v3006 = vadd.f32 %v2775, %v3005
        %3007 = vmatmul.bf16.gmra.mxu0 %v2731
        %v3008 = vpop.f32.mrf.mxu0
        %v3009 = vadd.f32 %v2775, %v3008
        %v3010 = vpop.f32.mrf.mxu0
        %v3011 = vadd.f32 %v2775, %v3010
        %3012 = vmatmul.bf16.gmra.mxu0 %v2733
        %v3013 = vpop.f32.mrf.mxu0
        %v3014 = vadd.f32 %v2775, %v3013
        %v3015 = vpop.f32.mrf.mxu0
        %v3016 = vadd.f32 %v2775, %v3015
        %3017 = vmatmul.bf16.gmra.mxu0 %v2735
        %v3018 = vpop.f32.mrf.mxu0
        %v3019 = vadd.f32 %v2775, %v3018
        %v3020 = vpop.f32.mrf.mxu0
        %v3021 = vadd.f32 %v2775, %v3020
        %3022 = vmatmul.bf16.gmra.mxu0 %v2737
        %v3023 = vpop.f32.mrf.mxu0
        %v3024 = vadd.f32 %v2775, %v3023
        %v3025 = vpop.f32.mrf.mxu0
        %v3026 = vadd.f32 %v2775, %v3025
        %3027 = vdwg.mxu0
        %3028 = vmatpush.bf16.msra.mxu0 %v2905
        %3029 = vmatpush.bf16.msra.mxu0 %v2903
        %3030 = vmatpush.bf16.msra.mxu0 %v2901
        %3031 = vmatpush.bf16.msra.mxu0 %v2899
        %3032 = vmatpush.bf16.msra.mxu0 %v2897
        %3033 = vmatpush.bf16.msra.mxu0 %v2895
        %3034 = vmatpush.bf16.msra.mxu0 %v2893
        %3035 = vmatpush.bf16.msra.mxu0 %v2891
        %3036 = vmatmul.bf16.gmra.mxu0 %v2708
        %v3037 = vpop.f32.mrf.mxu0
        %v3038 = vadd.f32 %v2949, %v3037
        %v3039 = vpop.f32.mrf.mxu0
        %v3040 = vadd.f32 %v2951, %v3039
        %3041 = vmatmul.bf16.gmra.mxu0 %v2710
        %v3042 = vpop.f32.mrf.mxu0
        %v3043 = vadd.f32 %v2954, %v3042
        %v3044 = vpop.f32.mrf.mxu0
        %v3045 = vadd.f32 %v2956, %v3044
        %3046 = vmatmul.bf16.gmra.mxu0 %v2712
        %v3047 = vpop.f32.mrf.mxu0
        %v3048 = vadd.f32 %v2959, %v3047
        %v3049 = vpop.f32.mrf.mxu0
        %v3050 = vadd.f32 %v2961, %v3049
        %3051 = vmatmul.bf16.gmra.mxu0 %v2714
        %v3052 = vpop.f32.mrf.mxu0
        %v3053 = vadd.f32 %v2964, %v3052
        %v3054 = vpop.f32.mrf.mxu0
        %v3055 = vadd.f32 %v2966, %v3054
        %3056 = vmatmul.bf16.gmra.mxu0 %v2716
        %v3057 = vpop.f32.mrf.mxu0
        %v3058 = vadd.f32 %v2969, %v3057
        %v3059 = vpop.f32.mrf.mxu0
        %v3060 = vadd.f32 %v2971, %v3059
        %3061 = vmatmul.bf16.gmra.mxu0 %v2718
        %v3062 = vpop.f32.mrf.mxu0
        %v3063 = vadd.f32 %v2974, %v3062
        %v3064 = vpop.f32.mrf.mxu0
        %v3065 = vadd.f32 %v2976, %v3064
        %3066 = vmatmul.bf16.gmra.mxu0 %v2720
        %v3067 = vpop.f32.mrf.mxu0
        %v3068 = vadd.f32 %v2979, %v3067
        %v3069 = vpop.f32.mrf.mxu0
        %v3070 = vadd.f32 %v2981, %v3069
        %3071 = vmatmul.bf16.gmra.mxu0 %v2722
        %v3072 = vpop.f32.mrf.mxu0
        %v3073 = vadd.f32 %v2984, %v3072
        %v3074 = vpop.f32.mrf.mxu0
        %v3075 = vadd.f32 %v2986, %v3074
        %3076 = vmatmul.bf16.gmra.mxu0 %v2724
        %v3077 = vpop.f32.mrf.mxu0
        %v3078 = vadd.f32 %v2989, %v3077
        %v3079 = vpop.f32.mrf.mxu0
        %v3080 = vadd.f32 %v2991, %v3079
        %3081 = vmatmul.bf16.gmra.mxu0 %v2726
        %v3082 = vpop.f32.mrf.mxu0
        %v3083 = vadd.f32 %v2994, %v3082
        %v3084 = vpop.f32.mrf.mxu0
        %v3085 = vadd.f32 %v2996, %v3084
        %3086 = vmatmul.bf16.gmra.mxu0 %v2728
        %v3087 = vpop.f32.mrf.mxu0
        %v3088 = vadd.f32 %v2999, %v3087
        %v3089 = vpop.f32.mrf.mxu0
        %v3090 = vadd.f32 %v3001, %v3089
        %3091 = vmatmul.bf16.gmra.mxu0 %v2730
        %v3092 = vpop.f32.mrf.mxu0
        %v3093 = vadd.f32 %v3004, %v3092
        %v3094 = vpop.f32.mrf.mxu0
        %v3095 = vadd.f32 %v3006, %v3094
        %3096 = vmatmul.bf16.gmra.mxu0 %v2732
        %v3097 = vpop.f32.mrf.mxu0
        %v3098 = vadd.f32 %v3009, %v3097
        %v3099 = vpop.f32.mrf.mxu0
        %v3100 = vadd.f32 %v3011, %v3099
        %3101 = vmatmul.bf16.gmra.mxu0 %v2734
        %v3102 = vpop.f32.mrf.mxu0
        %v3103 = vadd.f32 %v3014, %v3102
        %v3104 = vpop.f32.mrf.mxu0
        %v3105 = vadd.f32 %v3016, %v3104
        %3106 = vmatmul.bf16.gmra.mxu0 %v2736
        %v3107 = vpop.f32.mrf.mxu0
        %v3108 = vadd.f32 %v3019, %v3107
        %v3109 = vpop.f32.mrf.mxu0
        %v3110 = vadd.f32 %v3021, %v3109
        %3111 = vmatmul.bf16.gmra.mxu0 %v2738
        %v3112 = vpop.f32.mrf.mxu0
        %v3113 = vadd.f32 %v3024, %v3112
        %v3114 = vpop.f32.mrf.mxu0
        %v3115 = vadd.f32 %v3026, %v3114
        %3116 = vdwg.mxu0
        %3117 = vmatpush.bf16.msra.mxu0 %v2890
        %3118 = vmatpush.bf16.msra.mxu0 %v2888
        %3119 = vmatpush.bf16.msra.mxu0 %v2886
        %3120 = vmatpush.bf16.msra.mxu0 %v2884
        %3121 = vmatpush.bf16.msra.mxu0 %v2882
        %3122 = vmatpush.bf16.msra.mxu0 %v2880
        %3123 = vmatpush.bf16.msra.mxu0 %v2878
        %3124 = vmatpush.bf16.msra.mxu0 %v2876
        %3125 = vmatmul.bf16.gmra.mxu0 %v2707
        %v3126 = vpop.f32.mrf.mxu0
        %v3127 = vadd.f32 %v2776, %v3126
        %v3128 = vpop.f32.mrf.mxu0
        %v3129 = vadd.f32 %v2776, %v3128
        %3130 = vmatmul.bf16.gmra.mxu0 %v2709
        %v3131 = vpop.f32.mrf.mxu0
        %v3132 = vadd.f32 %v2776, %v3131
        %v3133 = vpop.f32.mrf.mxu0
        %v3134 = vadd.f32 %v2776, %v3133
        %3135 = vmatmul.bf16.gmra.mxu0 %v2711
        %v3136 = vpop.f32.mrf.mxu0
        %v3137 = vadd.f32 %v2776, %v3136
        %v3138 = vpop.f32.mrf.mxu0
        %v3139 = vadd.f32 %v2776, %v3138
        %3140 = vmatmul.bf16.gmra.mxu0 %v2713
        %v3141 = vpop.f32.mrf.mxu0
        %v3142 = vadd.f32 %v2776, %v3141
        %v3143 = vpop.f32.mrf.mxu0
        %v3144 = vadd.f32 %v2776, %v3143
        %3145 = vmatmul.bf16.gmra.mxu0 %v2715
        %v3146 = vpop.f32.mrf.mxu0
        %v3147 = vadd.f32 %v2776, %v3146
        %v3148 = vpop.f32.mrf.mxu0
        %v3149 = vadd.f32 %v2776, %v3148
        %3150 = vmatmul.bf16.gmra.mxu0 %v2717
        %v3151 = vpop.f32.mrf.mxu0
        %v3152 = vadd.f32 %v2776, %v3151
        %v3153 = vpop.f32.mrf.mxu0
        %v3154 = vadd.f32 %v2776, %v3153
        %3155 = vmatmul.bf16.gmra.mxu0 %v2719
        %v3156 = vpop.f32.mrf.mxu0
        %v3157 = vadd.f32 %v2776, %v3156
        %v3158 = vpop.f32.mrf.mxu0
        %v3159 = vadd.f32 %v2776, %v3158
        %3160 = vmatmul.bf16.gmra.mxu0 %v2721
        %v3161 = vpop.f32.mrf.mxu0
        %v3162 = vadd.f32 %v2776, %v3161
        %v3163 = vpop.f32.mrf.mxu0
        %v3164 = vadd.f32 %v2776, %v3163
        %3165 = vmatmul.bf16.gmra.mxu0 %v2723
        %v3166 = vpop.f32.mrf.mxu0
        %v3167 = vadd.f32 %v2776, %v3166
        %v3168 = vpop.f32.mrf.mxu0
        %v3169 = vadd.f32 %v2776, %v3168
        %3170 = vmatmul.bf16.gmra.mxu0 %v2725
        %v3171 = vpop.f32.mrf.mxu0
        %v3172 = vadd.f32 %v2776, %v3171
        %v3173 = vpop.f32.mrf.mxu0
        %v3174 = vadd.f32 %v2776, %v3173
        %3175 = vmatmul.bf16.gmra.mxu0 %v2727
        %v3176 = vpop.f32.mrf.mxu0
        %v3177 = vadd.f32 %v2776, %v3176
        %v3178 = vpop.f32.mrf.mxu0
        %v3179 = vadd.f32 %v2776, %v3178
        %3180 = vmatmul.bf16.gmra.mxu0 %v2729
        %v3181 = vpop.f32.mrf.mxu0
        %v3182 = vadd.f32 %v2776, %v3181
        %v3183 = vpop.f32.mrf.mxu0
        %v3184 = vadd.f32 %v2776, %v3183
        %3185 = vmatmul.bf16.gmra.mxu0 %v2731
        %v3186 = vpop.f32.mrf.mxu0
        %v3187 = vadd.f32 %v2776, %v3186
        %v3188 = vpop.f32.mrf.mxu0
        %v3189 = vadd.f32 %v2776, %v3188
        %3190 = vmatmul.bf16.gmra.mxu0 %v2733
        %v3191 = vpop.f32.mrf.mxu0
        %v3192 = vadd.f32 %v2776, %v3191
        %v3193 = vpop.f32.mrf.mxu0
        %v3194 = vadd.f32 %v2776, %v3193
        %3195 = vmatmul.bf16.gmra.mxu0 %v2735
        %v3196 = vpop.f32.mrf.mxu0
        %v3197 = vadd.f32 %v2776, %v3196
        %v3198 = vpop.f32.mrf.mxu0
        %v3199 = vadd.f32 %v2776, %v3198
        %3200 = vmatmul.bf16.gmra.mxu0 %v2737
        %v3201 = vpop.f32.mrf.mxu0
        %v3202 = vadd.f32 %v2776, %v3201
        %v3203 = vpop.f32.mrf.mxu0
        %v3204 = vadd.f32 %v2776, %v3203
        %3205 = vdwg.mxu0
        %3206 = vmatpush.bf16.msra.mxu0 %v2906
        %3207 = vmatpush.bf16.msra.mxu0 %v2904
        %3208 = vmatpush.bf16.msra.mxu0 %v2902
        %3209 = vmatpush.bf16.msra.mxu0 %v2900
        %3210 = vmatpush.bf16.msra.mxu0 %v2898
        %3211 = vmatpush.bf16.msra.mxu0 %v2896
        %3212 = vmatpush.bf16.msra.mxu0 %v2894
        %3213 = vmatpush.bf16.msra.mxu0 %v2892
        %3214 = vmatmul.bf16.gmra.mxu0 %v2708
        %v3215 = vpop.f32.mrf.mxu0
        %v3216 = vadd.f32 %v3127, %v3215
        %v3217 = vpop.f32.mrf.mxu0
        %v3218 = vadd.f32 %v3129, %v3217
        %3219 = vmatmul.bf16.gmra.mxu0 %v2710
        %v3220 = vpop.f32.mrf.mxu0
        %v3221 = vadd.f32 %v3132, %v3220
        %v3222 = vpop.f32.mrf.mxu0
        %v3223 = vadd.f32 %v3134, %v3222
        %3224 = vmatmul.bf16.gmra.mxu0 %v2712
        %v3225 = vpop.f32.mrf.mxu0
        %v3226 = vadd.f32 %v3137, %v3225
        %v3227 = vpop.f32.mrf.mxu0
        %v3228 = vadd.f32 %v3139, %v3227
        %3229 = vmatmul.bf16.gmra.mxu0 %v2714
        %v3230 = vpop.f32.mrf.mxu0
        %v3231 = vadd.f32 %v3142, %v3230
        %v3232 = vpop.f32.mrf.mxu0
        %v3233 = vadd.f32 %v3144, %v3232
        %3234 = vmatmul.bf16.gmra.mxu0 %v2716
        %v3235 = vpop.f32.mrf.mxu0
        %v3236 = vadd.f32 %v3147, %v3235
        %v3237 = vpop.f32.mrf.mxu0
        %v3238 = vadd.f32 %v3149, %v3237
        %3239 = vmatmul.bf16.gmra.mxu0 %v2718
        %v3240 = vpop.f32.mrf.mxu0
        %v3241 = vadd.f32 %v3152, %v3240
        %v3242 = vpop.f32.mrf.mxu0
        %v3243 = vadd.f32 %v3154, %v3242
        %3244 = vmatmul.bf16.gmra.mxu0 %v2720
        %v3245 = vpop.f32.mrf.mxu0
        %v3246 = vadd.f32 %v3157, %v3245
        %v3247 = vpop.f32.mrf.mxu0
        %v3248 = vadd.f32 %v3159, %v3247
        %3249 = vmatmul.bf16.gmra.mxu0 %v2722
        %v3250 = vpop.f32.mrf.mxu0
        %v3251 = vadd.f32 %v3162, %v3250
        %v3252 = vpop.f32.mrf.mxu0
        %v3253 = vadd.f32 %v3164, %v3252
        %3254 = vmatmul.bf16.gmra.mxu0 %v2724
        %v3255 = vpop.f32.mrf.mxu0
        %v3256 = vadd.f32 %v3167, %v3255
        %v3257 = vpop.f32.mrf.mxu0
        %v3258 = vadd.f32 %v3169, %v3257
        %3259 = vmatmul.bf16.gmra.mxu0 %v2726
        %v3260 = vpop.f32.mrf.mxu0
        %v3261 = vadd.f32 %v3172, %v3260
        %v3262 = vpop.f32.mrf.mxu0
        %v3263 = vadd.f32 %v3174, %v3262
        %3264 = vmatmul.bf16.gmra.mxu0 %v2728
        %v3265 = vpop.f32.mrf.mxu0
        %v3266 = vadd.f32 %v3177, %v3265
        %v3267 = vpop.f32.mrf.mxu0
        %v3268 = vadd.f32 %v3179, %v3267
        %3269 = vmatmul.bf16.gmra.mxu0 %v2730
        %v3270 = vpop.f32.mrf.mxu0
        %v3271 = vadd.f32 %v3182, %v3270
        %v3272 = vpop.f32.mrf.mxu0
        %v3273 = vadd.f32 %v3184, %v3272
        %3274 = vmatmul.bf16.gmra.mxu0 %v2732
        %v3275 = vpop.f32.mrf.mxu0
        %v3276 = vadd.f32 %v3187, %v3275
        %v3277 = vpop.f32.mrf.mxu0
        %v3278 = vadd.f32 %v3189, %v3277
        %3279 = vmatmul.bf16.gmra.mxu0 %v2734
        %v3280 = vpop.f32.mrf.mxu0
        %v3281 = vadd.f32 %v3192, %v3280
        %v3282 = vpop.f32.mrf.mxu0
        %v3283 = vadd.f32 %v3194, %v3282
        %3284 = vmatmul.bf16.gmra.mxu0 %v2736
        %v3285 = vpop.f32.mrf.mxu0
        %v3286 = vadd.f32 %v3197, %v3285
        %v3287 = vpop.f32.mrf.mxu0
        %v3288 = vadd.f32 %v3199, %v3287
        %3289 = vmatmul.bf16.gmra.mxu0 %v2738
        %v3290 = vpop.f32.mrf.mxu0
        %v3291 = vadd.f32 %v3202, %v3290
        %v3292 = vpop.f32.mrf.mxu0
        %v3293 = vadd.f32 %v3204, %v3292
        %3294 = vdwg.mxu0
        %v3295 = vmul.f32 %v3038, 0.5
        %v3296 = vmul.f32 %v3216, 0.5
        %v3297 = vmul.f32 %v3040, 0.5
        %v3298 = vmul.f32 %v3218, 0.5
        %v3299 = vmul.f32 %v3043, 0.5
        %v3300 = vmul.f32 %v3221, 0.5
        %v3301 = vmul.f32 %v3045, 0.5
        %v3302 = vmul.f32 %v3223, 0.5
        %v3303 = vmul.f32 %v3048, 0.5
        %v3304 = vmul.f32 %v3226, 0.5
        %v3305 = vmul.f32 %v3050, 0.5
        %v3306 = vmul.f32 %v3228, 0.5
        %v3307 = vmul.f32 %v3053, 0.5
        %v3308 = vmul.f32 %v3231, 0.5
        %v3309 = vmul.f32 %v3055, 0.5
        %v3310 = vmul.f32 %v3233, 0.5
        %v3311 = vmul.f32 %v3058, 0.5
        %v3312 = vmul.f32 %v3236, 0.5
        %v3313 = vmul.f32 %v3060, 0.5
        %v3314 = vmul.f32 %v3238, 0.5
        %v3315 = vmul.f32 %v3063, 0.5
        %v3316 = vmul.f32 %v3241, 0.5
        %v3317 = vmul.f32 %v3065, 0.5
        %v3318 = vmul.f32 %v3243, 0.5
        %v3319 = vmul.f32 %v3068, 0.5
        %v3320 = vmul.f32 %v3246, 0.5
        %v3321 = vmul.f32 %v3070, 0.5
        %v3322 = vmul.f32 %v3248, 0.5
        %v3323 = vmul.f32 %v3073, 0.5
        %v3324 = vmul.f32 %v3251, 0.5
        %v3325 = vmul.f32 %v3075, 0.5
        %v3326 = vmul.f32 %v3253, 0.5
        %v3327 = vmul.f32 %v3078, 0.5
        %v3328 = vmul.f32 %v3256, 0.5
        %v3329 = vmul.f32 %v3080, 0.5
        %v3330 = vmul.f32 %v3258, 0.5
        %v3331 = vmul.f32 %v3083, 0.5
        %v3332 = vmul.f32 %v3261, 0.5
        %v3333 = vmul.f32 %v3085, 0.5
        %v3334 = vmul.f32 %v3263, 0.5
        %v3335 = vmul.f32 %v3088, 0.5
        %v3336 = vmul.f32 %v3266, 0.5
        %v3337 = vmul.f32 %v3090, 0.5
        %v3338 = vmul.f32 %v3268, 0.5
        %v3339 = vmul.f32 %v3093, 0.5
        %v3340 = vmul.f32 %v3271, 0.5
        %v3341 = vmul.f32 %v3095, 0.5
        %v3342 = vmul.f32 %v3273, 0.5
        %v3343 = vmul.f32 %v3098, 0.5
        %v3344 = vmul.f32 %v3276, 0.5
        %v3345 = vmul.f32 %v3100, 0.5
        %v3346 = vmul.f32 %v3278, 0.5
        %v3347 = vmul.f32 %v3103, 0.5
        %v3348 = vmul.f32 %v3281, 0.5
        %v3349 = vmul.f32 %v3105, 0.5
        %v3350 = vmul.f32 %v3283, 0.5
        %v3351 = vmul.f32 %v3108, 0.5
        %v3352 = vmul.f32 %v3286, 0.5
        %v3353 = vmul.f32 %v3110, 0.5
        %v3354 = vmul.f32 %v3288, 0.5
        %v3355 = vmul.f32 %v3113, 0.5
        %v3356 = vmul.f32 %v3291, 0.5
        %v3357 = vmul.f32 %v3115, 0.5
        %v3358 = vmul.f32 %v3293, 0.5
        %v3359 = vtanh.pop %v3295
        %v3360 = vtanh.pop %v3296
        %v3361 = vtanh.pop %v3297
        %v3362 = vtanh.pop %v3298
        %v3363 = vtanh.pop %v3299
        %v3364 = vtanh.pop %v3300
        %v3365 = vtanh.pop %v3301
        %v3366 = vtanh.pop %v3302
        %v3367 = vtanh.pop %v3303
        %v3368 = vtanh.pop %v3304
        %v3369 = vtanh.pop %v3305
        %v3370 = vtanh.pop %v3306
        %v3371 = vtanh.pop %v3307
        %v3372 = vtanh.pop %v3308
        %v3373 = vtanh.pop %v3309
        %v3374 = vtanh.pop %v3310
        %v3375 = vtanh.pop %v3311
        %v3376 = vtanh.pop %v3312
        %v3377 = vtanh.pop %v3313
        %v3378 = vtanh.pop %v3314
        %v3379 = vtanh.pop %v3315
        %v3380 = vtanh.pop %v3316
        %v3381 = vtanh.pop %v3317
        %v3382 = vtanh.pop %v3318
        %v3383 = vtanh.pop %v3319
        %v3384 = vtanh.pop %v3320
        %v3385 = vtanh.pop %v3321
        %v3386 = vtanh.pop %v3322
        %v3387 = vtanh.pop %v3323
        %v3388 = vtanh.pop %v3324
        %v3389 = vtanh.pop %v3325
        %v3390 = vtanh.pop %v3326
        %v3391 = vtanh.pop %v3327
        %v3392 = vtanh.pop %v3328
        %v3393 = vtanh.pop %v3329
        %v3394 = vtanh.pop %v3330
        %v3395 = vtanh.pop %v3331
        %v3396 = vtanh.pop %v3332
        %v3397 = vtanh.pop %v3333
        %v3398 = vtanh.pop %v3334
        %v3399 = vtanh.pop %v3335
        %v3400 = vtanh.pop %v3336
        %v3401 = vtanh.pop %v3337
        %v3402 = vtanh.pop %v3338
        %v3403 = vtanh.pop %v3339
        %v3404 = vtanh.pop %v3340
        %v3405 = vtanh.pop %v3341
        %v3406 = vtanh.pop %v3342
        %v3407 = vtanh.pop %v3343
        %v3408 = vtanh.pop %v3344
        %v3409 = vtanh.pop %v3345
        %v3410 = vtanh.pop %v3346
        %v3411 = vtanh.pop %v3347
        %v3412 = vtanh.pop %v3348
        %v3413 = vtanh.pop %v3349
        %v3414 = vtanh.pop %v3350
        %v3415 = vtanh.pop %v3351
        %v3416 = vtanh.pop %v3352
        %v3417 = vtanh.pop %v3353
        %v3418 = vtanh.pop %v3354
        %v3419 = vtanh.pop %v3355
        %v3420 = vtanh.pop %v3356
        %v3421 = vtanh.pop %v3357
        %v3422 = vtanh.pop %v3358
        %v3423 = vmul.f32 %v3359, 0.5
        %v3424 = vmul.f32 %v3360, 0.5
        %v3425 = vmul.f32 %v3361, 0.5
        %v3426 = vmul.f32 %v3362, 0.5
        %v3427 = vmul.f32 %v3363, 0.5
        %v3428 = vmul.f32 %v3364, 0.5
        %v3429 = vmul.f32 %v3365, 0.5
        %v3430 = vmul.f32 %v3366, 0.5
        %v3431 = vmul.f32 %v3367, 0.5
        %v3432 = vmul.f32 %v3368, 0.5
        %v3433 = vmul.f32 %v3369, 0.5
        %v3434 = vmul.f32 %v3370, 0.5
        %v3435 = vmul.f32 %v3371, 0.5
        %v3436 = vmul.f32 %v3372, 0.5
        %v3437 = vmul.f32 %v3373, 0.5
        %v3438 = vmul.f32 %v3374, 0.5
        %v3439 = vmul.f32 %v3375, 0.5
        %v3440 = vmul.f32 %v3376, 0.5
        %v3441 = vmul.f32 %v3377, 0.5
        %v3442 = vmul.f32 %v3378, 0.5
        %v3443 = vmul.f32 %v3379, 0.5
        %v3444 = vmul.f32 %v3380, 0.5
        %v3445 = vmul.f32 %v3381, 0.5
        %v3446 = vmul.f32 %v3382, 0.5
        %v3447 = vmul.f32 %v3383, 0.5
        %v3448 = vmul.f32 %v3384, 0.5
        %v3449 = vmul.f32 %v3385, 0.5
        %v3450 = vmul.f32 %v3386, 0.5
        %v3451 = vmul.f32 %v3387, 0.5
        %v3452 = vmul.f32 %v3388, 0.5
        %v3453 = vmul.f32 %v3389, 0.5
        %v3454 = vmul.f32 %v3390, 0.5
        %v3455 = vmul.f32 %v3391, 0.5
        %v3456 = vmul.f32 %v3392, 0.5
        %v3457 = vmul.f32 %v3393, 0.5
        %v3458 = vmul.f32 %v3394, 0.5
        %v3459 = vmul.f32 %v3395, 0.5
        %v3460 = vmul.f32 %v3396, 0.5
        %v3461 = vmul.f32 %v3397, 0.5
        %v3462 = vmul.f32 %v3398, 0.5
        %v3463 = vmul.f32 %v3399, 0.5
        %v3464 = vmul.f32 %v3400, 0.5
        %v3465 = vmul.f32 %v3401, 0.5
        %v3466 = vmul.f32 %v3402, 0.5
        %v3467 = vmul.f32 %v3403, 0.5
        %v3468 = vmul.f32 %v3404, 0.5
        %v3469 = vmul.f32 %v3405, 0.5
        %v3470 = vmul.f32 %v3406, 0.5
        %v3471 = vmul.f32 %v3407, 0.5
        %v3472 = vmul.f32 %v3408, 0.5
        %v3473 = vmul.f32 %v3409, 0.5
        %v3474 = vmul.f32 %v3410, 0.5
        %v3475 = vmul.f32 %v3411, 0.5
        %v3476 = vmul.f32 %v3412, 0.5
        %v3477 = vmul.f32 %v3413, 0.5
        %v3478 = vmul.f32 %v3414, 0.5
        %v3479 = vmul.f32 %v3415, 0.5
        %v3480 = vmul.f32 %v3416, 0.5
        %v3481 = vmul.f32 %v3417, 0.5
        %v3482 = vmul.f32 %v3418, 0.5
        %v3483 = vmul.f32 %v3419, 0.5
        %v3484 = vmul.f32 %v3420, 0.5
        %v3485 = vmul.f32 %v3421, 0.5
        %v3486 = vmul.f32 %v3422, 0.5
        %v3487 = vadd.f32 %v3423, 0.5
        %v3488 = vadd.f32 %v3424, 0.5
        %v3489 = vadd.f32 %v3425, 0.5
        %v3490 = vadd.f32 %v3426, 0.5
        %v3491 = vadd.f32 %v3427, 0.5
        %v3492 = vadd.f32 %v3428, 0.5
        %v3493 = vadd.f32 %v3429, 0.5
        %v3494 = vadd.f32 %v3430, 0.5
        %v3495 = vadd.f32 %v3431, 0.5
        %v3496 = vadd.f32 %v3432, 0.5
        %v3497 = vadd.f32 %v3433, 0.5
        %v3498 = vadd.f32 %v3434, 0.5
        %v3499 = vadd.f32 %v3435, 0.5
        %v3500 = vadd.f32 %v3436, 0.5
        %v3501 = vadd.f32 %v3437, 0.5
        %v3502 = vadd.f32 %v3438, 0.5
        %v3503 = vadd.f32 %v3439, 0.5
        %v3504 = vadd.f32 %v3440, 0.5
        %v3505 = vadd.f32 %v3441, 0.5
        %v3506 = vadd.f32 %v3442, 0.5
        %v3507 = vadd.f32 %v3443, 0.5
        %v3508 = vadd.f32 %v3444, 0.5
        %v3509 = vadd.f32 %v3445, 0.5
        %v3510 = vadd.f32 %v3446, 0.5
        %v3511 = vadd.f32 %v3447, 0.5
        %v3512 = vadd.f32 %v3448, 0.5
        %v3513 = vadd.f32 %v3449, 0.5
        %v3514 = vadd.f32 %v3450, 0.5
        %v3515 = vadd.f32 %v3451, 0.5
        %v3516 = vadd.f32 %v3452, 0.5
        %v3517 = vadd.f32 %v3453, 0.5
        %v3518 = vadd.f32 %v3454, 0.5
        %v3519 = vadd.f32 %v3455, 0.5
        %v3520 = vadd.f32 %v3456, 0.5
        %v3521 = vadd.f32 %v3457, 0.5
        %v3522 = vadd.f32 %v3458, 0.5
        %v3523 = vadd.f32 %v3459, 0.5
        %v3524 = vadd.f32 %v3460, 0.5
        %v3525 = vadd.f32 %v3461, 0.5
        %v3526 = vadd.f32 %v3462, 0.5
        %v3527 = vadd.f32 %v3463, 0.5
        %v3528 = vadd.f32 %v3464, 0.5
        %v3529 = vadd.f32 %v3465, 0.5
        %v3530 = vadd.f32 %v3466, 0.5
        %v3531 = vadd.f32 %v3467, 0.5
        %v3532 = vadd.f32 %v3468, 0.5
        %v3533 = vadd.f32 %v3469, 0.5
        %v3534 = vadd.f32 %v3470, 0.5
        %v3535 = vadd.f32 %v3471, 0.5
        %v3536 = vadd.f32 %v3472, 0.5
        %v3537 = vadd.f32 %v3473, 0.5
        %v3538 = vadd.f32 %v3474, 0.5
        %v3539 = vadd.f32 %v3475, 0.5
        %v3540 = vadd.f32 %v3476, 0.5
        %v3541 = vadd.f32 %v3477, 0.5
        %v3542 = vadd.f32 %v3478, 0.5
        %v3543 = vadd.f32 %v3479, 0.5
        %v3544 = vadd.f32 %v3480, 0.5
        %v3545 = vadd.f32 %v3481, 0.5
        %v3546 = vadd.f32 %v3482, 0.5
        %v3547 = vadd.f32 %v3483, 0.5
        %v3548 = vadd.f32 %v3484, 0.5
        %v3549 = vadd.f32 %v3485, 0.5
        %v3550 = vadd.f32 %v3486, 0.5
        %v3551 = vmul.f32 %v3038, %v3487
        %v3552 = vmul.f32 %v3216, %v3488
        %v3553 = vmul.f32 %v3040, %v3489
        %v3554 = vmul.f32 %v3218, %v3490
        %v3555 = vmul.f32 %v3043, %v3491
        %v3556 = vmul.f32 %v3221, %v3492
        %v3557 = vmul.f32 %v3045, %v3493
        %v3558 = vmul.f32 %v3223, %v3494
        %v3559 = vmul.f32 %v3048, %v3495
        %v3560 = vmul.f32 %v3226, %v3496
        %v3561 = vmul.f32 %v3050, %v3497
        %v3562 = vmul.f32 %v3228, %v3498
        %v3563 = vmul.f32 %v3053, %v3499
        %v3564 = vmul.f32 %v3231, %v3500
        %v3565 = vmul.f32 %v3055, %v3501
        %v3566 = vmul.f32 %v3233, %v3502
        %v3567 = vmul.f32 %v3058, %v3503
        %v3568 = vmul.f32 %v3236, %v3504
        %v3569 = vmul.f32 %v3060, %v3505
        %v3570 = vmul.f32 %v3238, %v3506
        %v3571 = vmul.f32 %v3063, %v3507
        %v3572 = vmul.f32 %v3241, %v3508
        %v3573 = vmul.f32 %v3065, %v3509
        %v3574 = vmul.f32 %v3243, %v3510
        %v3575 = vmul.f32 %v3068, %v3511
        %v3576 = vmul.f32 %v3246, %v3512
        %v3577 = vmul.f32 %v3070, %v3513
        %v3578 = vmul.f32 %v3248, %v3514
        %v3579 = vmul.f32 %v3073, %v3515
        %v3580 = vmul.f32 %v3251, %v3516
        %v3581 = vmul.f32 %v3075, %v3517
        %v3582 = vmul.f32 %v3253, %v3518
        %v3583 = vmul.f32 %v3078, %v3519
        %v3584 = vmul.f32 %v3256, %v3520
        %v3585 = vmul.f32 %v3080, %v3521
        %v3586 = vmul.f32 %v3258, %v3522
        %v3587 = vmul.f32 %v3083, %v3523
        %v3588 = vmul.f32 %v3261, %v3524
        %v3589 = vmul.f32 %v3085, %v3525
        %v3590 = vmul.f32 %v3263, %v3526
        %v3591 = vmul.f32 %v3088, %v3527
        %v3592 = vmul.f32 %v3266, %v3528
        %v3593 = vmul.f32 %v3090, %v3529
        %v3594 = vmul.f32 %v3268, %v3530
        %v3595 = vmul.f32 %v3093, %v3531
        %v3596 = vmul.f32 %v3271, %v3532
        %v3597 = vmul.f32 %v3095, %v3533
        %v3598 = vmul.f32 %v3273, %v3534
        %v3599 = vmul.f32 %v3098, %v3535
        %v3600 = vmul.f32 %v3276, %v3536
        %v3601 = vmul.f32 %v3100, %v3537
        %v3602 = vmul.f32 %v3278, %v3538
        %v3603 = vmul.f32 %v3103, %v3539
        %v3604 = vmul.f32 %v3281, %v3540
        %v3605 = vmul.f32 %v3105, %v3541
        %v3606 = vmul.f32 %v3283, %v3542
        %v3607 = vmul.f32 %v3108, %v3543
        %v3608 = vmul.f32 %v3286, %v3544
        %v3609 = vmul.f32 %v3110, %v3545
        %v3610 = vmul.f32 %v3288, %v3546
        %v3611 = vmul.f32 %v3113, %v3547
        %v3612 = vmul.f32 %v3291, %v3548
        %v3613 = vmul.f32 %v3115, %v3549
        %v3614 = vmul.f32 %v3293, %v3550
        %v3615 = vpack.c.bf16 %v3553, %v3551
        %v3616 = vpack.c.bf16 %v3554, %v3552
        %v3617 = vpack.c.bf16 %v3557, %v3555
        %v3618 = vpack.c.bf16 %v3558, %v3556
        %v3619 = vpack.c.bf16 %v3561, %v3559
        %v3620 = vpack.c.bf16 %v3562, %v3560
        %v3621 = vpack.c.bf16 %v3565, %v3563
        %v3622 = vpack.c.bf16 %v3566, %v3564
        %v3623 = vpack.c.bf16 %v3569, %v3567
        %v3624 = vpack.c.bf16 %v3570, %v3568
        %v3625 = vpack.c.bf16 %v3573, %v3571
        %v3626 = vpack.c.bf16 %v3574, %v3572
        %v3627 = vpack.c.bf16 %v3577, %v3575
        %v3628 = vpack.c.bf16 %v3578, %v3576
        %v3629 = vpack.c.bf16 %v3581, %v3579
        %v3630 = vpack.c.bf16 %v3582, %v3580
        %v3631 = vpack.c.bf16 %v3585, %v3583
        %v3632 = vpack.c.bf16 %v3586, %v3584
        %v3633 = vpack.c.bf16 %v3589, %v3587
        %v3634 = vpack.c.bf16 %v3590, %v3588
        %v3635 = vpack.c.bf16 %v3593, %v3591
        %v3636 = vpack.c.bf16 %v3594, %v3592
        %v3637 = vpack.c.bf16 %v3597, %v3595
        %v3638 = vpack.c.bf16 %v3598, %v3596
        %v3639 = vpack.c.bf16 %v3601, %v3599
        %v3640 = vpack.c.bf16 %v3602, %v3600
        %v3641 = vpack.c.bf16 %v3605, %v3603
        %v3642 = vpack.c.bf16 %v3606, %v3604
        %v3643 = vpack.c.bf16 %v3609, %v3607
        %v3644 = vpack.c.bf16 %v3610, %v3608
        %v3645 = vpack.c.bf16 %v3613, %v3611
        %v3646 = vpack.c.bf16 %v3614, %v3612
        %s3647 = scalar_lea.vmem [#allocation2], 768
        %v3648 = vld [vmem:[%s3647] sm:$0xff]
        %v3649 = vld [vmem:[%s3647 + $0x8] sm:$0xff]
        %v3650 = vld [vmem:[%s3647 + $0x10] sm:$0xff]
        %v3651 = vld [vmem:[%s3647 + $0x18] sm:$0xff]
        %v3652 = vld [vmem:[%s3647 + $0x20] sm:$0xff]
        %v3653 = vld [vmem:[%s3647 + $0x28] sm:$0xff]
        %v3654 = vld [vmem:[%s3647 + $0x30] sm:$0xff]
        %v3655 = vld [vmem:[%s3647 + $0x38] sm:$0xff]
        %v3656 = vld [vmem:[%s3647 + $0x40] sm:$0xff]
        %v3657 = vld [vmem:[%s3647 + $0x48] sm:$0xff]
        %v3658 = vld [vmem:[%s3647 + $0x50] sm:$0xff]
        %v3659 = vld [vmem:[%s3647 + $0x58] sm:$0xff]
        %v3660 = vld [vmem:[%s3647 + $0x60] sm:$0xff]
        %v3661 = vld [vmem:[%s3647 + $0x68] sm:$0xff]
        %v3662 = vld [vmem:[%s3647 + $0x70] sm:$0xff]
        %v3663 = vld [vmem:[%s3647 + $0x78] sm:$0xff]
        %v3664 = vld [vmem:[%s3647 + $0x80] sm:$0xff]
        %v3665 = vld [vmem:[%s3647 + $0x88] sm:$0xff]
        %v3666 = vld [vmem:[%s3647 + $0x90] sm:$0xff]
        %v3667 = vld [vmem:[%s3647 + $0x98] sm:$0xff]
        %v3668 = vld [vmem:[%s3647 + $0xa0] sm:$0xff]
        %v3669 = vld [vmem:[%s3647 + $0xa8] sm:$0xff]
        %v3670 = vld [vmem:[%s3647 + $0xb0] sm:$0xff]
        %v3671 = vld [vmem:[%s3647 + $0xb8] sm:$0xff]
        %v3672 = vld [vmem:[%s3647 + $0xc0] sm:$0xff]
        %v3673 = vld [vmem:[%s3647 + $0xc8] sm:$0xff]
        %v3674 = vld [vmem:[%s3647 + $0xd0] sm:$0xff]
        %v3675 = vld [vmem:[%s3647 + $0xd8] sm:$0xff]
        %v3676 = vld [vmem:[%s3647 + $0xe0] sm:$0xff]
        %v3677 = vld [vmem:[%s3647 + $0xe8] sm:$0xff]
        %v3678 = vld [vmem:[%s3647 + $0xf0] sm:$0xff]
        %v3679 = vld [vmem:[%s3647 + $0xf8] sm:$0xff]
        %s3680 = scalar_lea.vmem %s4, 4
        %v3681 = vld [vmem:[%s3680] ss:$8 sm:$0x3]
        %v3683 = vperm.slane %v3681, 0
        %v3684 = vperm.slane %v3681, 1
        %v3719 = vunpack.c.l.b16 %v3648
        %v3720 = vunpack.c.h.b16 %v3648
        %v3721 = vunpack.c.l.b16 %v3649
        %v3722 = vunpack.c.h.b16 %v3649
        %v3723 = vunpack.c.l.b16 %v3650
        %v3724 = vunpack.c.h.b16 %v3650
        %v3725 = vunpack.c.l.b16 %v3651
        %v3726 = vunpack.c.h.b16 %v3651
        %v3727 = vunpack.c.l.b16 %v3652
        %v3728 = vunpack.c.h.b16 %v3652
        %v3729 = vunpack.c.l.b16 %v3653
        %v3730 = vunpack.c.h.b16 %v3653
        %v3731 = vunpack.c.l.b16 %v3654
        %v3732 = vunpack.c.h.b16 %v3654
        %v3733 = vunpack.c.l.b16 %v3655
        %v3734 = vunpack.c.h.b16 %v3655
        %v3735 = vunpack.c.l.b16 %v3656
        %v3736 = vunpack.c.h.b16 %v3656
        %v3737 = vunpack.c.l.b16 %v3657
        %v3738 = vunpack.c.h.b16 %v3657
        %v3739 = vunpack.c.l.b16 %v3658
        %v3740 = vunpack.c.h.b16 %v3658
        %v3741 = vunpack.c.l.b16 %v3659
        %v3742 = vunpack.c.h.b16 %v3659
        %v3743 = vunpack.c.l.b16 %v3660
        %v3744 = vunpack.c.h.b16 %v3660
        %v3745 = vunpack.c.l.b16 %v3661
        %v3746 = vunpack.c.h.b16 %v3661
        %v3747 = vunpack.c.l.b16 %v3662
        %v3748 = vunpack.c.h.b16 %v3662
        %v3749 = vunpack.c.l.b16 %v3663
        %v3750 = vunpack.c.h.b16 %v3663
        %v3751 = vunpack.c.l.b16 %v3664
        %v3752 = vunpack.c.h.b16 %v3664
        %v3753 = vunpack.c.l.b16 %v3665
        %v3754 = vunpack.c.h.b16 %v3665
        %v3755 = vunpack.c.l.b16 %v3666
        %v3756 = vunpack.c.h.b16 %v3666
        %v3757 = vunpack.c.l.b16 %v3667
        %v3758 = vunpack.c.h.b16 %v3667
        %v3759 = vunpack.c.l.b16 %v3668
        %v3760 = vunpack.c.h.b16 %v3668
        %v3761 = vunpack.c.l.b16 %v3669
        %v3762 = vunpack.c.h.b16 %v3669
        %v3763 = vunpack.c.l.b16 %v3670
        %v3764 = vunpack.c.h.b16 %v3670
        %v3765 = vunpack.c.l.b16 %v3671
        %v3766 = vunpack.c.h.b16 %v3671
        %v3767 = vunpack.c.l.b16 %v3672
        %v3768 = vunpack.c.h.b16 %v3672
        %v3769 = vunpack.c.l.b16 %v3673
        %v3770 = vunpack.c.h.b16 %v3673
        %v3771 = vunpack.c.l.b16 %v3674
        %v3772 = vunpack.c.h.b16 %v3674
        %v3773 = vunpack.c.l.b16 %v3675
        %v3774 = vunpack.c.h.b16 %v3675
        %v3775 = vunpack.c.l.b16 %v3676
        %v3776 = vunpack.c.h.b16 %v3676
        %v3777 = vunpack.c.l.b16 %v3677
        %v3778 = vunpack.c.h.b16 %v3677
        %v3779 = vunpack.c.l.b16 %v3678
        %v3780 = vunpack.c.h.b16 %v3678
        %v3781 = vunpack.c.l.b16 %v3679
        %v3782 = vunpack.c.h.b16 %v3679
        %v3783 = vpack.c.b16 %v3721, %v3719
        %v3784 = vpack.c.b16 %v3722, %v3720
        %v3785 = vpack.c.b16 %v3725, %v3723
        %v3786 = vpack.c.b16 %v3726, %v3724
        %v3787 = vpack.c.b16 %v3729, %v3727
        %v3788 = vpack.c.b16 %v3730, %v3728
        %v3789 = vpack.c.b16 %v3733, %v3731
        %v3790 = vpack.c.b16 %v3734, %v3732
        %v3791 = vpack.c.b16 %v3737, %v3735
        %v3792 = vpack.c.b16 %v3738, %v3736
        %v3793 = vpack.c.b16 %v3741, %v3739
        %v3794 = vpack.c.b16 %v3742, %v3740
        %v3795 = vpack.c.b16 %v3745, %v3743
        %v3796 = vpack.c.b16 %v3746, %v3744
        %v3797 = vpack.c.b16 %v3749, %v3747
        %v3798 = vpack.c.b16 %v3750, %v3748
        %v3799 = vpack.c.b16 %v3753, %v3751
        %v3800 = vpack.c.b16 %v3754, %v3752
        %v3801 = vpack.c.b16 %v3757, %v3755
        %v3802 = vpack.c.b16 %v3758, %v3756
        %v3803 = vpack.c.b16 %v3761, %v3759
        %v3804 = vpack.c.b16 %v3762, %v3760
        %v3805 = vpack.c.b16 %v3765, %v3763
        %v3806 = vpack.c.b16 %v3766, %v3764
        %v3807 = vpack.c.b16 %v3769, %v3767
        %v3808 = vpack.c.b16 %v3770, %v3768
        %v3809 = vpack.c.b16 %v3773, %v3771
        %v3810 = vpack.c.b16 %v3774, %v3772
        %v3811 = vpack.c.b16 %v3777, %v3775
        %v3812 = vpack.c.b16 %v3778, %v3776
        %v3813 = vpack.c.b16 %v3781, %v3779
        %v3814 = vpack.c.b16 %v3782, %v3780
        %3847 = vmatpush.bf16.msra.mxu0 %v3797
        %3848 = vmatpush.bf16.msra.mxu0 %v3795
        %3849 = vmatpush.bf16.msra.mxu0 %v3793
        %3850 = vmatpush.bf16.msra.mxu0 %v3791
        %3851 = vmatpush.bf16.msra.mxu0 %v3789
        %3852 = vmatpush.bf16.msra.mxu0 %v3787
        %3853 = vmatpush.bf16.msra.mxu0 %v3785
        %3854 = vmatpush.bf16.msra.mxu0 %v3783
        %3855 = vmatmul.bf16.gmra.mxu0 %v3615
        %v3856 = vpop.f32.mrf.mxu0
        %v3857 = vadd.f32 %v3683, %v3856
        %v3858 = vpop.f32.mrf.mxu0
        %v3859 = vadd.f32 %v3683, %v3858
        %3860 = vmatmul.bf16.gmra.mxu0 %v3617
        %v3861 = vpop.f32.mrf.mxu0
        %v3862 = vadd.f32 %v3683, %v3861
        %v3863 = vpop.f32.mrf.mxu0
        %v3864 = vadd.f32 %v3683, %v3863
        %3865 = vmatmul.bf16.gmra.mxu0 %v3619
        %v3866 = vpop.f32.mrf.mxu0
        %v3867 = vadd.f32 %v3683, %v3866
        %v3868 = vpop.f32.mrf.mxu0
        %v3869 = vadd.f32 %v3683, %v3868
        %3870 = vmatmul.bf16.gmra.mxu0 %v3621
        %v3871 = vpop.f32.mrf.mxu0
        %v3872 = vadd.f32 %v3683, %v3871
        %v3873 = vpop.f32.mrf.mxu0
        %v3874 = vadd.f32 %v3683, %v3873
        %3875 = vmatmul.bf16.gmra.mxu0 %v3623
        %v3876 = vpop.f32.mrf.mxu0
        %v3877 = vadd.f32 %v3683, %v3876
        %v3878 = vpop.f32.mrf.mxu0
        %v3879 = vadd.f32 %v3683, %v3878
        %3880 = vmatmul.bf16.gmra.mxu0 %v3625
        %v3881 = vpop.f32.mrf.mxu0
        %v3882 = vadd.f32 %v3683, %v3881
        %v3883 = vpop.f32.mrf.mxu0
        %v3884 = vadd.f32 %v3683, %v3883
        %3885 = vmatmul.bf16.gmra.mxu0 %v3627
        %v3886 = vpop.f32.mrf.mxu0
        %v3887 = vadd.f32 %v3683, %v3886
        %v3888 = vpop.f32.mrf.mxu0
        %v3889 = vadd.f32 %v3683, %v3888
        %3890 = vmatmul.bf16.gmra.mxu0 %v3629
        %v3891 = vpop.f32.mrf.mxu0
        %v3892 = vadd.f32 %v3683, %v3891
        %v3893 = vpop.f32.mrf.mxu0
        %v3894 = vadd.f32 %v3683, %v3893
        %3895 = vmatmul.bf16.gmra.mxu0 %v3631
        %v3896 = vpop.f32.mrf.mxu0
        %v3897 = vadd.f32 %v3683, %v3896
        %v3898 = vpop.f32.mrf.mxu0
        %v3899 = vadd.f32 %v3683, %v3898
        %3900 = vmatmul.bf16.gmra.mxu0 %v3633
        %v3901 = vpop.f32.mrf.mxu0
        %v3902 = vadd.f32 %v3683, %v3901
        %v3903 = vpop.f32.mrf.mxu0
        %v3904 = vadd.f32 %v3683, %v3903
        %3905 = vmatmul.bf16.gmra.mxu0 %v3635
        %v3906 = vpop.f32.mrf.mxu0
        %v3907 = vadd.f32 %v3683, %v3906
        %v3908 = vpop.f32.mrf.mxu0
        %v3909 = vadd.f32 %v3683, %v3908
        %3910 = vmatmul.bf16.gmra.mxu0 %v3637
        %v3911 = vpop.f32.mrf.mxu0
        %v3912 = vadd.f32 %v3683, %v3911
        %v3913 = vpop.f32.mrf.mxu0
        %v3914 = vadd.f32 %v3683, %v3913
        %3915 = vmatmul.bf16.gmra.mxu0 %v3639
        %v3916 = vpop.f32.mrf.mxu0
        %v3917 = vadd.f32 %v3683, %v3916
        %v3918 = vpop.f32.mrf.mxu0
        %v3919 = vadd.f32 %v3683, %v3918
        %3920 = vmatmul.bf16.gmra.mxu0 %v3641
        %v3921 = vpop.f32.mrf.mxu0
        %v3922 = vadd.f32 %v3683, %v3921
        %v3923 = vpop.f32.mrf.mxu0
        %v3924 = vadd.f32 %v3683, %v3923
        %3925 = vmatmul.bf16.gmra.mxu0 %v3643
        %v3926 = vpop.f32.mrf.mxu0
        %v3927 = vadd.f32 %v3683, %v3926
        %v3928 = vpop.f32.mrf.mxu0
        %v3929 = vadd.f32 %v3683, %v3928
        %3930 = vmatmul.bf16.gmra.mxu0 %v3645
        %v3931 = vpop.f32.mrf.mxu0
        %v3932 = vadd.f32 %v3683, %v3931
        %v3933 = vpop.f32.mrf.mxu0
        %v3934 = vadd.f32 %v3683, %v3933
        %3935 = vdwg.mxu0
        %3936 = vmatpush.bf16.msra.mxu0 %v3813
        %3937 = vmatpush.bf16.msra.mxu0 %v3811
        %3938 = vmatpush.bf16.msra.mxu0 %v3809
        %3939 = vmatpush.bf16.msra.mxu0 %v3807
        %3940 = vmatpush.bf16.msra.mxu0 %v3805
        %3941 = vmatpush.bf16.msra.mxu0 %v3803
        %3942 = vmatpush.bf16.msra.mxu0 %v3801
        %3943 = vmatpush.bf16.msra.mxu0 %v3799
        %3944 = vmatmul.bf16.gmra.mxu0 %v3616
        %v3945 = vpop.f32.mrf.mxu0
        %v3946 = vadd.f32 %v3857, %v3945
        %v3947 = vpop.f32.mrf.mxu0
        %v3948 = vadd.f32 %v3859, %v3947
        %3949 = vmatmul.bf16.gmra.mxu0 %v3618
        %v3950 = vpop.f32.mrf.mxu0
        %v3951 = vadd.f32 %v3862, %v3950
        %v3952 = vpop.f32.mrf.mxu0
        %v3953 = vadd.f32 %v3864, %v3952
        %3954 = vmatmul.bf16.gmra.mxu0 %v3620
        %v3955 = vpop.f32.mrf.mxu0
        %v3956 = vadd.f32 %v3867, %v3955
        %v3957 = vpop.f32.mrf.mxu0
        %v3958 = vadd.f32 %v3869, %v3957
        %3959 = vmatmul.bf16.gmra.mxu0 %v3622
        %v3960 = vpop.f32.mrf.mxu0
        %v3961 = vadd.f32 %v3872, %v3960
        %v3962 = vpop.f32.mrf.mxu0
        %v3963 = vadd.f32 %v3874, %v3962
        %3964 = vmatmul.bf16.gmra.mxu0 %v3624
        %v3965 = vpop.f32.mrf.mxu0
        %v3966 = vadd.f32 %v3877, %v3965
        %v3967 = vpop.f32.mrf.mxu0
        %v3968 = vadd.f32 %v3879, %v3967
        %3969 = vmatmul.bf16.gmra.mxu0 %v3626
        %v3970 = vpop.f32.mrf.mxu0
        %v3971 = vadd.f32 %v3882, %v3970
        %v3972 = vpop.f32.mrf.mxu0
        %v3973 = vadd.f32 %v3884, %v3972
        %3974 = vmatmul.bf16.gmra.mxu0 %v3628
        %v3975 = vpop.f32.mrf.mxu0
        %v3976 = vadd.f32 %v3887, %v3975
        %v3977 = vpop.f32.mrf.mxu0
        %v3978 = vadd.f32 %v3889, %v3977
        %3979 = vmatmul.bf16.gmra.mxu0 %v3630
        %v3980 = vpop.f32.mrf.mxu0
        %v3981 = vadd.f32 %v3892, %v3980
        %v3982 = vpop.f32.mrf.mxu0
        %v3983 = vadd.f32 %v3894, %v3982
        %3984 = vmatmul.bf16.gmra.mxu0 %v3632
        %v3985 = vpop.f32.mrf.mxu0
        %v3986 = vadd.f32 %v3897, %v3985
        %v3987 = vpop.f32.mrf.mxu0
        %v3988 = vadd.f32 %v3899, %v3987
        %3989 = vmatmul.bf16.gmra.mxu0 %v3634
        %v3990 = vpop.f32.mrf.mxu0
        %v3991 = vadd.f32 %v3902, %v3990
        %v3992 = vpop.f32.mrf.mxu0
        %v3993 = vadd.f32 %v3904, %v3992
        %3994 = vmatmul.bf16.gmra.mxu0 %v3636
        %v3995 = vpop.f32.mrf.mxu0
        %v3996 = vadd.f32 %v3907, %v3995
        %v3997 = vpop.f32.mrf.mxu0
        %v3998 = vadd.f32 %v3909, %v3997
        %3999 = vmatmul.bf16.gmra.mxu0 %v3638
        %v4000 = vpop.f32.mrf.mxu0
        %v4001 = vadd.f32 %v3912, %v4000
        %v4002 = vpop.f32.mrf.mxu0
        %v4003 = vadd.f32 %v3914, %v4002
        %4004 = vmatmul.bf16.gmra.mxu0 %v3640
        %v4005 = vpop.f32.mrf.mxu0
        %v4006 = vadd.f32 %v3917, %v4005
        %v4007 = vpop.f32.mrf.mxu0
        %v4008 = vadd.f32 %v3919, %v4007
        %4009 = vmatmul.bf16.gmra.mxu0 %v3642
        %v4010 = vpop.f32.mrf.mxu0
        %v4011 = vadd.f32 %v3922, %v4010
        %v4012 = vpop.f32.mrf.mxu0
        %v4013 = vadd.f32 %v3924, %v4012
        %4014 = vmatmul.bf16.gmra.mxu0 %v3644
        %v4015 = vpop.f32.mrf.mxu0
        %v4016 = vadd.f32 %v3927, %v4015
        %v4017 = vpop.f32.mrf.mxu0
        %v4018 = vadd.f32 %v3929, %v4017
        %4019 = vmatmul.bf16.gmra.mxu0 %v3646
        %v4020 = vpop.f32.mrf.mxu0
        %v4021 = vadd.f32 %v3932, %v4020
        %v4022 = vpop.f32.mrf.mxu0
        %v4023 = vadd.f32 %v3934, %v4022
        %4024 = vdwg.mxu0
        %4025 = vmatpush.bf16.msra.mxu0 %v3798
        %4026 = vmatpush.bf16.msra.mxu0 %v3796
        %4027 = vmatpush.bf16.msra.mxu0 %v3794
        %4028 = vmatpush.bf16.msra.mxu0 %v3792
        %4029 = vmatpush.bf16.msra.mxu0 %v3790
        %4030 = vmatpush.bf16.msra.mxu0 %v3788
        %4031 = vmatpush.bf16.msra.mxu0 %v3786
        %4032 = vmatpush.bf16.msra.mxu0 %v3784
        %4033 = vmatmul.bf16.gmra.mxu0 %v3615
        %v4034 = vpop.f32.mrf.mxu0
        %v4035 = vadd.f32 %v3684, %v4034
        %v4036 = vpop.f32.mrf.mxu0
        %v4037 = vadd.f32 %v3684, %v4036
        %4038 = vmatmul.bf16.gmra.mxu0 %v3617
        %v4039 = vpop.f32.mrf.mxu0
        %v4040 = vadd.f32 %v3684, %v4039
        %v4041 = vpop.f32.mrf.mxu0
        %v4042 = vadd.f32 %v3684, %v4041
        %4043 = vmatmul.bf16.gmra.mxu0 %v3619
        %v4044 = vpop.f32.mrf.mxu0
        %v4045 = vadd.f32 %v3684, %v4044
        %v4046 = vpop.f32.mrf.mxu0
        %v4047 = vadd.f32 %v3684, %v4046
        %4048 = vmatmul.bf16.gmra.mxu0 %v3621
        %v4049 = vpop.f32.mrf.mxu0
        %v4050 = vadd.f32 %v3684, %v4049
        %v4051 = vpop.f32.mrf.mxu0
        %v4052 = vadd.f32 %v3684, %v4051
        %4053 = vmatmul.bf16.gmra.mxu0 %v3623
        %v4054 = vpop.f32.mrf.mxu0
        %v4055 = vadd.f32 %v3684, %v4054
        %v4056 = vpop.f32.mrf.mxu0
        %v4057 = vadd.f32 %v3684, %v4056
        %4058 = vmatmul.bf16.gmra.mxu0 %v3625
        %v4059 = vpop.f32.mrf.mxu0
        %v4060 = vadd.f32 %v3684, %v4059
        %v4061 = vpop.f32.mrf.mxu0
        %v4062 = vadd.f32 %v3684, %v4061
        %4063 = vmatmul.bf16.gmra.mxu0 %v3627
        %v4064 = vpop.f32.mrf.mxu0
        %v4065 = vadd.f32 %v3684, %v4064
        %v4066 = vpop.f32.mrf.mxu0
        %v4067 = vadd.f32 %v3684, %v4066
        %4068 = vmatmul.bf16.gmra.mxu0 %v3629
        %v4069 = vpop.f32.mrf.mxu0
        %v4070 = vadd.f32 %v3684, %v4069
        %v4071 = vpop.f32.mrf.mxu0
        %v4072 = vadd.f32 %v3684, %v4071
        %4073 = vmatmul.bf16.gmra.mxu0 %v3631
        %v4074 = vpop.f32.mrf.mxu0
        %v4075 = vadd.f32 %v3684, %v4074
        %v4076 = vpop.f32.mrf.mxu0
        %v4077 = vadd.f32 %v3684, %v4076
        %4078 = vmatmul.bf16.gmra.mxu0 %v3633
        %v4079 = vpop.f32.mrf.mxu0
        %v4080 = vadd.f32 %v3684, %v4079
        %v4081 = vpop.f32.mrf.mxu0
        %v4082 = vadd.f32 %v3684, %v4081
        %4083 = vmatmul.bf16.gmra.mxu0 %v3635
        %v4084 = vpop.f32.mrf.mxu0
        %v4085 = vadd.f32 %v3684, %v4084
        %v4086 = vpop.f32.mrf.mxu0
        %v4087 = vadd.f32 %v3684, %v4086
        %4088 = vmatmul.bf16.gmra.mxu0 %v3637
        %v4089 = vpop.f32.mrf.mxu0
        %v4090 = vadd.f32 %v3684, %v4089
        %v4091 = vpop.f32.mrf.mxu0
        %v4092 = vadd.f32 %v3684, %v4091
        %4093 = vmatmul.bf16.gmra.mxu0 %v3639
        %v4094 = vpop.f32.mrf.mxu0
        %v4095 = vadd.f32 %v3684, %v4094
        %v4096 = vpop.f32.mrf.mxu0
        %v4097 = vadd.f32 %v3684, %v4096
        %4098 = vmatmul.bf16.gmra.mxu0 %v3641
        %v4099 = vpop.f32.mrf.mxu0
        %v4100 = vadd.f32 %v3684, %v4099
        %v4101 = vpop.f32.mrf.mxu0
        %v4102 = vadd.f32 %v3684, %v4101
        %4103 = vmatmul.bf16.gmra.mxu0 %v3643
        %v4104 = vpop.f32.mrf.mxu0
        %v4105 = vadd.f32 %v3684, %v4104
        %v4106 = vpop.f32.mrf.mxu0
        %v4107 = vadd.f32 %v3684, %v4106
        %4108 = vmatmul.bf16.gmra.mxu0 %v3645
        %v4109 = vpop.f32.mrf.mxu0
        %v4110 = vadd.f32 %v3684, %v4109
        %v4111 = vpop.f32.mrf.mxu0
        %v4112 = vadd.f32 %v3684, %v4111
        %4113 = vdwg.mxu0
        %4114 = vmatpush.bf16.msra.mxu0 %v3814
        %4115 = vmatpush.bf16.msra.mxu0 %v3812
        %4116 = vmatpush.bf16.msra.mxu0 %v3810
        %4117 = vmatpush.bf16.msra.mxu0 %v3808
        %4118 = vmatpush.bf16.msra.mxu0 %v3806
        %4119 = vmatpush.bf16.msra.mxu0 %v3804
        %4120 = vmatpush.bf16.msra.mxu0 %v3802
        %4121 = vmatpush.bf16.msra.mxu0 %v3800
        %4122 = vmatmul.bf16.gmra.mxu0 %v3616
        %v4123 = vpop.f32.mrf.mxu0
        %v4124 = vadd.f32 %v4035, %v4123
        %v4125 = vpop.f32.mrf.mxu0
        %v4126 = vadd.f32 %v4037, %v4125
        %4127 = vmatmul.bf16.gmra.mxu0 %v3618
        %v4128 = vpop.f32.mrf.mxu0
        %v4129 = vadd.f32 %v4040, %v4128
        %v4130 = vpop.f32.mrf.mxu0
        %v4131 = vadd.f32 %v4042, %v4130
        %4132 = vmatmul.bf16.gmra.mxu0 %v3620
        %v4133 = vpop.f32.mrf.mxu0
        %v4134 = vadd.f32 %v4045, %v4133
        %v4135 = vpop.f32.mrf.mxu0
        %v4136 = vadd.f32 %v4047, %v4135
        %4137 = vmatmul.bf16.gmra.mxu0 %v3622
        %v4138 = vpop.f32.mrf.mxu0
        %v4139 = vadd.f32 %v4050, %v4138
        %v4140 = vpop.f32.mrf.mxu0
        %v4141 = vadd.f32 %v4052, %v4140
        %4142 = vmatmul.bf16.gmra.mxu0 %v3624
        %v4143 = vpop.f32.mrf.mxu0
        %v4144 = vadd.f32 %v4055, %v4143
        %v4145 = vpop.f32.mrf.mxu0
        %v4146 = vadd.f32 %v4057, %v4145
        %4147 = vmatmul.bf16.gmra.mxu0 %v3626
        %v4148 = vpop.f32.mrf.mxu0
        %v4149 = vadd.f32 %v4060, %v4148
        %v4150 = vpop.f32.mrf.mxu0
        %v4151 = vadd.f32 %v4062, %v4150
        %4152 = vmatmul.bf16.gmra.mxu0 %v3628
        %v4153 = vpop.f32.mrf.mxu0
        %v4154 = vadd.f32 %v4065, %v4153
        %v4155 = vpop.f32.mrf.mxu0
        %v4156 = vadd.f32 %v4067, %v4155
        %4157 = vmatmul.bf16.gmra.mxu0 %v3630
        %v4158 = vpop.f32.mrf.mxu0
        %v4159 = vadd.f32 %v4070, %v4158
        %v4160 = vpop.f32.mrf.mxu0
        %v4161 = vadd.f32 %v4072, %v4160
        %4162 = vmatmul.bf16.gmra.mxu0 %v3632
        %v4163 = vpop.f32.mrf.mxu0
        %v4164 = vadd.f32 %v4075, %v4163
        %v4165 = vpop.f32.mrf.mxu0
        %v4166 = vadd.f32 %v4077, %v4165
        %4167 = vmatmul.bf16.gmra.mxu0 %v3634
        %v4168 = vpop.f32.mrf.mxu0
        %v4169 = vadd.f32 %v4080, %v4168
        %v4170 = vpop.f32.mrf.mxu0
        %v4171 = vadd.f32 %v4082, %v4170
        %4172 = vmatmul.bf16.gmra.mxu0 %v3636
        %v4173 = vpop.f32.mrf.mxu0
        %v4174 = vadd.f32 %v4085, %v4173
        %v4175 = vpop.f32.mrf.mxu0
        %v4176 = vadd.f32 %v4087, %v4175
        %4177 = vmatmul.bf16.gmra.mxu0 %v3638
        %v4178 = vpop.f32.mrf.mxu0
        %v4179 = vadd.f32 %v4090, %v4178
        %v4180 = vpop.f32.mrf.mxu0
        %v4181 = vadd.f32 %v4092, %v4180
        %4182 = vmatmul.bf16.gmra.mxu0 %v3640
        %v4183 = vpop.f32.mrf.mxu0
        %v4184 = vadd.f32 %v4095, %v4183
        %v4185 = vpop.f32.mrf.mxu0
        %v4186 = vadd.f32 %v4097, %v4185
        %4187 = vmatmul.bf16.gmra.mxu0 %v3642
        %v4188 = vpop.f32.mrf.mxu0
        %v4189 = vadd.f32 %v4100, %v4188
        %v4190 = vpop.f32.mrf.mxu0
        %v4191 = vadd.f32 %v4102, %v4190
        %4192 = vmatmul.bf16.gmra.mxu0 %v3644
        %v4193 = vpop.f32.mrf.mxu0
        %v4194 = vadd.f32 %v4105, %v4193
        %v4195 = vpop.f32.mrf.mxu0
        %v4196 = vadd.f32 %v4107, %v4195
        %4197 = vmatmul.bf16.gmra.mxu0 %v3646
        %v4198 = vpop.f32.mrf.mxu0
        %v4199 = vadd.f32 %v4110, %v4198
        %v4200 = vpop.f32.mrf.mxu0
        %v4201 = vadd.f32 %v4112, %v4200
        %4202 = vdwg.mxu0
        %v4203 = vmul.f32 %v3946, 0.5
        %v4204 = vmul.f32 %v4124, 0.5
        %v4205 = vmul.f32 %v3948, 0.5
        %v4206 = vmul.f32 %v4126, 0.5
        %v4207 = vmul.f32 %v3951, 0.5
        %v4208 = vmul.f32 %v4129, 0.5
        %v4209 = vmul.f32 %v3953, 0.5
        %v4210 = vmul.f32 %v4131, 0.5
        %v4211 = vmul.f32 %v3956, 0.5
        %v4212 = vmul.f32 %v4134, 0.5
        %v4213 = vmul.f32 %v3958, 0.5
        %v4214 = vmul.f32 %v4136, 0.5
        %v4215 = vmul.f32 %v3961, 0.5
        %v4216 = vmul.f32 %v4139, 0.5
        %v4217 = vmul.f32 %v3963, 0.5
        %v4218 = vmul.f32 %v4141, 0.5
        %v4219 = vmul.f32 %v3966, 0.5
        %v4220 = vmul.f32 %v4144, 0.5
        %v4221 = vmul.f32 %v3968, 0.5
        %v4222 = vmul.f32 %v4146, 0.5
        %v4223 = vmul.f32 %v3971, 0.5
        %v4224 = vmul.f32 %v4149, 0.5
        %v4225 = vmul.f32 %v3973, 0.5
        %v4226 = vmul.f32 %v4151, 0.5
        %v4227 = vmul.f32 %v3976, 0.5
        %v4228 = vmul.f32 %v4154, 0.5
        %v4229 = vmul.f32 %v3978, 0.5
        %v4230 = vmul.f32 %v4156, 0.5
        %v4231 = vmul.f32 %v3981, 0.5
        %v4232 = vmul.f32 %v4159, 0.5
        %v4233 = vmul.f32 %v3983, 0.5
        %v4234 = vmul.f32 %v4161, 0.5
        %v4235 = vmul.f32 %v3986, 0.5
        %v4236 = vmul.f32 %v4164, 0.5
        %v4237 = vmul.f32 %v3988, 0.5
        %v4238 = vmul.f32 %v4166, 0.5
        %v4239 = vmul.f32 %v3991, 0.5
        %v4240 = vmul.f32 %v4169, 0.5
        %v4241 = vmul.f32 %v3993, 0.5
        %v4242 = vmul.f32 %v4171, 0.5
        %v4243 = vmul.f32 %v3996, 0.5
        %v4244 = vmul.f32 %v4174, 0.5
        %v4245 = vmul.f32 %v3998, 0.5
        %v4246 = vmul.f32 %v4176, 0.5
        %v4247 = vmul.f32 %v4001, 0.5
        %v4248 = vmul.f32 %v4179, 0.5
        %v4249 = vmul.f32 %v4003, 0.5
        %v4250 = vmul.f32 %v4181, 0.5
        %v4251 = vmul.f32 %v4006, 0.5
        %v4252 = vmul.f32 %v4184, 0.5
        %v4253 = vmul.f32 %v4008, 0.5
        %v4254 = vmul.f32 %v4186, 0.5
        %v4255 = vmul.f32 %v4011, 0.5
        %v4256 = vmul.f32 %v4189, 0.5
        %v4257 = vmul.f32 %v4013, 0.5
        %v4258 = vmul.f32 %v4191, 0.5
        %v4259 = vmul.f32 %v4016, 0.5
        %v4260 = vmul.f32 %v4194, 0.5
        %v4261 = vmul.f32 %v4018, 0.5
        %v4262 = vmul.f32 %v4196, 0.5
        %v4263 = vmul.f32 %v4021, 0.5
        %v4264 = vmul.f32 %v4199, 0.5
        %v4265 = vmul.f32 %v4023, 0.5
        %v4266 = vmul.f32 %v4201, 0.5
        %v4267 = vtanh.pop %v4203
        %v4268 = vtanh.pop %v4204
        %v4269 = vtanh.pop %v4205
        %v4270 = vtanh.pop %v4206
        %v4271 = vtanh.pop %v4207
        %v4272 = vtanh.pop %v4208
        %v4273 = vtanh.pop %v4209
        %v4274 = vtanh.pop %v4210
        %v4275 = vtanh.pop %v4211
        %v4276 = vtanh.pop %v4212
        %v4277 = vtanh.pop %v4213
        %v4278 = vtanh.pop %v4214
        %v4279 = vtanh.pop %v4215
        %v4280 = vtanh.pop %v4216
        %v4281 = vtanh.pop %v4217
        %v4282 = vtanh.pop %v4218
        %v4283 = vtanh.pop %v4219
        %v4284 = vtanh.pop %v4220
        %v4285 = vtanh.pop %v4221
        %v4286 = vtanh.pop %v4222
        %v4287 = vtanh.pop %v4223
        %v4288 = vtanh.pop %v4224
        %v4289 = vtanh.pop %v4225
        %v4290 = vtanh.pop %v4226
        %v4291 = vtanh.pop %v4227
        %v4292 = vtanh.pop %v4228
        %v4293 = vtanh.pop %v4229
        %v4294 = vtanh.pop %v4230
        %v4295 = vtanh.pop %v4231
        %v4296 = vtanh.pop %v4232
        %v4297 = vtanh.pop %v4233
        %v4298 = vtanh.pop %v4234
        %v4299 = vtanh.pop %v4235
        %v4300 = vtanh.pop %v4236
        %v4301 = vtanh.pop %v4237
        %v4302 = vtanh.pop %v4238
        %v4303 = vtanh.pop %v4239
        %v4304 = vtanh.pop %v4240
        %v4305 = vtanh.pop %v4241
        %v4306 = vtanh.pop %v4242
        %v4307 = vtanh.pop %v4243
        %v4308 = vtanh.pop %v4244
        %v4309 = vtanh.pop %v4245
        %v4310 = vtanh.pop %v4246
        %v4311 = vtanh.pop %v4247
        %v4312 = vtanh.pop %v4248
        %v4313 = vtanh.pop %v4249
        %v4314 = vtanh.pop %v4250
        %v4315 = vtanh.pop %v4251
        %v4316 = vtanh.pop %v4252
        %v4317 = vtanh.pop %v4253
        %v4318 = vtanh.pop %v4254
        %v4319 = vtanh.pop %v4255
        %v4320 = vtanh.pop %v4256
        %v4321 = vtanh.pop %v4257
        %v4322 = vtanh.pop %v4258
        %v4323 = vtanh.pop %v4259
        %v4324 = vtanh.pop %v4260
        %v4325 = vtanh.pop %v4261
        %v4326 = vtanh.pop %v4262
        %v4327 = vtanh.pop %v4263
        %v4328 = vtanh.pop %v4264
        %v4329 = vtanh.pop %v4265
        %v4330 = vtanh.pop %v4266
        %v4331 = vmul.f32 %v4267, 0.5
        %v4332 = vmul.f32 %v4268, 0.5
        %v4333 = vmul.f32 %v4269, 0.5
        %v4334 = vmul.f32 %v4270, 0.5
        %v4335 = vmul.f32 %v4271, 0.5
        %v4336 = vmul.f32 %v4272, 0.5
        %v4337 = vmul.f32 %v4273, 0.5
        %v4338 = vmul.f32 %v4274, 0.5
        %v4339 = vmul.f32 %v4275, 0.5
        %v4340 = vmul.f32 %v4276, 0.5
        %v4341 = vmul.f32 %v4277, 0.5
        %v4342 = vmul.f32 %v4278, 0.5
        %v4343 = vmul.f32 %v4279, 0.5
        %v4344 = vmul.f32 %v4280, 0.5
        %v4345 = vmul.f32 %v4281, 0.5
        %v4346 = vmul.f32 %v4282, 0.5
        %v4347 = vmul.f32 %v4283, 0.5
        %v4348 = vmul.f32 %v4284, 0.5
        %v4349 = vmul.f32 %v4285, 0.5
        %v4350 = vmul.f32 %v4286, 0.5
        %v4351 = vmul.f32 %v4287, 0.5
        %v4352 = vmul.f32 %v4288, 0.5
        %v4353 = vmul.f32 %v4289, 0.5
        %v4354 = vmul.f32 %v4290, 0.5
        %v4355 = vmul.f32 %v4291, 0.5
        %v4356 = vmul.f32 %v4292, 0.5
        %v4357 = vmul.f32 %v4293, 0.5
        %v4358 = vmul.f32 %v4294, 0.5
        %v4359 = vmul.f32 %v4295, 0.5
        %v4360 = vmul.f32 %v4296, 0.5
        %v4361 = vmul.f32 %v4297, 0.5
        %v4362 = vmul.f32 %v4298, 0.5
        %v4363 = vmul.f32 %v4299, 0.5
        %v4364 = vmul.f32 %v4300, 0.5
        %v4365 = vmul.f32 %v4301, 0.5
        %v4366 = vmul.f32 %v4302, 0.5
        %v4367 = vmul.f32 %v4303, 0.5
        %v4368 = vmul.f32 %v4304, 0.5
        %v4369 = vmul.f32 %v4305, 0.5
        %v4370 = vmul.f32 %v4306, 0.5
        %v4371 = vmul.f32 %v4307, 0.5
        %v4372 = vmul.f32 %v4308, 0.5
        %v4373 = vmul.f32 %v4309, 0.5
        %v4374 = vmul.f32 %v4310, 0.5
        %v4375 = vmul.f32 %v4311, 0.5
        %v4376 = vmul.f32 %v4312, 0.5
        %v4377 = vmul.f32 %v4313, 0.5
        %v4378 = vmul.f32 %v4314, 0.5
        %v4379 = vmul.f32 %v4315, 0.5
        %v4380 = vmul.f32 %v4316, 0.5
        %v4381 = vmul.f32 %v4317, 0.5
        %v4382 = vmul.f32 %v4318, 0.5
        %v4383 = vmul.f32 %v4319, 0.5
        %v4384 = vmul.f32 %v4320, 0.5
        %v4385 = vmul.f32 %v4321, 0.5
        %v4386 = vmul.f32 %v4322, 0.5
        %v4387 = vmul.f32 %v4323, 0.5
        %v4388 = vmul.f32 %v4324, 0.5
        %v4389 = vmul.f32 %v4325, 0.5
        %v4390 = vmul.f32 %v4326, 0.5
        %v4391 = vmul.f32 %v4327, 0.5
        %v4392 = vmul.f32 %v4328, 0.5
        %v4393 = vmul.f32 %v4329, 0.5
        %v4394 = vmul.f32 %v4330, 0.5
        %v4395 = vadd.f32 %v4331, 0.5
        %v4396 = vadd.f32 %v4332, 0.5
        %v4397 = vadd.f32 %v4333, 0.5
        %v4398 = vadd.f32 %v4334, 0.5
        %v4399 = vadd.f32 %v4335, 0.5
        %v4400 = vadd.f32 %v4336, 0.5
        %v4401 = vadd.f32 %v4337, 0.5
        %v4402 = vadd.f32 %v4338, 0.5
        %v4403 = vadd.f32 %v4339, 0.5
        %v4404 = vadd.f32 %v4340, 0.5
        %v4405 = vadd.f32 %v4341, 0.5
        %v4406 = vadd.f32 %v4342, 0.5
        %v4407 = vadd.f32 %v4343, 0.5
        %v4408 = vadd.f32 %v4344, 0.5
        %v4409 = vadd.f32 %v4345, 0.5
        %v4410 = vadd.f32 %v4346, 0.5
        %v4411 = vadd.f32 %v4347, 0.5
        %v4412 = vadd.f32 %v4348, 0.5
        %v4413 = vadd.f32 %v4349, 0.5
        %v4414 = vadd.f32 %v4350, 0.5
        %v4415 = vadd.f32 %v4351, 0.5
        %v4416 = vadd.f32 %v4352, 0.5
        %v4417 = vadd.f32 %v4353, 0.5
        %v4418 = vadd.f32 %v4354, 0.5
        %v4419 = vadd.f32 %v4355, 0.5
        %v4420 = vadd.f32 %v4356, 0.5
        %v4421 = vadd.f32 %v4357, 0.5
        %v4422 = vadd.f32 %v4358, 0.5
        %v4423 = vadd.f32 %v4359, 0.5
        %v4424 = vadd.f32 %v4360, 0.5
        %v4425 = vadd.f32 %v4361, 0.5
        %v4426 = vadd.f32 %v4362, 0.5
        %v4427 = vadd.f32 %v4363, 0.5
        %v4428 = vadd.f32 %v4364, 0.5
        %v4429 = vadd.f32 %v4365, 0.5
        %v4430 = vadd.f32 %v4366, 0.5
        %v4431 = vadd.f32 %v4367, 0.5
        %v4432 = vadd.f32 %v4368, 0.5
        %v4433 = vadd.f32 %v4369, 0.5
        %v4434 = vadd.f32 %v4370, 0.5
        %v4435 = vadd.f32 %v4371, 0.5
        %v4436 = vadd.f32 %v4372, 0.5
        %v4437 = vadd.f32 %v4373, 0.5
        %v4438 = vadd.f32 %v4374, 0.5
        %v4439 = vadd.f32 %v4375, 0.5
        %v4440 = vadd.f32 %v4376, 0.5
        %v4441 = vadd.f32 %v4377, 0.5
        %v4442 = vadd.f32 %v4378, 0.5
        %v4443 = vadd.f32 %v4379, 0.5
        %v4444 = vadd.f32 %v4380, 0.5
        %v4445 = vadd.f32 %v4381, 0.5
        %v4446 = vadd.f32 %v4382, 0.5
        %v4447 = vadd.f32 %v4383, 0.5
        %v4448 = vadd.f32 %v4384, 0.5
        %v4449 = vadd.f32 %v4385, 0.5
        %v4450 = vadd.f32 %v4386, 0.5
        %v4451 = vadd.f32 %v4387, 0.5
        %v4452 = vadd.f32 %v4388, 0.5
        %v4453 = vadd.f32 %v4389, 0.5
        %v4454 = vadd.f32 %v4390, 0.5
        %v4455 = vadd.f32 %v4391, 0.5
        %v4456 = vadd.f32 %v4392, 0.5
        %v4457 = vadd.f32 %v4393, 0.5
        %v4458 = vadd.f32 %v4394, 0.5
        %v4459 = vmul.f32 %v3946, %v4395
        %v4460 = vmul.f32 %v4124, %v4396
        %v4461 = vmul.f32 %v3948, %v4397
        %v4462 = vmul.f32 %v4126, %v4398
        %v4463 = vmul.f32 %v3951, %v4399
        %v4464 = vmul.f32 %v4129, %v4400
        %v4465 = vmul.f32 %v3953, %v4401
        %v4466 = vmul.f32 %v4131, %v4402
        %v4467 = vmul.f32 %v3956, %v4403
        %v4468 = vmul.f32 %v4134, %v4404
        %v4469 = vmul.f32 %v3958, %v4405
        %v4470 = vmul.f32 %v4136, %v4406
        %v4471 = vmul.f32 %v3961, %v4407
        %v4472 = vmul.f32 %v4139, %v4408
        %v4473 = vmul.f32 %v3963, %v4409
        %v4474 = vmul.f32 %v4141, %v4410
        %v4475 = vmul.f32 %v3966, %v4411
        %v4476 = vmul.f32 %v4144, %v4412
        %v4477 = vmul.f32 %v3968, %v4413
        %v4478 = vmul.f32 %v4146, %v4414
        %v4479 = vmul.f32 %v3971, %v4415
        %v4480 = vmul.f32 %v4149, %v4416
        %v4481 = vmul.f32 %v3973, %v4417
        %v4482 = vmul.f32 %v4151, %v4418
        %v4483 = vmul.f32 %v3976, %v4419
        %v4484 = vmul.f32 %v4154, %v4420
        %v4485 = vmul.f32 %v3978, %v4421
        %v4486 = vmul.f32 %v4156, %v4422
        %v4487 = vmul.f32 %v3981, %v4423
        %v4488 = vmul.f32 %v4159, %v4424
        %v4489 = vmul.f32 %v3983, %v4425
        %v4490 = vmul.f32 %v4161, %v4426
        %v4491 = vmul.f32 %v3986, %v4427
        %v4492 = vmul.f32 %v4164, %v4428
        %v4493 = vmul.f32 %v3988, %v4429
        %v4494 = vmul.f32 %v4166, %v4430
        %v4495 = vmul.f32 %v3991, %v4431
        %v4496 = vmul.f32 %v4169, %v4432
        %v4497 = vmul.f32 %v3993, %v4433
        %v4498 = vmul.f32 %v4171, %v4434
        %v4499 = vmul.f32 %v3996, %v4435
        %v4500 = vmul.f32 %v4174, %v4436
        %v4501 = vmul.f32 %v3998, %v4437
        %v4502 = vmul.f32 %v4176, %v4438
        %v4503 = vmul.f32 %v4001, %v4439
        %v4504 = vmul.f32 %v4179, %v4440
        %v4505 = vmul.f32 %v4003, %v4441
        %v4506 = vmul.f32 %v4181, %v4442
        %v4507 = vmul.f32 %v4006, %v4443
        %v4508 = vmul.f32 %v4184, %v4444
        %v4509 = vmul.f32 %v4008, %v4445
        %v4510 = vmul.f32 %v4186, %v4446
        %v4511 = vmul.f32 %v4011, %v4447
        %v4512 = vmul.f32 %v4189, %v4448
        %v4513 = vmul.f32 %v4013, %v4449
        %v4514 = vmul.f32 %v4191, %v4450
        %v4515 = vmul.f32 %v4016, %v4451
        %v4516 = vmul.f32 %v4194, %v4452
        %v4517 = vmul.f32 %v4018, %v4453
        %v4518 = vmul.f32 %v4196, %v4454
        %v4519 = vmul.f32 %v4021, %v4455
        %v4520 = vmul.f32 %v4199, %v4456
        %v4521 = vmul.f32 %v4023, %v4457
        %v4522 = vmul.f32 %v4201, %v4458
        %v4523 = vpack.c.bf16 %v4461, %v4459
        %v4524 = vpack.c.bf16 %v4462, %v4460
        %v4525 = vpack.c.bf16 %v4465, %v4463
        %v4526 = vpack.c.bf16 %v4466, %v4464
        %v4527 = vpack.c.bf16 %v4469, %v4467
        %v4528 = vpack.c.bf16 %v4470, %v4468
        %v4529 = vpack.c.bf16 %v4473, %v4471
        %v4530 = vpack.c.bf16 %v4474, %v4472
        %v4531 = vpack.c.bf16 %v4477, %v4475
        %v4532 = vpack.c.bf16 %v4478, %v4476
        %v4533 = vpack.c.bf16 %v4481, %v4479
        %v4534 = vpack.c.bf16 %v4482, %v4480
        %v4535 = vpack.c.bf16 %v4485, %v4483
        %v4536 = vpack.c.bf16 %v4486, %v4484
        %v4537 = vpack.c.bf16 %v4489, %v4487
        %v4538 = vpack.c.bf16 %v4490, %v4488
        %v4539 = vpack.c.bf16 %v4493, %v4491
        %v4540 = vpack.c.bf16 %v4494, %v4492
        %v4541 = vpack.c.bf16 %v4497, %v4495
        %v4542 = vpack.c.bf16 %v4498, %v4496
        %v4543 = vpack.c.bf16 %v4501, %v4499
        %v4544 = vpack.c.bf16 %v4502, %v4500
        %v4545 = vpack.c.bf16 %v4505, %v4503
        %v4546 = vpack.c.bf16 %v4506, %v4504
        %v4547 = vpack.c.bf16 %v4509, %v4507
        %v4548 = vpack.c.bf16 %v4510, %v4508
        %v4549 = vpack.c.bf16 %v4513, %v4511
        %v4550 = vpack.c.bf16 %v4514, %v4512
        %v4551 = vpack.c.bf16 %v4517, %v4515
        %v4552 = vpack.c.bf16 %v4518, %v4516
        %v4553 = vpack.c.bf16 %v4521, %v4519
        %v4554 = vpack.c.bf16 %v4522, %v4520
        %v4555 = vld [vmem:[%s3] sm:$0xf]
        %v4556 = vld [vmem:[%s3 + $0x4] sm:$0xf]
        %v4557 = vld [vmem:[%s3 + $0x8] sm:$0xf]
        %v4558 = vld [vmem:[%s3 + $0xc] sm:$0xf]
        %v4559 = vld [vmem:[%s3 + $0x10] sm:$0xf]
        %v4560 = vld [vmem:[%s3 + $0x14] sm:$0xf]
        %v4561 = vld [vmem:[%s3 + $0x18] sm:$0xf]
        %v4562 = vld [vmem:[%s3 + $0x1c] sm:$0xf]
        %v4563 = vld [vmem:[%s3 + $0x20] sm:$0xf]
        %v4564 = vld [vmem:[%s3 + $0x24] sm:$0xf]
        %v4565 = vld [vmem:[%s3 + $0x28] sm:$0xf]
        %v4566 = vld [vmem:[%s3 + $0x2c] sm:$0xf]
        %v4567 = vld [vmem:[%s3 + $0x30] sm:$0xf]
        %v4568 = vld [vmem:[%s3 + $0x34] sm:$0xf]
        %v4569 = vld [vmem:[%s3 + $0x38] sm:$0xf]
        %v4570 = vld [vmem:[%s3 + $0x3c] sm:$0xf]
        %v4571 = vld [vmem:[%s3 + $0x40] sm:$0xf]
        %v4572 = vld [vmem:[%s3 + $0x44] sm:$0xf]
        %v4573 = vld [vmem:[%s3 + $0x48] sm:$0xf]
        %v4574 = vld [vmem:[%s3 + $0x4c] sm:$0xf]
        %v4575 = vld [vmem:[%s3 + $0x50] sm:$0xf]
        %v4576 = vld [vmem:[%s3 + $0x54] sm:$0xf]
        %v4577 = vld [vmem:[%s3 + $0x58] sm:$0xf]
        %v4578 = vld [vmem:[%s3 + $0x5c] sm:$0xf]
        %v4579 = vld [vmem:[%s3 + $0x60] sm:$0xf]
        %v4580 = vld [vmem:[%s3 + $0x64] sm:$0xf]
        %v4581 = vld [vmem:[%s3 + $0x68] sm:$0xf]
        %v4582 = vld [vmem:[%s3 + $0x6c] sm:$0xf]
        %v4583 = vld [vmem:[%s3 + $0x70] sm:$0xf]
        %v4584 = vld [vmem:[%s3 + $0x74] sm:$0xf]
        %v4585 = vld [vmem:[%s3 + $0x78] sm:$0xf]
        %v4586 = vld [vmem:[%s3 + $0x7c] sm:$0xf]
        %v4587 = vld [vmem:[%s5] sm:$0x1]
        %v4589 = vperm.slane %v4587, 0
        %v4623 = vunpack.c.l.b16 %v4555
        %v4624 = vunpack.c.l.b16 %v4556
        %v4625 = vunpack.c.l.b16 %v4557
        %v4626 = vunpack.c.l.b16 %v4558
        %v4627 = vunpack.c.l.b16 %v4559
        %v4628 = vunpack.c.l.b16 %v4560
        %v4629 = vunpack.c.l.b16 %v4561
        %v4630 = vunpack.c.l.b16 %v4562
        %v4631 = vunpack.c.l.b16 %v4563
        %v4632 = vunpack.c.l.b16 %v4564
        %v4633 = vunpack.c.l.b16 %v4565
        %v4634 = vunpack.c.l.b16 %v4566
        %v4635 = vunpack.c.l.b16 %v4567
        %v4636 = vunpack.c.l.b16 %v4568
        %v4637 = vunpack.c.l.b16 %v4569
        %v4638 = vunpack.c.l.b16 %v4570
        %v4639 = vunpack.c.l.b16 %v4571
        %v4640 = vunpack.c.l.b16 %v4572
        %v4641 = vunpack.c.l.b16 %v4573
        %v4642 = vunpack.c.l.b16 %v4574
        %v4643 = vunpack.c.l.b16 %v4575
        %v4644 = vunpack.c.l.b16 %v4576
        %v4645 = vunpack.c.l.b16 %v4577
        %v4646 = vunpack.c.l.b16 %v4578
        %v4647 = vunpack.c.l.b16 %v4579
        %v4648 = vunpack.c.l.b16 %v4580
        %v4649 = vunpack.c.l.b16 %v4581
        %v4650 = vunpack.c.l.b16 %v4582
        %v4651 = vunpack.c.l.b16 %v4583
        %v4652 = vunpack.c.l.b16 %v4584
        %v4653 = vunpack.c.l.b16 %v4585
        %v4654 = vunpack.c.l.b16 %v4586
        %v4655 = vpack.c.b16 %v4624, %v4623
        %v4656 = vpack.c.b16 %v4626, %v4625
        %v4657 = vpack.c.b16 %v4628, %v4627
        %v4658 = vpack.c.b16 %v4630, %v4629
        %v4659 = vpack.c.b16 %v4632, %v4631
        %v4660 = vpack.c.b16 %v4634, %v4633
        %v4661 = vpack.c.b16 %v4636, %v4635
        %v4662 = vpack.c.b16 %v4638, %v4637
        %v4663 = vpack.c.b16 %v4640, %v4639
        %v4664 = vpack.c.b16 %v4642, %v4641
        %v4665 = vpack.c.b16 %v4644, %v4643
        %v4666 = vpack.c.b16 %v4646, %v4645
        %v4667 = vpack.c.b16 %v4648, %v4647
        %v4668 = vpack.c.b16 %v4650, %v4649
        %v4669 = vpack.c.b16 %v4652, %v4651
        %v4670 = vpack.c.b16 %v4654, %v4653
        %4687 = vmatpush.bf16.msra.mxu0 %v4662
        %4688 = vmatpush.bf16.msra.mxu0 %v4661
        %4689 = vmatpush.bf16.msra.mxu0 %v4660
        %4690 = vmatpush.bf16.msra.mxu0 %v4659
        %4691 = vmatpush.bf16.msra.mxu0 %v4658
        %4692 = vmatpush.bf16.msra.mxu0 %v4657
        %4693 = vmatpush.bf16.msra.mxu0 %v4656
        %4694 = vmatpush.bf16.msra.mxu0 %v4655
        %4695 = vmatmul.bf16.gmra.mxu0 %v4523
        %v4696 = vpop.f32.mrf.mxu0
        %v4697 = vadd.f32 %v4589, %v4696
        %v4698 = vpop.f32.mrf.mxu0
        %v4699 = vadd.f32 %v4589, %v4698
        %4700 = vmatmul.bf16.gmra.mxu0 %v4525
        %v4701 = vpop.f32.mrf.mxu0
        %v4702 = vadd.f32 %v4589, %v4701
        %v4703 = vpop.f32.mrf.mxu0
        %v4704 = vadd.f32 %v4589, %v4703
        %4705 = vmatmul.bf16.gmra.mxu0 %v4527
        %v4706 = vpop.f32.mrf.mxu0
        %v4707 = vadd.f32 %v4589, %v4706
        %v4708 = vpop.f32.mrf.mxu0
        %v4709 = vadd.f32 %v4589, %v4708
        %4710 = vmatmul.bf16.gmra.mxu0 %v4529
        %v4711 = vpop.f32.mrf.mxu0
        %v4712 = vadd.f32 %v4589, %v4711
        %v4713 = vpop.f32.mrf.mxu0
        %v4714 = vadd.f32 %v4589, %v4713
        %4715 = vmatmul.bf16.gmra.mxu0 %v4531
        %v4716 = vpop.f32.mrf.mxu0
        %v4717 = vadd.f32 %v4589, %v4716
        %v4718 = vpop.f32.mrf.mxu0
        %v4719 = vadd.f32 %v4589, %v4718
        %4720 = vmatmul.bf16.gmra.mxu0 %v4533
        %v4721 = vpop.f32.mrf.mxu0
        %v4722 = vadd.f32 %v4589, %v4721
        %v4723 = vpop.f32.mrf.mxu0
        %v4724 = vadd.f32 %v4589, %v4723
        %4725 = vmatmul.bf16.gmra.mxu0 %v4535
        %v4726 = vpop.f32.mrf.mxu0
        %v4727 = vadd.f32 %v4589, %v4726
        %v4728 = vpop.f32.mrf.mxu0
        %v4729 = vadd.f32 %v4589, %v4728
        %4730 = vmatmul.bf16.gmra.mxu0 %v4537
        %v4731 = vpop.f32.mrf.mxu0
        %v4732 = vadd.f32 %v4589, %v4731
        %v4733 = vpop.f32.mrf.mxu0
        %v4734 = vadd.f32 %v4589, %v4733
        %4735 = vmatmul.bf16.gmra.mxu0 %v4539
        %v4736 = vpop.f32.mrf.mxu0
        %v4737 = vadd.f32 %v4589, %v4736
        %v4738 = vpop.f32.mrf.mxu0
        %v4739 = vadd.f32 %v4589, %v4738
        %4740 = vmatmul.bf16.gmra.mxu0 %v4541
        %v4741 = vpop.f32.mrf.mxu0
        %v4742 = vadd.f32 %v4589, %v4741
        %v4743 = vpop.f32.mrf.mxu0
        %v4744 = vadd.f32 %v4589, %v4743
        %4745 = vmatmul.bf16.gmra.mxu0 %v4543
        %v4746 = vpop.f32.mrf.mxu0
        %v4747 = vadd.f32 %v4589, %v4746
        %v4748 = vpop.f32.mrf.mxu0
        %v4749 = vadd.f32 %v4589, %v4748
        %4750 = vmatmul.bf16.gmra.mxu0 %v4545
        %v4751 = vpop.f32.mrf.mxu0
        %v4752 = vadd.f32 %v4589, %v4751
        %v4753 = vpop.f32.mrf.mxu0
        %v4754 = vadd.f32 %v4589, %v4753
        %4755 = vmatmul.bf16.gmra.mxu0 %v4547
        %v4756 = vpop.f32.mrf.mxu0
        %v4757 = vadd.f32 %v4589, %v4756
        %v4758 = vpop.f32.mrf.mxu0
        %v4759 = vadd.f32 %v4589, %v4758
        %4760 = vmatmul.bf16.gmra.mxu0 %v4549
        %v4761 = vpop.f32.mrf.mxu0
        %v4762 = vadd.f32 %v4589, %v4761
        %v4763 = vpop.f32.mrf.mxu0
        %v4764 = vadd.f32 %v4589, %v4763
        %4765 = vmatmul.bf16.gmra.mxu0 %v4551
        %v4766 = vpop.f32.mrf.mxu0
        %v4767 = vadd.f32 %v4589, %v4766
        %v4768 = vpop.f32.mrf.mxu0
        %v4769 = vadd.f32 %v4589, %v4768
        %4770 = vmatmul.bf16.gmra.mxu0 %v4553
        %v4771 = vpop.f32.mrf.mxu0
        %v4772 = vadd.f32 %v4589, %v4771
        %v4773 = vpop.f32.mrf.mxu0
        %v4774 = vadd.f32 %v4589, %v4773
        %4775 = vdwg.mxu0
        %4776 = vmatpush.bf16.msra.mxu0 %v4670
        %4777 = vmatpush.bf16.msra.mxu0 %v4669
        %4778 = vmatpush.bf16.msra.mxu0 %v4668
        %4779 = vmatpush.bf16.msra.mxu0 %v4667
        %4780 = vmatpush.bf16.msra.mxu0 %v4666
        %4781 = vmatpush.bf16.msra.mxu0 %v4665
        %4782 = vmatpush.bf16.msra.mxu0 %v4664
        %4783 = vmatpush.bf16.msra.mxu0 %v4663
        %4784 = vmatmul.bf16.gmra.mxu0 %v4524
        %v4785 = vpop.f32.mrf.mxu0
        %v4786 = vadd.f32 %v4697, %v4785
        %v4787 = vpop.f32.mrf.mxu0
        %v4788 = vadd.f32 %v4699, %v4787
        %4789 = vmatmul.bf16.gmra.mxu0 %v4526
        %v4790 = vpop.f32.mrf.mxu0
        %v4791 = vadd.f32 %v4702, %v4790
        %v4792 = vpop.f32.mrf.mxu0
        %v4793 = vadd.f32 %v4704, %v4792
        %4794 = vmatmul.bf16.gmra.mxu0 %v4528
        %v4795 = vpop.f32.mrf.mxu0
        %v4796 = vadd.f32 %v4707, %v4795
        %v4797 = vpop.f32.mrf.mxu0
        %v4798 = vadd.f32 %v4709, %v4797
        %4799 = vmatmul.bf16.gmra.mxu0 %v4530
        %v4800 = vpop.f32.mrf.mxu0
        %v4801 = vadd.f32 %v4712, %v4800
        %v4802 = vpop.f32.mrf.mxu0
        %v4803 = vadd.f32 %v4714, %v4802
        %4804 = vmatmul.bf16.gmra.mxu0 %v4532
        %v4805 = vpop.f32.mrf.mxu0
        %v4806 = vadd.f32 %v4717, %v4805
        %v4807 = vpop.f32.mrf.mxu0
        %v4808 = vadd.f32 %v4719, %v4807
        %4809 = vmatmul.bf16.gmra.mxu0 %v4534
        %v4810 = vpop.f32.mrf.mxu0
        %v4811 = vadd.f32 %v4722, %v4810
        %v4812 = vpop.f32.mrf.mxu0
        %v4813 = vadd.f32 %v4724, %v4812
        %4814 = vmatmul.bf16.gmra.mxu0 %v4536
        %v4815 = vpop.f32.mrf.mxu0
        %v4816 = vadd.f32 %v4727, %v4815
        %v4817 = vpop.f32.mrf.mxu0
        %v4818 = vadd.f32 %v4729, %v4817
        %4819 = vmatmul.bf16.gmra.mxu0 %v4538
        %v4820 = vpop.f32.mrf.mxu0
        %v4821 = vadd.f32 %v4732, %v4820
        %v4822 = vpop.f32.mrf.mxu0
        %v4823 = vadd.f32 %v4734, %v4822
        %4824 = vmatmul.bf16.gmra.mxu0 %v4540
        %v4825 = vpop.f32.mrf.mxu0
        %v4826 = vadd.f32 %v4737, %v4825
        %v4827 = vpop.f32.mrf.mxu0
        %v4828 = vadd.f32 %v4739, %v4827
        %4829 = vmatmul.bf16.gmra.mxu0 %v4542
        %v4830 = vpop.f32.mrf.mxu0
        %v4831 = vadd.f32 %v4742, %v4830
        %v4832 = vpop.f32.mrf.mxu0
        %v4833 = vadd.f32 %v4744, %v4832
        %4834 = vmatmul.bf16.gmra.mxu0 %v4544
        %v4835 = vpop.f32.mrf.mxu0
        %v4836 = vadd.f32 %v4747, %v4835
        %v4837 = vpop.f32.mrf.mxu0
        %v4838 = vadd.f32 %v4749, %v4837
        %4839 = vmatmul.bf16.gmra.mxu0 %v4546
        %v4840 = vpop.f32.mrf.mxu0
        %v4841 = vadd.f32 %v4752, %v4840
        %v4842 = vpop.f32.mrf.mxu0
        %v4843 = vadd.f32 %v4754, %v4842
        %4844 = vmatmul.bf16.gmra.mxu0 %v4548
        %v4845 = vpop.f32.mrf.mxu0
        %v4846 = vadd.f32 %v4757, %v4845
        %v4847 = vpop.f32.mrf.mxu0
        %v4848 = vadd.f32 %v4759, %v4847
        %4849 = vmatmul.bf16.gmra.mxu0 %v4550
        %v4850 = vpop.f32.mrf.mxu0
        %v4851 = vadd.f32 %v4762, %v4850
        %v4852 = vpop.f32.mrf.mxu0
        %v4853 = vadd.f32 %v4764, %v4852
        %4854 = vmatmul.bf16.gmra.mxu0 %v4552
        %v4855 = vpop.f32.mrf.mxu0
        %v4856 = vadd.f32 %v4767, %v4855
        %v4857 = vpop.f32.mrf.mxu0
        %v4858 = vadd.f32 %v4769, %v4857
        %4859 = vmatmul.bf16.gmra.mxu0 %v4554
        %v4860 = vpop.f32.mrf.mxu0
        %v4861 = vadd.f32 %v4772, %v4860
        %v4862 = vpop.f32.mrf.mxu0
        %v4863 = vadd.f32 %v4774, %v4862
        %4864 = vdwg.mxu0
        %4865 = vst [vmem:[%s262] sm:$0xff] %v4786
        %4866 = vst [vmem:[%s262 + $0x8] sm:$0xff] %v4788
        %4867 = vst [vmem:[%s262 + $0x10] sm:$0xff] %v4791
        %4868 = vst [vmem:[%s262 + $0x18] sm:$0xff] %v4793
        %4869 = vst [vmem:[%s262 + $0x20] sm:$0xff] %v4796
        %4870 = vst [vmem:[%s262 + $0x28] sm:$0xff] %v4798
        %4871 = vst [vmem:[%s262 + $0x30] sm:$0xff] %v4801
        %4872 = vst [vmem:[%s262 + $0x38] sm:$0xff] %v4803
        %4873 = vst [vmem:[%s262 + $0x40] sm:$0xff] %v4806
        %4874 = vst [vmem:[%s262 + $0x48] sm:$0xff] %v4808
        %4875 = vst [vmem:[%s262 + $0x50] sm:$0xff] %v4811
        %4876 = vst [vmem:[%s262 + $0x58] sm:$0xff] %v4813
        %4877 = vst [vmem:[%s262 + $0x60] sm:$0xff] %v4816
        %4878 = vst [vmem:[%s262 + $0x68] sm:$0xff] %v4818
        %4879 = vst [vmem:[%s262 + $0x70] sm:$0xff] %v4821
        %4880 = vst [vmem:[%s262 + $0x78] sm:$0xff] %v4823
        %4881 = vst [vmem:[%s262 + $0x80] sm:$0xff] %v4826
        %4882 = vst [vmem:[%s262 + $0x88] sm:$0xff] %v4828
        %4883 = vst [vmem:[%s262 + $0x90] sm:$0xff] %v4831
        %4884 = vst [vmem:[%s262 + $0x98] sm:$0xff] %v4833
        %4885 = vst [vmem:[%s262 + $0xa0] sm:$0xff] %v4836
        %4886 = vst [vmem:[%s262 + $0xa8] sm:$0xff] %v4838
        %4887 = vst [vmem:[%s262 + $0xb0] sm:$0xff] %v4841
        %4888 = vst [vmem:[%s262 + $0xb8] sm:$0xff] %v4843
        %4889 = vst [vmem:[%s262 + $0xc0] sm:$0xff] %v4846
        %4890 = vst [vmem:[%s262 + $0xc8] sm:$0xff] %v4848
        %4891 = vst [vmem:[%s262 + $0xd0] sm:$0xff] %v4851
        %4892 = vst [vmem:[%s262 + $0xd8] sm:$0xff] %v4853
        %4893 = vst [vmem:[%s262 + $0xe0] sm:$0xff] %v4856
        %4894 = vst [vmem:[%s262 + $0xe8] sm:$0xff] %v4858
        %4895 = vst [vmem:[%s262 + $0xf0] sm:$0xff] %v4861
        %4896 = vst [vmem:[%s262 + $0xf8] sm:$0xff] %v4863
        %s4897 = sand.u32 %s160, 1
        %s4898 = scalar_lea.sflag [#allocation4], %s4897
        %s4899 = sand.u32 %s160, 1
        %s4900 = smul.addr %s4899, 256
        %s4901 = scalar_lea.vmem [#allocation5], %s4900
        // Predicated region
        $region49: #{tpu_custom_call.1} parent=43 // pred_check
          %p4902 = pneg %p170
        $region50: #{tpu_custom_call.1} parent=43 // pred_check_branch
          %4904 = sbr.rel (%p4902) target = $region52
        $region51: #{tpu_custom_call.1} parent=43 // pred_region
          %s4905 = smul.u32 32, %s21
          %4907 = vsyncadd %s4898, 0
          %s4908 = smul.addr %s4905, 8
          %s4909 = scalar_lea.hbm %s6, %s4908
          %s4910 = sshll.u32 %s4901, 4
          %s4911 = int_to_ptr.vmem [resolvable:$true] %s4910
          %s4912 = sshll.u32 %s4909, 4
          %s4913 = int_to_ptr.hbm [resolvable:$true] %s4912
          %4918 = dma.vmem_to_hbm [thread:$0]  %s4911, 4096, %s4913, %s4898, 128, 128, 8
        $region52: #{tpu_custom_call.1} parent=43 // pred_fallthru
          _
      $region44: #{tpu_custom_call.1} parent=5 // pred_fallthru
        _
      %p4919 = scmp.le.s32.totalorder 2, %s16
      // Predicated region
      $region53: #{tpu_custom_call.1} parent=5 // pred_check
        %p4920 = pneg %p4919
      $region54: #{tpu_custom_call.1} parent=5 // pred_check_branch
        %4922 = sbr.rel (%p4920) target = $region56
      $region55: #{tpu_custom_call.1} parent=5 // pred_region
        %s4923 = ssub.s32 %s16, 2
        // Predicated region
        $region57: #{tpu_custom_call.1} parent=55 // pred_check
          %p4924 = pneg %p176
        $region58: #{tpu_custom_call.1} parent=55 // pred_check_branch
          %4926 = sbr.rel (%p4924) target = $region60
        $region59: #{tpu_custom_call.1} parent=55 // pred_region
          %s4927 = sand.u32 %s161, 1
          %s4928 = scalar_lea.sflag [#allocation4], %s4927
          %s4929 = sand.u32 %s161, 1
          %s4930 = smul.addr %s4929, 256
          %s4931 = scalar_lea.vmem [#allocation5], %s4930
          %4933 = dma.done %s4928, 4096
        $region60: #{tpu_custom_call.1} parent=55 // pred_fallthru
          _
      $region56: #{tpu_custom_call.1} parent=5 // pred_fallthru
        _
    $region6: #{tpu_custom_call.1} parent=1 // loop_footer
      %s20 = sadd.s32 1, %s16
    $region7: #{tpu_custom_call.1} parent=1 // loop_footer_branch
      %15 = sbr.rel target = $region3
    $region8: #{tpu_custom_call.1} parent=1 // loop_exit
      _
    %4934 = vsyncpa [#allocation3], 1
    %s4935 = scalar_lea.sflag [#allocation3], 1
    %4936 = vsyncpa %s4935, 1
    %4937 = vsyncpa [#allocation4], 1
    %s4938 = scalar_lea.sflag [#allocation4], 1
    %4939 = vsyncpa %s4938, 1

</llo_original>
